<compile_context>
chip_gen: v6e
topology: v6e:2x2x1
jax: 0.10.0
libtpu: 0.0.40
codegen_flags: <defaults>
</compile_context>

<pallas_src>
import jax
import jax.numpy as jnp
from jax import lax
from jax.experimental import pallas as pl
from jax.experimental.pallas import tpu as pltpu


def _make_fused_kernel(H, W, C):
    """Fused conv1(+tanh+relu) -> conv2 stride2(+sigmoid) for one NHWC image."""
    assert H % 2 == 0 and W % 2 == 0, (H, W)
    HOUT, WOUT = H // 2, W // 2
    # conv1 row chunk: keep per-dot M (= R1*WOUT) at <= 128 rows so the f32
    # accumulator stays at <= 16 vregs on every TPU generation (v5e-safe;
    # M=256 is a possible further win on v6e/v7x at the cost of spill risk).
    R1 = H
    while R1 % 2 == 0 and R1 * WOUT > 128:
        R1 //= 2
    assert H % R1 == 0, (H, R1)

    def kernel(x_ref, w1_ref, b1_ref, w2_ref, b2_ref, o_ref,
               xpe_ref, xpo_ref, x1pe_ref, x1po_ref):
        f32, bf16 = jnp.float32, jnp.bfloat16

        # ---- border-only zeroing ------------------------------------------
        # Only cells that are read but never written this step (pad borders);
        # the interiors are overwritten below. Runs unconditionally every step
        # so it stays correct if the grid is split across TensorCores.
        zrow = jnp.zeros((1, WOUT + 1, C), f32)
        zcol = jnp.zeros((H + 2, 1, C), f32)
        xpe_ref[0:1, :, :] = zrow                    # top pad
        xpe_ref[H + 1:H + 2, :, :] = zrow            # bottom pad
        xpe_ref[:, 0:1, :] = zcol                    # left pad  (padded col 0)
        xpo_ref[0:1, :, :] = zrow
        xpo_ref[H + 1:H + 2, :, :] = zrow
        xpo_ref[:, WOUT:WOUT + 1, :] = zcol          # right pad (padded col W+1)
        x1pe_ref[0:1, :, :] = zrow                   # conv1-out top pad
        x1pe_ref[:, 0:1, :] = zcol                   # conv1-out left pad
        x1po_ref[0:1, :, :] = jnp.zeros((1, WOUT, C), f32)

        # ---- padding=1 + even/odd W split of the input (stays in VMEM) -----
        #   padded col 2q   -> xpe[:, q]   (q = 0    is the zero pad column)
        #   padded col 2q+1 -> xpo[:, q]   (q = WOUT is the zero pad column)
        xpo_ref[1:1 + H, 0:WOUT, :] = x_ref[:, pl.ds(0, WOUT, stride=2), :]
        xpe_ref[1:1 + H, 1:1 + WOUT, :] = x_ref[:, pl.ds(1, WOUT, stride=2), :]

        b1 = b1_ref[...]            # (1, C) f32
        b2 = b2_ref[...]            # (1, C) f32

        def lhs_from(taps, rows, m):
            """Concatenate the 3 kw taps along K -> (m, 3C) bf16 MXU lhs."""
            parts = [ref[rows, c0:c0 + WOUT, :].reshape(m, C).astype(bf16)
                     for (ref, c0) in taps]
            return jnp.concatenate(parts, axis=-1)

        # ---- conv1: 3x3 / stride 1 / pad 1, fused tanh + relu --------------
        # Even output columns w=2q read padded cols (2q, 2q+1, 2q+2);
        # odd  output columns w=2q+1 read padded cols (2q+1, 2q+2, 2q+3).
        EVEN_TAPS = ((xpe_ref, 0), (xpo_ref, 0), (xpe_ref, 1))   # kw = 0, 1, 2
        ODD_TAPS = ((xpo_ref, 0), (xpe_ref, 1), (xpo_ref, 1))    # kw = 0, 1, 2

        for y0 in range(0, H, R1):
            for parity, taps in enumerate((EVEN_TAPS, ODD_TAPS)):
                acc = jnp.zeros((R1 * WOUT, C), f32)
                for kh in range(3):
                    rows = slice(y0 + kh, y0 + kh + R1)
                    acc = acc + jnp.dot(lhs_from(taps, rows, R1 * WOUT),
                                        w1_ref[kh],
                                        preferred_element_type=f32)
                y1 = jnp.maximum(jnp.tanh(acc + b1), 0.0).reshape(R1, WOUT, C)
                if parity == 0:
                    # even x1 columns == odd padded columns -> x1po[:, q]
                    x1po_ref[1 + y0:1 + y0 + R1, 0:WOUT, :] = y1
                else:
                    # odd x1 columns == even padded columns -> x1pe[:, q+1]
                    x1pe_ref[1 + y0:1 + y0 + R1, 1:1 + WOUT, :] = y1

        # ---- conv2: 3x3 / stride 2 / pad 1, fused sigmoid -------------------
        # Output (i, j) reads padded x1 at rows 2i+kh and cols (2j, 2j+1, 2j+2)
        # = (x1pe[j], x1po[j], x1pe[j+1]): contiguous slices, no W-stride.
        C2_TAPS = ((x1pe_ref, 0), (x1po_ref, 0), (x1pe_ref, 1))  # kw = 0, 1, 2
        acc2 = jnp.zeros((HOUT * WOUT, C), f32)
        for kh in range(3):
            rows = pl.ds(kh, HOUT, stride=2)    # padded rows kh, kh+2, ...
            acc2 = acc2 + jnp.dot(lhs_from(C2_TAPS, rows, HOUT * WOUT),
                                  w2_ref[kh],
                                  preferred_element_type=f32)
        o_ref[...] = jax.nn.sigmoid(acc2 + b2).reshape(HOUT, WOUT, C).astype(o_ref.dtype)

    return kernel


def fused_forward_nhwc(x, w1p, b1, w2p, b2):
    """x: (N,H,W,C) f32; w1p/w2p: (3, 3C, C) bf16 per-kh packed taps; b: (C,) f32."""
    N, H, W, C = x.shape
    assert H % 2 == 0 and W % 2 == 0, (H, W)
    assert C % 128 == 0, C
    HOUT, WOUT = H // 2, W // 2
    kernel = _make_fused_kernel(H, W, C)

    return pl.pallas_call(
        kernel,
        out_shape=jax.ShapeDtypeStruct((N, HOUT, WOUT, C), x.dtype),
        grid=(N,),
        in_specs=[
            pl.BlockSpec((None, H, W, C), lambda n: (n, 0, 0, 0)),
            pl.BlockSpec((3, 3 * C, C), lambda n: (0, 0, 0)),
            pl.BlockSpec((1, C), lambda n: (0, 0)),
            pl.BlockSpec((3, 3 * C, C), lambda n: (0, 0, 0)),
            pl.BlockSpec((1, C), lambda n: (0, 0)),
        ],
        out_specs=pl.BlockSpec((None, HOUT, WOUT, C), lambda n: (n, 0, 0, 0)),
        scratch_shapes=[
            pltpu.VMEM((H + 2, WOUT + 1, C), jnp.float32),   # xpe : padded input, even cols
            pltpu.VMEM((H + 2, WOUT + 1, C), jnp.float32),   # xpo : padded input, odd cols
            pltpu.VMEM((H + 2, WOUT + 1, C), jnp.float32),   # x1pe: padded conv1 out, even cols
            pltpu.VMEM((H + 2, WOUT, C), jnp.float32),       # x1po: padded conv1 out, odd cols
        ],
        compiler_params=pltpu.CompilerParams(
            dimension_semantics=("parallel",)),
    )(x, w1p, b1.reshape(1, C), w2p, b2.reshape(1, C))


def model_tanh_forward(x_nchw, params):
    c = params["b1"].shape[0]
    x = jnp.transpose(x_nchw, (0, 2, 3, 1))                   # NCHW -> NHWC
    # Per-kh K-concat packing: (3, 3, Cin, Cout) -> (3, 3*Cin, Cout), rows
    # [kw*Cin:(kw+1)*Cin] of block kh hold the (kh, kw) tap. Cast to bf16.
    w1p = params["w1"].reshape(3, 3 * c, c).astype(jnp.bfloat16)
    w2p = params["w2"].reshape(3, 3 * c, c).astype(jnp.bfloat16)
    out = fused_forward_nhwc(x, w1p, params["b1"], w2p, params["b2"])
    return jnp.transpose(out, (0, 3, 1, 2))                   # NHWC -> NCHW


def init_params(key, c=128):
    """Deterministic Conv2d-style init; weights stored HWIO as (3, 3, Cin, Cout)."""
    k1, k2, k3, k4 = jax.random.split(key, 4)
    fan_in = c * 9
    bound = 1.0 / jnp.sqrt(fan_in)
    w1 = jax.random.uniform(k1, (3, 3, c, c), jnp.float32, -bound, bound)
    b1 = jax.random.uniform(k2, (c,), jnp.float32, -bound, bound)
    w2 = jax.random.uniform(k3, (3, 3, c, c), jnp.float32, -bound, bound)
    b2 = jax.random.uniform(k4, (c,), jnp.float32, -bound, bound)
    return {"w1": w1, "b1": b1, "w2": w2, "b2": b2}


def reference_forward(x_nchw, params):
    """Pure-JAX f32 reference (same semantics as the PyTorch module)."""
    x = jnp.transpose(x_nchw, (0, 2, 3, 1))
    dn = lax.conv_dimension_numbers(x.shape, params["w1"].shape,
                                    ("NHWC", "HWIO", "NHWC"))
    y1 = lax.conv_general_dilated(x, params["w1"], (1, 1), ((1, 1), (1, 1)),
                                  dimension_numbers=dn) + params["b1"]
    y1 = jnp.maximum(jnp.tanh(y1), 0.0)
    y2 = lax.conv_general_dilated(y1, params["w2"], (2, 2), ((1, 1), (1, 1)),
                                  dimension_numbers=dn) + params["b2"]
    return jnp.transpose(jax.nn.sigmoid(y2), (0, 3, 1, 2))


if __name__ == "__main__":
    key = jax.random.PRNGKey(0)
    kx, kp = jax.random.split(key)

    # Module fixes channels at 128; small batch/spatial: (2, 128, 16, 16) NCHW.
    x = jax.random.normal(kx, (2, 128, 16, 16), jnp.float32)
    params = init_params(kp, c=128)

    out = jax.jit(model_tanh_forward)(x, params)
    out = jax.block_until_ready(out)
    assert out.shape == (2, 128, 8, 8), out.shape

    ref = reference_forward(x, params)
    max_err = float(jnp.max(jnp.abs(out - ref)))
    assert jnp.allclose(out, ref, atol=2e-2, rtol=2e-2), max_err

    print("KERNEL_OK")
</pallas_src>

<mosaic_0001>
module attributes {stable_mosaic.version = 11 : i64} {
  func.func @kernel(%arg0: i32, %arg1: memref<1x16x16x128xf32, #tpu.memory_space<vmem>>, %arg2: memref<3x384x128xbf16, #tpu.memory_space<vmem>>, %arg3: memref<1x128xf32, #tpu.memory_space<vmem>>, %arg4: memref<3x384x128xbf16, #tpu.memory_space<vmem>>, %arg5: memref<1x128xf32, #tpu.memory_space<vmem>>, %arg6: memref<1x8x8x128xf32, #tpu.memory_space<vmem>>, %arg7: memref<18x9x128xf32, #tpu.memory_space<vmem>>, %arg8: memref<18x9x128xf32, #tpu.memory_space<vmem>>, %arg9: memref<18x9x128xf32, #tpu.memory_space<vmem>>, %arg10: memref<18x8x128xf32, #tpu.memory_space<vmem>>) attributes {dimension_semantics = [#tpu.dimension_semantics<parallel>], iteration_bounds = array<i64: 2>, scalar_prefetch = 0 : i64, scratch_operands = 4 : i64, tpu.core_type = #tpu.core_type<tc>, window_params = [{transform_indices = @transform_0, window_bounds = array<i64: 1, 16, 16, 128>}, {pipeline_mode = #tpu.pipeline_mode<synchronous>, transform_indices = @transform_1, window_bounds = array<i64: 3, 384, 128>}, {pipeline_mode = #tpu.pipeline_mode<synchronous>, transform_indices = @transform_2, window_bounds = array<i64: 1, 128>}, {pipeline_mode = #tpu.pipeline_mode<synchronous>, transform_indices = @transform_3, window_bounds = array<i64: 3, 384, 128>}, {pipeline_mode = #tpu.pipeline_mode<synchronous>, transform_indices = @transform_4, window_bounds = array<i64: 1, 128>}, {transform_indices = @transform_5, window_bounds = array<i64: 1, 8, 8, 128>}]} {
    %cst = arith.constant 0.000000e+00 : f32
    %0 = vector.broadcast %cst : f32 to vector<1x9x128xf32>
    %cst_0 = arith.constant 0.000000e+00 : f32
    %1 = vector.broadcast %cst_0 : f32 to vector<18x1x128xf32>
    %c0 = arith.constant 0 : index
    %c0_1 = arith.constant 0 : index
    %c0_2 = arith.constant 0 : index
    %2 = vector.load %arg7[%c0, %c0_1, %c0_2] : memref<18x9x128xf32, #tpu.memory_space<vmem>>, vector<1x9x128xf32>
    tpu.vector_store %arg7[%c0, %c0_1, %c0_2], %0 {strides = array<i32>} : memref<18x9x128xf32, #tpu.memory_space<vmem>>, vector<1x9x128xf32>,
    %c17 = arith.constant 17 : index
    %c0_3 = arith.constant 0 : index
    %c0_4 = arith.constant 0 : index
    %3 = vector.load %arg7[%c17, %c0_3, %c0_4] : memref<18x9x128xf32, #tpu.memory_space<vmem>>, vector<1x9x128xf32>
    tpu.vector_store %arg7[%c17, %c0_3, %c0_4], %0 {strides = array<i32>} : memref<18x9x128xf32, #tpu.memory_space<vmem>>, vector<1x9x128xf32>,
    %c0_5 = arith.constant 0 : index
    %c0_6 = arith.constant 0 : index
    %c0_7 = arith.constant 0 : index
    %4 = vector.load %arg7[%c0_5, %c0_6, %c0_7] : memref<18x9x128xf32, #tpu.memory_space<vmem>>, vector<18x1x128xf32>
    tpu.vector_store %arg7[%c0_5, %c0_6, %c0_7], %1 {strides = array<i32>} : memref<18x9x128xf32, #tpu.memory_space<vmem>>, vector<18x1x128xf32>,
    %c0_8 = arith.constant 0 : index
    %c0_9 = arith.constant 0 : index
    %c0_10 = arith.constant 0 : index
    %5 = vector.load %arg8[%c0_8, %c0_9, %c0_10] : memref<18x9x128xf32, #tpu.memory_space<vmem>>, vector<1x9x128xf32>
    tpu.vector_store %arg8[%c0_8, %c0_9, %c0_10], %0 {strides = array<i32>} : memref<18x9x128xf32, #tpu.memory_space<vmem>>, vector<1x9x128xf32>,
    %c17_11 = arith.constant 17 : index
    %c0_12 = arith.constant 0 : index
    %c0_13 = arith.constant 0 : index
    %6 = vector.load %arg8[%c17_11, %c0_12, %c0_13] : memref<18x9x128xf32, #tpu.memory_space<vmem>>, vector<1x9x128xf32>
    tpu.vector_store %arg8[%c17_11, %c0_12, %c0_13], %0 {strides = array<i32>} : memref<18x9x128xf32, #tpu.memory_space<vmem>>, vector<1x9x128xf32>,
    %c0_14 = arith.constant 0 : index
    %c8 = arith.constant 8 : index
    %c0_15 = arith.constant 0 : index
    %7 = vector.load %arg8[%c0_14, %c8, %c0_15] : memref<18x9x128xf32, #tpu.memory_space<vmem>>, vector<18x1x128xf32>
    tpu.vector_store %arg8[%c0_14, %c8, %c0_15], %1 {strides = array<i32>} : memref<18x9x128xf32, #tpu.memory_space<vmem>>, vector<18x1x128xf32>,
    %c0_16 = arith.constant 0 : index
    %c0_17 = arith.constant 0 : index
    %c0_18 = arith.constant 0 : index
    %8 = vector.load %arg9[%c0_16, %c0_17, %c0_18] : memref<18x9x128xf32, #tpu.memory_space<vmem>>, vector<1x9x128xf32>
    tpu.vector_store %arg9[%c0_16, %c0_17, %c0_18], %0 {strides = array<i32>} : memref<18x9x128xf32, #tpu.memory_space<vmem>>, vector<1x9x128xf32>,
    %c0_19 = arith.constant 0 : index
    %c0_20 = arith.constant 0 : index
    %c0_21 = arith.constant 0 : index
    %9 = vector.load %arg9[%c0_19, %c0_20, %c0_21] : memref<18x9x128xf32, #tpu.memory_space<vmem>>, vector<18x1x128xf32>
    tpu.vector_store %arg9[%c0_19, %c0_20, %c0_21], %1 {strides = array<i32>} : memref<18x9x128xf32, #tpu.memory_space<vmem>>, vector<18x1x128xf32>,
    %cst_22 = arith.constant 0.000000e+00 : f32
    %10 = vector.broadcast %cst_22 : f32 to vector<1x8x128xf32>
    %c0_23 = arith.constant 0 : index
    %c0_24 = arith.constant 0 : index
    %c0_25 = arith.constant 0 : index
    %11 = vector.load %arg10[%c0_23, %c0_24, %c0_25] : memref<18x8x128xf32, #tpu.memory_space<vmem>>, vector<1x8x128xf32>
    tpu.vector_store %arg10[%c0_23, %c0_24, %c0_25], %10 {strides = array<i32>} : memref<18x8x128xf32, #tpu.memory_space<vmem>>, vector<1x8x128xf32>,
    %c0_26 = arith.constant 0 : index
    %c0_27 = arith.constant 0 : index
    %c0_28 = arith.constant 0 : index
    %c0_29 = arith.constant 0 : index
    %12 = tpu.strided_load %arg1[%c0_26, %c0_27, %c0_28, %c0_29] {strides = array<i32: 1, 1, 2, 1>} : memref<1x16x16x128xf32, #tpu.memory_space<vmem>>, vector<1x16x8x128xf32>
    %13 = vector.shape_cast %12 : vector<1x16x8x128xf32> to vector<16x8x128xf32>
    %c1 = arith.constant 1 : index
    %c0_30 = arith.constant 0 : index
    %c0_31 = arith.constant 0 : index
    %14 = vector.load %arg8[%c1, %c0_30, %c0_31] : memref<18x9x128xf32, #tpu.memory_space<vmem>>, vector<16x8x128xf32>
    tpu.vector_store %arg8[%c1, %c0_30, %c0_31], %13 {strides = array<i32>} : memref<18x9x128xf32, #tpu.memory_space<vmem>>, vector<16x8x128xf32>,
    %c0_32 = arith.constant 0 : index
    %c0_33 = arith.constant 0 : index
    %c1_34 = arith.constant 1 : index
    %c0_35 = arith.constant 0 : index
    %15 = tpu.strided_load %arg1[%c0_32, %c0_33, %c1_34, %c0_35] {strides = array<i32: 1, 1, 2, 1>} : memref<1x16x16x128xf32, #tpu.memory_space<vmem>>, vector<1x16x8x128xf32>
    %16 = vector.shape_cast %15 : vector<1x16x8x128xf32> to vector<16x8x128xf32>
    %c1_36 = arith.constant 1 : index
    %c1_37 = arith.constant 1 : index
    %c0_38 = arith.constant 0 : index
    %17 = vector.load %arg7[%c1_36, %c1_37, %c0_38] : memref<18x9x128xf32, #tpu.memory_space<vmem>>, vector<16x8x128xf32>
    tpu.vector_store %arg7[%c1_36, %c1_37, %c0_38], %16 {strides = array<i32>} : memref<18x9x128xf32, #tpu.memory_space<vmem>>, vector<16x8x128xf32>,
    %c0_39 = arith.constant 0 : index
    %c0_40 = arith.constant 0 : index
    %18 = vector.load %arg3[%c0_39, %c0_40] : memref<1x128xf32, #tpu.memory_space<vmem>>, vector<1x128xf32>
    %c0_41 = arith.constant 0 : index
    %c0_42 = arith.constant 0 : index
    %19 = vector.load %arg5[%c0_41, %c0_42] : memref<1x128xf32, #tpu.memory_space<vmem>>, vector<1x128xf32>
    %cst_43 = arith.constant 0.000000e+00 : f32
    %20 = vector.broadcast %cst_43 : f32 to vector<128x128xf32>
    %c0_44 = arith.constant 0 : index
    %c0_45 = arith.constant 0 : index
    %c0_46 = arith.constant 0 : index
    %21 = vector.load %arg7[%c0_44, %c0_45, %c0_46] : memref<18x9x128xf32, #tpu.memory_space<vmem>>, vector<16x8x128xf32>
    %22 = vector.shape_cast %21 : vector<16x8x128xf32> to vector<128x128xf32>
    %23 = arith.truncf %22 : vector<128x128xf32> to vector<128x128xbf16>
    %c0_47 = arith.constant 0 : index
    %c0_48 = arith.constant 0 : index
    %c0_49 = arith.constant 0 : index
    %24 = vector.load %arg8[%c0_47, %c0_48, %c0_49] : memref<18x9x128xf32, #tpu.memory_space<vmem>>, vector<16x8x128xf32>
    %25 = vector.shape_cast %24 : vector<16x8x128xf32> to vector<128x128xf32>
    %26 = arith.truncf %25 : vector<128x128xf32> to vector<128x128xbf16>
    %c0_50 = arith.constant 0 : index
    %c1_51 = arith.constant 1 : index
    %c0_52 = arith.constant 0 : index
    %27 = vector.load %arg7[%c0_50, %c1_51, %c0_52] : memref<18x9x128xf32, #tpu.memory_space<vmem>>, vector<16x8x128xf32>
    %28 = vector.shape_cast %27 : vector<16x8x128xf32> to vector<128x128xf32>
    %29 = arith.truncf %28 : vector<128x128xf32> to vector<128x128xbf16>
    %30 = tpu.concatenate %23, %26, %29 in 1 : vector<128x128xbf16>, vector<128x128xbf16>, vector<128x128xbf16> -> vector<128x384xbf16>
    %c0_53 = arith.constant 0 : index
    %c0_54 = arith.constant 0 : index
    %c0_55 = arith.constant 0 : index
    %31 = vector.load %arg2[%c0_53, %c0_54, %c0_55] : memref<3x384x128xbf16, #tpu.memory_space<vmem>>, vector<1x384x128xbf16>
    %32 = vector.shape_cast %31 : vector<1x384x128xbf16> to vector<384x128xbf16>
    %cst_56 = arith.constant dense<0.000000e+00> : vector<128x128xf32>
    %33 = tpu.matmul %30, %32, %cst_56 {dimension_numbers = #tpu.dot_dimension_numbers<[1], [0], [0], [1], [0, 0, 1, 1], [], []>} : vector<128x384xbf16>, vector<384x128xbf16>, vector<128x128xf32> -> vector<128x128xf32>
    %34 = arith.addf %20, %33 : vector<128x128xf32>
    %c1_57 = arith.constant 1 : index
    %c0_58 = arith.constant 0 : index
    %c0_59 = arith.constant 0 : index
    %35 = vector.load %arg7[%c1_57, %c0_58, %c0_59] : memref<18x9x128xf32, #tpu.memory_space<vmem>>, vector<16x8x128xf32>
    %36 = vector.shape_cast %35 : vector<16x8x128xf32> to vector<128x128xf32>
    %37 = arith.truncf %36 : vector<128x128xf32> to vector<128x128xbf16>
    %c1_60 = arith.constant 1 : index
    %c0_61 = arith.constant 0 : index
    %c0_62 = arith.constant 0 : index
    %38 = vector.load %arg8[%c1_60, %c0_61, %c0_62] : memref<18x9x128xf32, #tpu.memory_space<vmem>>, vector<16x8x128xf32>
    %39 = vector.shape_cast %38 : vector<16x8x128xf32> to vector<128x128xf32>
    %40 = arith.truncf %39 : vector<128x128xf32> to vector<128x128xbf16>
    %c1_63 = arith.constant 1 : index
    %c1_64 = arith.constant 1 : index
    %c0_65 = arith.constant 0 : index
    %41 = vector.load %arg7[%c1_63, %c1_64, %c0_65] : memref<18x9x128xf32, #tpu.memory_space<vmem>>, vector<16x8x128xf32>
    %42 = vector.shape_cast %41 : vector<16x8x128xf32> to vector<128x128xf32>
    %43 = arith.truncf %42 : vector<128x128xf32> to vector<128x128xbf16>
    %44 = tpu.concatenate %37, %40, %43 in 1 : vector<128x128xbf16>, vector<128x128xbf16>, vector<128x128xbf16> -> vector<128x384xbf16>
    %c1_66 = arith.constant 1 : index
    %c0_67 = arith.constant 0 : index
    %c0_68 = arith.constant 0 : index
    %45 = vector.load %arg2[%c1_66, %c0_67, %c0_68] : memref<3x384x128xbf16, #tpu.memory_space<vmem>>, vector<1x384x128xbf16>
    %46 = vector.shape_cast %45 : vector<1x384x128xbf16> to vector<384x128xbf16>
    %cst_69 = arith.constant dense<0.000000e+00> : vector<128x128xf32>
    %47 = tpu.matmul %44, %46, %cst_69 {dimension_numbers = #tpu.dot_dimension_numbers<[1], [0], [0], [1], [0, 0, 1, 1], [], []>} : vector<128x384xbf16>, vector<384x128xbf16>, vector<128x128xf32> -> vector<128x128xf32>
    %48 = arith.addf %34, %47 : vector<128x128xf32>
    %c2 = arith.constant 2 : index
    %c0_70 = arith.constant 0 : index
    %c0_71 = arith.constant 0 : index
    %49 = vector.load %arg7[%c2, %c0_70, %c0_71] : memref<18x9x128xf32, #tpu.memory_space<vmem>>, vector<16x8x128xf32>
    %50 = vector.shape_cast %49 : vector<16x8x128xf32> to vector<128x128xf32>
    %51 = arith.truncf %50 : vector<128x128xf32> to vector<128x128xbf16>
    %c2_72 = arith.constant 2 : index
    %c0_73 = arith.constant 0 : index
    %c0_74 = arith.constant 0 : index
    %52 = vector.load %arg8[%c2_72, %c0_73, %c0_74] : memref<18x9x128xf32, #tpu.memory_space<vmem>>, vector<16x8x128xf32>
    %53 = vector.shape_cast %52 : vector<16x8x128xf32> to vector<128x128xf32>
    %54 = arith.truncf %53 : vector<128x128xf32> to vector<128x128xbf16>
    %c2_75 = arith.constant 2 : index
    %c1_76 = arith.constant 1 : index
    %c0_77 = arith.constant 0 : index
    %55 = vector.load %arg7[%c2_75, %c1_76, %c0_77] : memref<18x9x128xf32, #tpu.memory_space<vmem>>, vector<16x8x128xf32>
    %56 = vector.shape_cast %55 : vector<16x8x128xf32> to vector<128x128xf32>
    %57 = arith.truncf %56 : vector<128x128xf32> to vector<128x128xbf16>
    %58 = tpu.concatenate %51, %54, %57 in 1 : vector<128x128xbf16>, vector<128x128xbf16>, vector<128x128xbf16> -> vector<128x384xbf16>
    %c2_78 = arith.constant 2 : index
    %c0_79 = arith.constant 0 : index
    %c0_80 = arith.constant 0 : index
    %59 = vector.load %arg2[%c2_78, %c0_79, %c0_80] : memref<3x384x128xbf16, #tpu.memory_space<vmem>>, vector<1x384x128xbf16>
    %60 = vector.shape_cast %59 : vector<1x384x128xbf16> to vector<384x128xbf16>
    %cst_81 = arith.constant dense<0.000000e+00> : vector<128x128xf32>
    %61 = tpu.matmul %58, %60, %cst_81 {dimension_numbers = #tpu.dot_dimension_numbers<[1], [0], [0], [1], [0, 0, 1, 1], [], []>} : vector<128x384xbf16>, vector<384x128xbf16>, vector<128x128xf32> -> vector<128x128xf32>
    %62 = arith.addf %48, %61 : vector<128x128xf32>
    %63 = vector.broadcast %18 : vector<1x128xf32> to vector<128x128xf32>
    %64 = arith.addf %62, %63 : vector<128x128xf32>
    %65 = math.tanh %64 : vector<128x128xf32>
    %cst_82 = arith.constant 0.000000e+00 : f32
    %66 = vector.broadcast %cst_82 : f32 to vector<128x128xf32>
    %67 = arith.maximumf %65, %66 : vector<128x128xf32>
    %68 = vector.shape_cast %67 : vector<128x128xf32> to vector<16x8x128xf32>
    %c1_83 = arith.constant 1 : index
    %c0_84 = arith.constant 0 : index
    %c0_85 = arith.constant 0 : index
    %69 = vector.load %arg10[%c1_83, %c0_84, %c0_85] : memref<18x8x128xf32, #tpu.memory_space<vmem>>, vector<16x8x128xf32>
    tpu.vector_store %arg10[%c1_83, %c0_84, %c0_85], %68 {strides = array<i32>} : memref<18x8x128xf32, #tpu.memory_space<vmem>>, vector<16x8x128xf32>,
    %cst_86 = arith.constant 0.000000e+00 : f32
    %70 = vector.broadcast %cst_86 : f32 to vector<128x128xf32>
    %c0_87 = arith.constant 0 : index
    %c0_88 = arith.constant 0 : index
    %c0_89 = arith.constant 0 : index
    %71 = vector.load %arg8[%c0_87, %c0_88, %c0_89] : memref<18x9x128xf32, #tpu.memory_space<vmem>>, vector<16x8x128xf32>
    %72 = vector.shape_cast %71 : vector<16x8x128xf32> to vector<128x128xf32>
    %73 = arith.truncf %72 : vector<128x128xf32> to vector<128x128xbf16>
    %c0_90 = arith.constant 0 : index
    %c1_91 = arith.constant 1 : index
    %c0_92 = arith.constant 0 : index
    %74 = vector.load %arg7[%c0_90, %c1_91, %c0_92] : memref<18x9x128xf32, #tpu.memory_space<vmem>>, vector<16x8x128xf32>
    %75 = vector.shape_cast %74 : vector<16x8x128xf32> to vector<128x128xf32>
    %76 = arith.truncf %75 : vector<128x128xf32> to vector<128x128xbf16>
    %c0_93 = arith.constant 0 : index
    %c1_94 = arith.constant 1 : index
    %c0_95 = arith.constant 0 : index
    %77 = vector.load %arg8[%c0_93, %c1_94, %c0_95] : memref<18x9x128xf32, #tpu.memory_space<vmem>>, vector<16x8x128xf32>
    %78 = vector.shape_cast %77 : vector<16x8x128xf32> to vector<128x128xf32>
    %79 = arith.truncf %78 : vector<128x128xf32> to vector<128x128xbf16>
    %80 = tpu.concatenate %73, %76, %79 in 1 : vector<128x128xbf16>, vector<128x128xbf16>, vector<128x128xbf16> -> vector<128x384xbf16>
    %c0_96 = arith.constant 0 : index
    %c0_97 = arith.constant 0 : index
    %c0_98 = arith.constant 0 : index
    %81 = vector.load %arg2[%c0_96, %c0_97, %c0_98] : memref<3x384x128xbf16, #tpu.memory_space<vmem>>, vector<1x384x128xbf16>
    %82 = vector.shape_cast %81 : vector<1x384x128xbf16> to vector<384x128xbf16>
    %cst_99 = arith.constant dense<0.000000e+00> : vector<128x128xf32>
    %83 = tpu.matmul %80, %82, %cst_99 {dimension_numbers = #tpu.dot_dimension_numbers<[1], [0], [0], [1], [0, 0, 1, 1], [], []>} : vector<128x384xbf16>, vector<384x128xbf16>, vector<128x128xf32> -> vector<128x128xf32>
    %84 = arith.addf %70, %83 : vector<128x128xf32>
    %c1_100 = arith.constant 1 : index
    %c0_101 = arith.constant 0 : index
    %c0_102 = arith.constant 0 : index
    %85 = vector.load %arg8[%c1_100, %c0_101, %c0_102] : memref<18x9x128xf32, #tpu.memory_space<vmem>>, vector<16x8x128xf32>
    %86 = vector.shape_cast %85 : vector<16x8x128xf32> to vector<128x128xf32>
    %87 = arith.truncf %86 : vector<128x128xf32> to vector<128x128xbf16>
    %c1_103 = arith.constant 1 : index
    %c1_104 = arith.constant 1 : index
    %c0_105 = arith.constant 0 : index
    %88 = vector.load %arg7[%c1_103, %c1_104, %c0_105] : memref<18x9x128xf32, #tpu.memory_space<vmem>>, vector<16x8x128xf32>
    %89 = vector.shape_cast %88 : vector<16x8x128xf32> to vector<128x128xf32>
    %90 = arith.truncf %89 : vector<128x128xf32> to vector<128x128xbf16>
    %c1_106 = arith.constant 1 : index
    %c1_107 = arith.constant 1 : index
    %c0_108 = arith.constant 0 : index
    %91 = vector.load %arg8[%c1_106, %c1_107, %c0_108] : memref<18x9x128xf32, #tpu.memory_space<vmem>>, vector<16x8x128xf32>
    %92 = vector.shape_cast %91 : vector<16x8x128xf32> to vector<128x128xf32>
    %93 = arith.truncf %92 : vector<128x128xf32> to vector<128x128xbf16>
    %94 = tpu.concatenate %87, %90, %93 in 1 : vector<128x128xbf16>, vector<128x128xbf16>, vector<128x128xbf16> -> vector<128x384xbf16>
    %c1_109 = arith.constant 1 : index
    %c0_110 = arith.constant 0 : index
    %c0_111 = arith.constant 0 : index
    %95 = vector.load %arg2[%c1_109, %c0_110, %c0_111] : memref<3x384x128xbf16, #tpu.memory_space<vmem>>, vector<1x384x128xbf16>
    %96 = vector.shape_cast %95 : vector<1x384x128xbf16> to vector<384x128xbf16>
    %cst_112 = arith.constant dense<0.000000e+00> : vector<128x128xf32>
    %97 = tpu.matmul %94, %96, %cst_112 {dimension_numbers = #tpu.dot_dimension_numbers<[1], [0], [0], [1], [0, 0, 1, 1], [], []>} : vector<128x384xbf16>, vector<384x128xbf16>, vector<128x128xf32> -> vector<128x128xf32>
    %98 = arith.addf %84, %97 : vector<128x128xf32>
    %c2_113 = arith.constant 2 : index
    %c0_114 = arith.constant 0 : index
    %c0_115 = arith.constant 0 : index
    %99 = vector.load %arg8[%c2_113, %c0_114, %c0_115] : memref<18x9x128xf32, #tpu.memory_space<vmem>>, vector<16x8x128xf32>
    %100 = vector.shape_cast %99 : vector<16x8x128xf32> to vector<128x128xf32>
    %101 = arith.truncf %100 : vector<128x128xf32> to vector<128x128xbf16>
    %c2_116 = arith.constant 2 : index
    %c1_117 = arith.constant 1 : index
    %c0_118 = arith.constant 0 : index
    %102 = vector.load %arg7[%c2_116, %c1_117, %c0_118] : memref<18x9x128xf32, #tpu.memory_space<vmem>>, vector<16x8x128xf32>
    %103 = vector.shape_cast %102 : vector<16x8x128xf32> to vector<128x128xf32>
    %104 = arith.truncf %103 : vector<128x128xf32> to vector<128x128xbf16>
    %c2_119 = arith.constant 2 : index
    %c1_120 = arith.constant 1 : index
    %c0_121 = arith.constant 0 : index
    %105 = vector.load %arg8[%c2_119, %c1_120, %c0_121] : memref<18x9x128xf32, #tpu.memory_space<vmem>>, vector<16x8x128xf32>
    %106 = vector.shape_cast %105 : vector<16x8x128xf32> to vector<128x128xf32>
    %107 = arith.truncf %106 : vector<128x128xf32> to vector<128x128xbf16>
    %108 = tpu.concatenate %101, %104, %107 in 1 : vector<128x128xbf16>, vector<128x128xbf16>, vector<128x128xbf16> -> vector<128x384xbf16>
    %c2_122 = arith.constant 2 : index
    %c0_123 = arith.constant 0 : index
    %c0_124 = arith.constant 0 : index
    %109 = vector.load %arg2[%c2_122, %c0_123, %c0_124] : memref<3x384x128xbf16, #tpu.memory_space<vmem>>, vector<1x384x128xbf16>
    %110 = vector.shape_cast %109 : vector<1x384x128xbf16> to vector<384x128xbf16>
    %cst_125 = arith.constant dense<0.000000e+00> : vector<128x128xf32>
    %111 = tpu.matmul %108, %110, %cst_125 {dimension_numbers = #tpu.dot_dimension_numbers<[1], [0], [0], [1], [0, 0, 1, 1], [], []>} : vector<128x384xbf16>, vector<384x128xbf16>, vector<128x128xf32> -> vector<128x128xf32>
    %112 = arith.addf %98, %111 : vector<128x128xf32>
    %113 = vector.broadcast %18 : vector<1x128xf32> to vector<128x128xf32>
    %114 = arith.addf %112, %113 : vector<128x128xf32>
    %115 = math.tanh %114 : vector<128x128xf32>
    %cst_126 = arith.constant 0.000000e+00 : f32
    %116 = vector.broadcast %cst_126 : f32 to vector<128x128xf32>
    %117 = arith.maximumf %115, %116 : vector<128x128xf32>
    %118 = vector.shape_cast %117 : vector<128x128xf32> to vector<16x8x128xf32>
    %c1_127 = arith.constant 1 : index
    %c1_128 = arith.constant 1 : index
    %c0_129 = arith.constant 0 : index
    %119 = vector.load %arg9[%c1_127, %c1_128, %c0_129] : memref<18x9x128xf32, #tpu.memory_space<vmem>>, vector<16x8x128xf32>
    tpu.vector_store %arg9[%c1_127, %c1_128, %c0_129], %118 {strides = array<i32>} : memref<18x9x128xf32, #tpu.memory_space<vmem>>, vector<16x8x128xf32>,
    %cst_130 = arith.constant 0.000000e+00 : f32
    %120 = vector.broadcast %cst_130 : f32 to vector<64x128xf32>
    %c0_131 = arith.constant 0 : index
    %c0_132 = arith.constant 0 : index
    %c0_133 = arith.constant 0 : index
    %121 = tpu.strided_load %arg9[%c0_131, %c0_132, %c0_133] {strides = array<i32: 2, 1, 1>} : memref<18x9x128xf32, #tpu.memory_space<vmem>>, vector<8x8x128xf32>
    %122 = vector.shape_cast %121 : vector<8x8x128xf32> to vector<64x128xf32>
    %123 = arith.truncf %122 : vector<64x128xf32> to vector<64x128xbf16>
    %c0_134 = arith.constant 0 : index
    %c0_135 = arith.constant 0 : index
    %c0_136 = arith.constant 0 : index
    %124 = tpu.strided_load %arg10[%c0_134, %c0_135, %c0_136] {strides = array<i32: 2, 1, 1>} : memref<18x8x128xf32, #tpu.memory_space<vmem>>, vector<8x8x128xf32>
    %125 = vector.shape_cast %124 : vector<8x8x128xf32> to vector<64x128xf32>
    %126 = arith.truncf %125 : vector<64x128xf32> to vector<64x128xbf16>
    %c0_137 = arith.constant 0 : index
    %c1_138 = arith.constant 1 : index
    %c0_139 = arith.constant 0 : index
    %127 = tpu.strided_load %arg9[%c0_137, %c1_138, %c0_139] {strides = array<i32: 2, 1, 1>} : memref<18x9x128xf32, #tpu.memory_space<vmem>>, vector<8x8x128xf32>
    %128 = vector.shape_cast %127 : vector<8x8x128xf32> to vector<64x128xf32>
    %129 = arith.truncf %128 : vector<64x128xf32> to vector<64x128xbf16>
    %130 = tpu.concatenate %123, %126, %129 in 1 : vector<64x128xbf16>, vector<64x128xbf16>, vector<64x128xbf16> -> vector<64x384xbf16>
    %c0_140 = arith.constant 0 : index
    %c0_141 = arith.constant 0 : index
    %c0_142 = arith.constant 0 : index
    %131 = vector.load %arg4[%c0_140, %c0_141, %c0_142] : memref<3x384x128xbf16, #tpu.memory_space<vmem>>, vector<1x384x128xbf16>
    %132 = vector.shape_cast %131 : vector<1x384x128xbf16> to vector<384x128xbf16>
    %cst_143 = arith.constant dense<0.000000e+00> : vector<64x128xf32>
    %133 = tpu.matmul %130, %132, %cst_143 {dimension_numbers = #tpu.dot_dimension_numbers<[1], [0], [0], [1], [0, 0, 1, 1], [], []>} : vector<64x384xbf16>, vector<384x128xbf16>, vector<64x128xf32> -> vector<64x128xf32>
    %134 = arith.addf %120, %133 : vector<64x128xf32>
    %c1_144 = arith.constant 1 : index
    %c0_145 = arith.constant 0 : index
    %c0_146 = arith.constant 0 : index
    %135 = tpu.strided_load %arg9[%c1_144, %c0_145, %c0_146] {strides = array<i32: 2, 1, 1>} : memref<18x9x128xf32, #tpu.memory_space<vmem>>, vector<8x8x128xf32>
    %136 = vector.shape_cast %135 : vector<8x8x128xf32> to vector<64x128xf32>
    %137 = arith.truncf %136 : vector<64x128xf32> to vector<64x128xbf16>
    %c1_147 = arith.constant 1 : index
    %c0_148 = arith.constant 0 : index
    %c0_149 = arith.constant 0 : index
    %138 = tpu.strided_load %arg10[%c1_147, %c0_148, %c0_149] {strides = array<i32: 2, 1, 1>} : memref<18x8x128xf32, #tpu.memory_space<vmem>>, vector<8x8x128xf32>
    %139 = vector.shape_cast %138 : vector<8x8x128xf32> to vector<64x128xf32>
    %140 = arith.truncf %139 : vector<64x128xf32> to vector<64x128xbf16>
    %c1_150 = arith.constant 1 : index
    %c1_151 = arith.constant 1 : index
    %c0_152 = arith.constant 0 : index
    %141 = tpu.strided_load %arg9[%c1_150, %c1_151, %c0_152] {strides = array<i32: 2, 1, 1>} : memref<18x9x128xf32, #tpu.memory_space<vmem>>, vector<8x8x128xf32>
    %142 = vector.shape_cast %141 : vector<8x8x128xf32> to vector<64x128xf32>
    %143 = arith.truncf %142 : vector<64x128xf32> to vector<64x128xbf16>
    %144 = tpu.concatenate %137, %140, %143 in 1 : vector<64x128xbf16>, vector<64x128xbf16>, vector<64x128xbf16> -> vector<64x384xbf16>
    %c1_153 = arith.constant 1 : index
    %c0_154 = arith.constant 0 : index
    %c0_155 = arith.constant 0 : index
    %145 = vector.load %arg4[%c1_153, %c0_154, %c0_155] : memref<3x384x128xbf16, #tpu.memory_space<vmem>>, vector<1x384x128xbf16>
    %146 = vector.shape_cast %145 : vector<1x384x128xbf16> to vector<384x128xbf16>
    %cst_156 = arith.constant dense<0.000000e+00> : vector<64x128xf32>
    %147 = tpu.matmul %144, %146, %cst_156 {dimension_numbers = #tpu.dot_dimension_numbers<[1], [0], [0], [1], [0, 0, 1, 1], [], []>} : vector<64x384xbf16>, vector<384x128xbf16>, vector<64x128xf32> -> vector<64x128xf32>
    %148 = arith.addf %134, %147 : vector<64x128xf32>
    %c2_157 = arith.constant 2 : index
    %c0_158 = arith.constant 0 : index
    %c0_159 = arith.constant 0 : index
    %149 = tpu.strided_load %arg9[%c2_157, %c0_158, %c0_159] {strides = array<i32: 2, 1, 1>} : memref<18x9x128xf32, #tpu.memory_space<vmem>>, vector<8x8x128xf32>
    %150 = vector.shape_cast %149 : vector<8x8x128xf32> to vector<64x128xf32>
    %151 = arith.truncf %150 : vector<64x128xf32> to vector<64x128xbf16>
    %c2_160 = arith.constant 2 : index
    %c0_161 = arith.constant 0 : index
    %c0_162 = arith.constant 0 : index
    %152 = tpu.strided_load %arg10[%c2_160, %c0_161, %c0_162] {strides = array<i32: 2, 1, 1>} : memref<18x8x128xf32, #tpu.memory_space<vmem>>, vector<8x8x128xf32>
    %153 = vector.shape_cast %152 : vector<8x8x128xf32> to vector<64x128xf32>
    %154 = arith.truncf %153 : vector<64x128xf32> to vector<64x128xbf16>
    %c2_163 = arith.constant 2 : index
    %c1_164 = arith.constant 1 : index
    %c0_165 = arith.constant 0 : index
    %155 = tpu.strided_load %arg9[%c2_163, %c1_164, %c0_165] {strides = array<i32: 2, 1, 1>} : memref<18x9x128xf32, #tpu.memory_space<vmem>>, vector<8x8x128xf32>
    %156 = vector.shape_cast %155 : vector<8x8x128xf32> to vector<64x128xf32>
    %157 = arith.truncf %156 : vector<64x128xf32> to vector<64x128xbf16>
    %158 = tpu.concatenate %151, %154, %157 in 1 : vector<64x128xbf16>, vector<64x128xbf16>, vector<64x128xbf16> -> vector<64x384xbf16>
    %c2_166 = arith.constant 2 : index
    %c0_167 = arith.constant 0 : index
    %c0_168 = arith.constant 0 : index
    %159 = vector.load %arg4[%c2_166, %c0_167, %c0_168] : memref<3x384x128xbf16, #tpu.memory_space<vmem>>, vector<1x384x128xbf16>
    %160 = vector.shape_cast %159 : vector<1x384x128xbf16> to vector<384x128xbf16>
    %cst_169 = arith.constant dense<0.000000e+00> : vector<64x128xf32>
    %161 = tpu.matmul %158, %160, %cst_169 {dimension_numbers = #tpu.dot_dimension_numbers<[1], [0], [0], [1], [0, 0, 1, 1], [], []>} : vector<64x384xbf16>, vector<384x128xbf16>, vector<64x128xf32> -> vector<64x128xf32>
    %162 = arith.addf %148, %161 : vector<64x128xf32>
    %163 = vector.broadcast %19 : vector<1x128xf32> to vector<64x128xf32>
    %164 = arith.addf %162, %163 : vector<64x128xf32>
    %165 = arith.negf %164 : vector<64x128xf32>
    %166 = math.exp %165 : vector<64x128xf32>
    %cst_170 = arith.constant 1.000000e+00 : f32
    %167 = vector.broadcast %cst_170 : f32 to vector<64x128xf32>
    %168 = arith.addf %167, %166 : vector<64x128xf32>
    %169 = arith.divf %167, %168 : vector<64x128xf32>
    %170 = vector.shape_cast %169 : vector<64x128xf32> to vector<8x8x128xf32>
    %c0_171 = arith.constant 0 : index
    %c0_172 = arith.constant 0 : index
    %c0_173 = arith.constant 0 : index
    %c0_174 = arith.constant 0 : index
    %171 = vector.load %arg6[%c0_171, %c0_172, %c0_173, %c0_174] : memref<1x8x8x128xf32, #tpu.memory_space<vmem>>, vector<1x8x8x128xf32>
    %172 = vector.shape_cast %171 : vector<1x8x8x128xf32> to vector<8x8x128xf32>
    %173 = vector.shape_cast %170 : vector<8x8x128xf32> to vector<1x8x8x128xf32>
    tpu.vector_store %arg6[%c0_171, %c0_172, %c0_173, %c0_174], %173 {strides = array<i32>} : memref<1x8x8x128xf32, #tpu.memory_space<vmem>>, vector<1x8x8x128xf32>,
    return
  }
  func.func @transform_0(%arg0: i32) -> (i32, i32, i32, i32) {
    %c0_i32 = arith.constant 0 : i32
    %c0_i32_0 = arith.constant 0 : i32
    %c0_i32_1 = arith.constant 0 : i32
    %c0_i32_2 = arith.constant 0 : i32
    return %arg0, %c0_i32, %c0_i32_0, %c0_i32_1 : i32, i32, i32, i32
  }
  func.func @transform_1(%arg0: i32) -> (i32, i32, i32) {
    %c0_i32 = arith.constant 0 : i32
    %c0_i32_0 = arith.constant 0 : i32
    %c0_i32_1 = arith.constant 0 : i32
    %c0_i32_2 = arith.constant 0 : i32
    return %c0_i32, %c0_i32_0, %c0_i32_1 : i32, i32, i32
  }
  func.func @transform_2(%arg0: i32) -> (i32, i32) {
    %c0_i32 = arith.constant 0 : i32
    %c0_i32_0 = arith.constant 0 : i32
    %c0_i32_1 = arith.constant 0 : i32
    return %c0_i32, %c0_i32_0 : i32, i32
  }
  func.func @transform_3(%arg0: i32) -> (i32, i32, i32) {
    %c0_i32 = arith.constant 0 : i32
    %c0_i32_0 = arith.constant 0 : i32
    %c0_i32_1 = arith.constant 0 : i32
    %c0_i32_2 = arith.constant 0 : i32
    return %c0_i32, %c0_i32_0, %c0_i32_1 : i32, i32, i32
  }
  func.func @transform_4(%arg0: i32) -> (i32, i32) {
    %c0_i32 = arith.constant 0 : i32
    %c0_i32_0 = arith.constant 0 : i32
    %c0_i32_1 = arith.constant 0 : i32
    return %c0_i32, %c0_i32_0 : i32, i32
  }
  func.func @transform_5(%arg0: i32) -> (i32, i32, i32, i32) {
    %c0_i32 = arith.constant 0 : i32
    %c0_i32_0 = arith.constant 0 : i32
    %c0_i32_1 = arith.constant 0 : i32
    %c0_i32_2 = arith.constant 0 : i32
    return %arg0, %c0_i32, %c0_i32_0, %c0_i32_1 : i32, i32, i32, i32
  }
}

</mosaic_0001>

<llo_original>
// kernel: model_tanh_forward.1
$region0: #{model_tanh_forward.1}
  #allocation0 [shape = 'u32[]', space=smem, size = 0x4, offset = 0x4, fixed_abs, tag = 'smem constant byte address 0x4 - core index']
  #allocation1 [shape = 'u32[144,128]{1,0:T(1,128)}', space=vmem, size = 0x12000, scoped, tag = 'internal scratch']
  #allocation2 [shape = 'f32[18,9,128]{2,1,0:T(8,128)}', space=vmem, size = 0x24000, scoped, tag = 'scratch operand']
  #allocation3 [shape = 'f32[18,9,128]{2,1,0:T(8,128)}', space=vmem, size = 0x24000, scoped, tag = 'scratch operand']
  #allocation4 [shape = 'f32[18,9,128]{2,1,0:T(8,128)}', space=vmem, size = 0x24000, scoped, tag = 'scratch operand']
  #allocation5 [shape = 'f32[18,8,128]{2,1,0:T(8,128)}', space=vmem, size = 0x12000, scoped, tag = 'scratch operand']
  %s0 = inlined_call_operand.vmem [shape: f32[2,16,16,128], index: 0, kind: input, shape index: {}]
  %s1 = inlined_call_operand.vmem [shape: bf16[3,384,128], index: 1, kind: input, shape index: {}]
  %s2 = inlined_call_operand.vmem [shape: f32[1,128], index: 2, kind: input, shape index: {}]
  %s3 = inlined_call_operand.vmem [shape: bf16[3,384,128], index: 3, kind: input, shape index: {}]
  %s4 = inlined_call_operand.vmem [shape: f32[1,128], index: 4, kind: input, shape index: {}]
  %s5 = inlined_call_operand.hbm [shape: f32[2,8,8,128], index: 5, kind: output, shape index: {}]
  %s6 = sld [smem:[#allocation0]]
  $region53: #{model_tanh_forward.1} parent=0
    _
  %s8 = ssub.s32 1, %s6
  %s9 = scalar_select 0, %s8, %s6
  $region1: #{model_tanh_forward.1} parent=0
    #allocation6 [shape = 'u8[65536]{0}', space=vmem, size = 0x10000, scoped, tag = 'output window, operand 0']
    #allocation7 [shape = 's32[2]{0}', space=sflag, size = 0x8, scoped, tag = 'scoped memory for model_tanh_forward.1']
    %10 = vsyncpa [#allocation7], 0
    %s11 = scalar_lea.sflag [#allocation7], 1
    %12 = vsyncpa %s11, 0
    loop: start=0, step=1, limit=4
    $region2: #{model_tanh_forward.1} parent=1 // loop_pre_header
      _
    $region3: #{model_tanh_forward.1} parent=1 // loop_header
      %s14 = sphi 0, %s18
      %p15 = scmp.ge.s32.totalorder %s14, 4
      %s24 = sphi 0, %s26
      %s27 = sphi 0, %s24
      %s28 = sphi 0, %s27
      %s44 = sphi 0, %s28
      %s48 = sphi 0, %s48
      %s50 = sphi 0, %s48
      %s51 = sphi 0, %s50
      %s65 = sphi 0, %s51
      %s69 = sphi 0, %s69
      %s71 = sphi 0, %s69
      %s72 = sphi 0, %s71
      %s86 = sphi 0, %s72
      %s90 = sphi 0, %s90
      %s92 = sphi 0, %s90
      %s93 = sphi 0, %s92
      %s107 = sphi 0, %s93
      %s111 = sphi 0, %s111
      %s113 = sphi 0, %s111
      %s114 = sphi 0, %s113
      %s128 = sphi 0, %s114
      %s134 = sphi 0, %s136
      %s137 = sphi 0, %s134
      %s138 = sphi 0, %s137
      %s154 = sphi 0, %s138
    $region4: #{model_tanh_forward.1} parent=1 // loop_header_branch
      %17 = sbr.rel (%p15) target = $region8
    $region5: #{model_tanh_forward.1} parent=1 // loop_body
      %s19 = ssub.s32 %s14, 1
      %s20 = ssub.s32 %s14, 2
      %s21 = sadd.s32 %s14, 1
      %s22 = ssub.s32 %s14, %s21
      %p23 = scmp.eq.s32.totalorder %s22, 0
      %s25 = sadd.s32 %s24, 1
      %s26 = scalar_select %p23, %s24, %s25
      %p29 = pneg %p23
      %p30 = scmp.eq.s32.totalorder %s14, 1
      %p31 = por %p29, %p30
      %p32 = scmp.ne.s32.totalorder %s24, %s27
      %p33 = scmp.eq.s32.totalorder %s14, 0
      %p34 = por %p32, %p33
      %p35 = scmp.ne.s32.totalorder %s24, %s27
      %p36 = scmp.eq.s32.totalorder %s19, 1
      %p37 = por %p35, %p36
      %p38 = scmp.ne.s32.totalorder %s27, %s28
      %p39 = scmp.eq.s32.totalorder %s19, 0
      %p40 = por %p38, %p39
      %p41 = scmp.ne.s32.totalorder %s27, %s28
      %p42 = scmp.eq.s32.totalorder %s20, 1
      %p43 = por %p41, %p42
      %p45 = scmp.ne.s32.totalorder %s28, %s44
      %p46 = scmp.eq.s32.totalorder %s20, 0
      %p47 = por %p45, %p46
      %s49 = sadd.s32 %s48, 1
      %p52 = scmp.eq.s32.totalorder %s14, 1
      %p53 = scmp.ne.s32.totalorder %s48, %s50
      %p54 = scmp.eq.s32.totalorder %s14, 0
      %p55 = por %p53, %p54
      %p56 = scmp.ne.s32.totalorder %s48, %s50
      %p57 = scmp.eq.s32.totalorder %s19, 1
      %p58 = por %p56, %p57
      %p59 = scmp.ne.s32.totalorder %s50, %s51
      %p60 = scmp.eq.s32.totalorder %s19, 0
      %p61 = por %p59, %p60
      %p62 = scmp.ne.s32.totalorder %s50, %s51
      %p63 = scmp.eq.s32.totalorder %s20, 1
      %p64 = por %p62, %p63
      %p66 = scmp.ne.s32.totalorder %s51, %s65
      %p67 = scmp.eq.s32.totalorder %s20, 0
      %p68 = por %p66, %p67
      %s70 = sadd.s32 %s69, 1
      %p73 = scmp.eq.s32.totalorder %s14, 1
      %p74 = scmp.ne.s32.totalorder %s69, %s71
      %p75 = scmp.eq.s32.totalorder %s14, 0
      %p76 = por %p74, %p75
      %p77 = scmp.ne.s32.totalorder %s69, %s71
      %p78 = scmp.eq.s32.totalorder %s19, 1
      %p79 = por %p77, %p78
      %p80 = scmp.ne.s32.totalorder %s71, %s72
      %p81 = scmp.eq.s32.totalorder %s19, 0
      %p82 = por %p80, %p81
      %p83 = scmp.ne.s32.totalorder %s71, %s72
      %p84 = scmp.eq.s32.totalorder %s20, 1
      %p85 = por %p83, %p84
      %p87 = scmp.ne.s32.totalorder %s72, %s86
      %p88 = scmp.eq.s32.totalorder %s20, 0
      %p89 = por %p87, %p88
      %s91 = sadd.s32 %s90, 1
      %p94 = scmp.eq.s32.totalorder %s14, 1
      %p95 = scmp.ne.s32.totalorder %s90, %s92
      %p96 = scmp.eq.s32.totalorder %s14, 0
      %p97 = por %p95, %p96
      %p98 = scmp.ne.s32.totalorder %s90, %s92
      %p99 = scmp.eq.s32.totalorder %s19, 1
      %p100 = por %p98, %p99
      %p101 = scmp.ne.s32.totalorder %s92, %s93
      %p102 = scmp.eq.s32.totalorder %s19, 0
      %p103 = por %p101, %p102
      %p104 = scmp.ne.s32.totalorder %s92, %s93
      %p105 = scmp.eq.s32.totalorder %s20, 1
      %p106 = por %p104, %p105
      %p108 = scmp.ne.s32.totalorder %s93, %s107
      %p109 = scmp.eq.s32.totalorder %s20, 0
      %p110 = por %p108, %p109
      %s112 = sadd.s32 %s111, 1
      %p115 = scmp.eq.s32.totalorder %s14, 1
      %p116 = scmp.ne.s32.totalorder %s111, %s113
      %p117 = scmp.eq.s32.totalorder %s14, 0
      %p118 = por %p116, %p117
      %p119 = scmp.ne.s32.totalorder %s111, %s113
      %p120 = scmp.eq.s32.totalorder %s19, 1
      %p121 = por %p119, %p120
      %p122 = scmp.ne.s32.totalorder %s113, %s114
      %p123 = scmp.eq.s32.totalorder %s19, 0
      %p124 = por %p122, %p123
      %p125 = scmp.ne.s32.totalorder %s113, %s114
      %p126 = scmp.eq.s32.totalorder %s20, 1
      %p127 = por %p125, %p126
      %p129 = scmp.ne.s32.totalorder %s114, %s128
      %p130 = scmp.eq.s32.totalorder %s20, 0
      %p131 = por %p129, %p130
      %s132 = ssub.s32 %s14, %s21
      %p133 = scmp.eq.s32.totalorder %s132, 0
      %s135 = sadd.s32 %s134, 1
      %s136 = scalar_select %p133, %s134, %s135
      %p139 = pneg %p133
      %p140 = scmp.eq.s32.totalorder %s14, 1
      %p141 = por %p139, %p140
      %p142 = scmp.ne.s32.totalorder %s134, %s137
      %p143 = scmp.eq.s32.totalorder %s14, 0
      %p144 = por %p142, %p143
      %p145 = scmp.ne.s32.totalorder %s134, %s137
      %p146 = scmp.eq.s32.totalorder %s19, 1
      %p147 = por %p145, %p146
      %p148 = scmp.ne.s32.totalorder %s137, %s138
      %p149 = scmp.eq.s32.totalorder %s19, 0
      %p150 = por %p148, %p149
      %p151 = scmp.ne.s32.totalorder %s137, %s138
      %p152 = scmp.eq.s32.totalorder %s20, 1
      %p153 = por %p151, %p152
      %p155 = scmp.ne.s32.totalorder %s138, %s154
      %p156 = scmp.eq.s32.totalorder %s20, 0
      %p157 = por %p155, %p156
      %p158 = scmp.le.s32.totalorder 1, %s14
      %p159 = scmp.lt.s32.totalorder %s14, 3
      %p160 = pnand %p158, %p159
      %p161 = pneg %p160
      // Predicated region
      $region9: #{model_tanh_forward.1} parent=5 // pred_check
        _
      $region10: #{model_tanh_forward.1} parent=5 // pred_check_branch
        %163 = sbr.rel (%p160) target = $region12
      $region11: #{model_tanh_forward.1} parent=5 // pred_region
        %s164 = ssub.s32 %s14, 1
        // Predicated region
        $region13: #{model_tanh_forward.1} parent=11 // pred_check
          %p165 = pneg %p61
        $region14: #{model_tanh_forward.1} parent=11 // pred_check_branch
          %167 = sbr.rel (%p165) target = $region16
        $region15: #{model_tanh_forward.1} parent=11 // pred_region
          _
        $region16: #{model_tanh_forward.1} parent=11 // pred_fallthru
          _
        // Predicated region
        $region17: #{model_tanh_forward.1} parent=11 // pred_check
          %p168 = pneg %p82
        $region18: #{model_tanh_forward.1} parent=11 // pred_check_branch
          %170 = sbr.rel (%p168) target = $region20
        $region19: #{model_tanh_forward.1} parent=11 // pred_region
          _
        $region20: #{model_tanh_forward.1} parent=11 // pred_fallthru
          _
        // Predicated region
        $region21: #{model_tanh_forward.1} parent=11 // pred_check
          %p171 = pneg %p103
        $region22: #{model_tanh_forward.1} parent=11 // pred_check_branch
          %173 = sbr.rel (%p171) target = $region24
        $region23: #{model_tanh_forward.1} parent=11 // pred_region
          _
        $region24: #{model_tanh_forward.1} parent=11 // pred_fallthru
          _
        // Predicated region
        $region25: #{model_tanh_forward.1} parent=11 // pred_check
          %p174 = pneg %p124
        $region26: #{model_tanh_forward.1} parent=11 // pred_check_branch
          %176 = sbr.rel (%p174) target = $region28
        $region27: #{model_tanh_forward.1} parent=11 // pred_region
          _
        $region28: #{model_tanh_forward.1} parent=11 // pred_fallthru
          _
      $region12: #{model_tanh_forward.1} parent=5 // pred_fallthru
        _
      %p177 = scmp.lt.s32.totalorder %s14, 2
      // Predicated region
      $region29: #{model_tanh_forward.1} parent=5 // pred_check
        %p178 = pneg %p177
      $region30: #{model_tanh_forward.1} parent=5 // pred_check_branch
        %180 = sbr.rel (%p178) target = $region32
      $region31: #{model_tanh_forward.1} parent=5 // pred_region
        // Predicated region
        $region33: #{model_tanh_forward.1} parent=31 // pred_check
          %p181 = pneg %p34
        $region34: #{model_tanh_forward.1} parent=31 // pred_check_branch
          %183 = sbr.rel (%p181) target = $region36
        $region35: #{model_tanh_forward.1} parent=31 // pred_region
          %p184 = scmp.lt.s32.totalorder %s14, 1
          %s185 = scalar_select %p184, %s14, 1
          %s186 = smul.addr %s185, 32
          %s187 = smul.addr %s186, 8
          %s188 = scalar_lea.vmem %s0, %s187
        $region36: #{model_tanh_forward.1} parent=31 // pred_fallthru
          _
      $region32: #{model_tanh_forward.1} parent=5 // pred_fallthru
        _
      %p189 = scmp.le.s32.totalorder 1, %s14
      %p190 = scmp.lt.s32.totalorder %s14, 3
      %p191 = pnand %p189, %p190
      %p192 = pneg %p191
      // Predicated region
      $region37: #{model_tanh_forward.1} parent=5 // pred_check
        _
      $region38: #{model_tanh_forward.1} parent=5 // pred_check_branch
        %194 = sbr.rel (%p191) target = $region40
      $region39: #{model_tanh_forward.1} parent=5 // pred_region
        %s195 = ssub.s32 %s14, 1
        %p196 = scmp.lt.s32.totalorder %s19, 1
        %s197 = scalar_select %p196, %s19, 1
        %s198 = smul.addr %s197, 32
        %s199 = smul.addr %s198, 8
        %s200 = scalar_lea.vmem %s0, %s199
        %p201 = pneg %p40
        %p202 = pneg %p37
        %p203 = pneg %p61
        %p204 = pneg %p58
        %p205 = pneg %p82
        %p206 = pneg %p79
        %p207 = pneg %p103
        %p208 = pneg %p100
        %p209 = pneg %p124
        %p210 = pneg %p121
        %p211 = pneg %p150
        %p212 = pneg %p147
        %s213 = sand.u32 %s137, 1
        %s214 = scalar_lea.sflag [#allocation7], %s213
        %s215 = sand.u32 %s137, 1
        %s216 = smul.addr %s215, 64
        %s217 = scalar_lea.vmem [#allocation6], %s216
        %p218 = scmp.lt.s32.totalorder %s19, 1
        %s219 = scalar_select %p218, %s19, 1
        %s220 = smul.addr %s219, 32
        %s221 = smul.addr %s220, 8
        %s222 = scalar_lea.vmem %s0, %s221
        %224 = vst [vmem:[#allocation2] sm:$0xff] 0.0
        %225 = vst [vmem:[#allocation2 + $0x8] sm:$0x1] 0.0
        %s226 = scalar_lea.vmem [#allocation2], 272
        %227 = vst [vmem:[%s226] sm:$0xff] 0.0
        %228 = vst [vmem:[%s226 + $0x8] sm:$0x1] 0.0
        %229 = vst [vmem:[#allocation2] sm:$0x1] 0.0
        %230 = vst [vmem:[#allocation2 + $0x10] sm:$0x1] 0.0
        %231 = vst [vmem:[#allocation2 + $0x20] sm:$0x1] 0.0
        %232 = vst [vmem:[#allocation2 + $0x30] sm:$0x1] 0.0
        %233 = vst [vmem:[#allocation2 + $0x40] sm:$0x1] 0.0
        %234 = vst [vmem:[#allocation2 + $0x50] sm:$0x1] 0.0
        %235 = vst [vmem:[#allocation2 + $0x60] sm:$0x1] 0.0
        %236 = vst [vmem:[#allocation2 + $0x70] sm:$0x1] 0.0
        %237 = vst [vmem:[#allocation2 + $0x80] sm:$0x1] 0.0
        %238 = vst [vmem:[#allocation2 + $0x90] sm:$0x1] 0.0
        %239 = vst [vmem:[#allocation2 + $0xa0] sm:$0x1] 0.0
        %240 = vst [vmem:[#allocation2 + $0xb0] sm:$0x1] 0.0
        %241 = vst [vmem:[#allocation2 + $0xc0] sm:$0x1] 0.0
        %242 = vst [vmem:[#allocation2 + $0xd0] sm:$0x1] 0.0
        %243 = vst [vmem:[#allocation2 + $0xe0] sm:$0x1] 0.0
        %244 = vst [vmem:[#allocation2 + $0xf0] sm:$0x1] 0.0
        %245 = vst [vmem:[#allocation2 + $0x100] sm:$0x1] 0.0
        %246 = vst [vmem:[#allocation2 + $0x110] sm:$0x1] 0.0
        %247 = vst [vmem:[#allocation3] sm:$0xff] 0.0
        %248 = vst [vmem:[#allocation3 + $0x8] sm:$0x1] 0.0
        %s249 = scalar_lea.vmem [#allocation3], 272
        %250 = vst [vmem:[%s249] sm:$0xff] 0.0
        %251 = vst [vmem:[%s249 + $0x8] sm:$0x1] 0.0
        %252 = vst [vmem:[#allocation3 + $0x8] sm:$0x1] 0.0
        %253 = vst [vmem:[#allocation3 + $0x18] sm:$0x1] 0.0
        %254 = vst [vmem:[#allocation3 + $0x28] sm:$0x1] 0.0
        %255 = vst [vmem:[#allocation3 + $0x38] sm:$0x1] 0.0
        %256 = vst [vmem:[#allocation3 + $0x48] sm:$0x1] 0.0
        %257 = vst [vmem:[#allocation3 + $0x58] sm:$0x1] 0.0
        %258 = vst [vmem:[#allocation3 + $0x68] sm:$0x1] 0.0
        %259 = vst [vmem:[#allocation3 + $0x78] sm:$0x1] 0.0
        %260 = vst [vmem:[#allocation3 + $0x88] sm:$0x1] 0.0
        %261 = vst [vmem:[#allocation3 + $0x98] sm:$0x1] 0.0
        %262 = vst [vmem:[#allocation3 + $0xa8] sm:$0x1] 0.0
        %263 = vst [vmem:[#allocation3 + $0xb8] sm:$0x1] 0.0
        %264 = vst [vmem:[#allocation3 + $0xc8] sm:$0x1] 0.0
        %265 = vst [vmem:[#allocation3 + $0xd8] sm:$0x1] 0.0
        %266 = vst [vmem:[#allocation3 + $0xe8] sm:$0x1] 0.0
        %267 = vst [vmem:[#allocation3 + $0xf8] sm:$0x1] 0.0
        %268 = vst [vmem:[#allocation3 + $0x108] sm:$0x1] 0.0
        %269 = vst [vmem:[#allocation3 + $0x118] sm:$0x1] 0.0
        %270 = vst [vmem:[#allocation4] sm:$0xff] 0.0
        %271 = vst [vmem:[#allocation4 + $0x8] sm:$0x1] 0.0
        %272 = vst [vmem:[#allocation4] sm:$0x1] 0.0
        %273 = vst [vmem:[#allocation4 + $0x10] sm:$0x1] 0.0
        %274 = vst [vmem:[#allocation4 + $0x20] sm:$0x1] 0.0
        %275 = vst [vmem:[#allocation4 + $0x30] sm:$0x1] 0.0
        %276 = vst [vmem:[#allocation4 + $0x40] sm:$0x1] 0.0
        %277 = vst [vmem:[#allocation4 + $0x50] sm:$0x1] 0.0
        %278 = vst [vmem:[#allocation4 + $0x60] sm:$0x1] 0.0
        %279 = vst [vmem:[#allocation4 + $0x70] sm:$0x1] 0.0
        %280 = vst [vmem:[#allocation4 + $0x80] sm:$0x1] 0.0
        %281 = vst [vmem:[#allocation4 + $0x90] sm:$0x1] 0.0
        %282 = vst [vmem:[#allocation4 + $0xa0] sm:$0x1] 0.0
        %283 = vst [vmem:[#allocation4 + $0xb0] sm:$0x1] 0.0
        %284 = vst [vmem:[#allocation4 + $0xc0] sm:$0x1] 0.0
        %285 = vst [vmem:[#allocation4 + $0xd0] sm:$0x1] 0.0
        %286 = vst [vmem:[#allocation4 + $0xe0] sm:$0x1] 0.0
        %287 = vst [vmem:[#allocation4 + $0xf0] sm:$0x1] 0.0
        %288 = vst [vmem:[#allocation4 + $0x100] sm:$0x1] 0.0
        %289 = vst [vmem:[#allocation4 + $0x110] sm:$0x1] 0.0
        %290 = vst [vmem:[#allocation5] sm:$0xff] 0.0
        %v291 = vld [vmem:[%s222] ss:$2 sm:$0xff]
        %s292 = scalar_lea.vmem %s222, 16
        %v293 = vld [vmem:[%s292] ss:$2 sm:$0xff]
        %s294 = scalar_lea.vmem %s222, 32
        %v295 = vld [vmem:[%s294] ss:$2 sm:$0xff]
        %s296 = scalar_lea.vmem %s222, 48
        %v297 = vld [vmem:[%s296] ss:$2 sm:$0xff]
        %s298 = scalar_lea.vmem %s222, 64
        %v299 = vld [vmem:[%s298] ss:$2 sm:$0xff]
        %s300 = scalar_lea.vmem %s222, 80
        %v301 = vld [vmem:[%s300] ss:$2 sm:$0xff]
        %s302 = scalar_lea.vmem %s222, 96
        %v303 = vld [vmem:[%s302] ss:$2 sm:$0xff]
        %s304 = scalar_lea.vmem %s222, 112
        %v305 = vld [vmem:[%s304] ss:$2 sm:$0xff]
        %s306 = scalar_lea.vmem %s222, 128
        %v307 = vld [vmem:[%s306] ss:$2 sm:$0xff]
        %s308 = scalar_lea.vmem %s222, 144
        %v309 = vld [vmem:[%s308] ss:$2 sm:$0xff]
        %s310 = scalar_lea.vmem %s222, 160
        %v311 = vld [vmem:[%s310] ss:$2 sm:$0xff]
        %s312 = scalar_lea.vmem %s222, 176
        %v313 = vld [vmem:[%s312] ss:$2 sm:$0xff]
        %s314 = scalar_lea.vmem %s222, 192
        %v315 = vld [vmem:[%s314] ss:$2 sm:$0xff]
        %s316 = scalar_lea.vmem %s222, 208
        %v317 = vld [vmem:[%s316] ss:$2 sm:$0xff]
        %s318 = scalar_lea.vmem %s222, 224
        %v319 = vld [vmem:[%s318] ss:$2 sm:$0xff]
        %s320 = scalar_lea.vmem %s222, 240
        %v321 = vld [vmem:[%s320] ss:$2 sm:$0xff]
        %s322 = scalar_lea.vmem [#allocation3], 16
        %323 = vst [vmem:[%s322] sm:$0xff] %v291
        %324 = vst [vmem:[%s322 + $0x10] sm:$0xff] %v293
        %325 = vst [vmem:[%s322 + $0x20] sm:$0xff] %v295
        %326 = vst [vmem:[%s322 + $0x30] sm:$0xff] %v297
        %327 = vst [vmem:[%s322 + $0x40] sm:$0xff] %v299
        %328 = vst [vmem:[%s322 + $0x50] sm:$0xff] %v301
        %329 = vst [vmem:[%s322 + $0x60] sm:$0xff] %v303
        %330 = vst [vmem:[%s322 + $0x70] sm:$0xff] %v305
        %331 = vst [vmem:[%s322 + $0x80] sm:$0xff] %v307
        %332 = vst [vmem:[%s322 + $0x90] sm:$0xff] %v309
        %333 = vst [vmem:[%s322 + $0xa0] sm:$0xff] %v311
        %334 = vst [vmem:[%s322 + $0xb0] sm:$0xff] %v313
        %335 = vst [vmem:[%s322 + $0xc0] sm:$0xff] %v315
        %336 = vst [vmem:[%s322 + $0xd0] sm:$0xff] %v317
        %337 = vst [vmem:[%s322 + $0xe0] sm:$0xff] %v319
        %338 = vst [vmem:[%s322 + $0xf0] sm:$0xff] %v321
        %s339 = scalar_lea.vmem %s222, 1
        %v340 = vld [vmem:[%s339] ss:$2 sm:$0xff]
        %s341 = scalar_lea.vmem %s222, 17
        %v342 = vld [vmem:[%s341] ss:$2 sm:$0xff]
        %s343 = scalar_lea.vmem %s222, 33
        %v344 = vld [vmem:[%s343] ss:$2 sm:$0xff]
        %s345 = scalar_lea.vmem %s222, 49
        %v346 = vld [vmem:[%s345] ss:$2 sm:$0xff]
        %s347 = scalar_lea.vmem %s222, 65
        %v348 = vld [vmem:[%s347] ss:$2 sm:$0xff]
        %s349 = scalar_lea.vmem %s222, 81
        %v350 = vld [vmem:[%s349] ss:$2 sm:$0xff]
        %s351 = scalar_lea.vmem %s222, 97
        %v352 = vld [vmem:[%s351] ss:$2 sm:$0xff]
        %s353 = scalar_lea.vmem %s222, 113
        %v354 = vld [vmem:[%s353] ss:$2 sm:$0xff]
        %s355 = scalar_lea.vmem %s222, 129
        %v356 = vld [vmem:[%s355] ss:$2 sm:$0xff]
        %s357 = scalar_lea.vmem %s222, 145
        %v358 = vld [vmem:[%s357] ss:$2 sm:$0xff]
        %s359 = scalar_lea.vmem %s222, 161
        %v360 = vld [vmem:[%s359] ss:$2 sm:$0xff]
        %s361 = scalar_lea.vmem %s222, 177
        %v362 = vld [vmem:[%s361] ss:$2 sm:$0xff]
        %s363 = scalar_lea.vmem %s222, 193
        %v364 = vld [vmem:[%s363] ss:$2 sm:$0xff]
        %s365 = scalar_lea.vmem %s222, 209
        %v366 = vld [vmem:[%s365] ss:$2 sm:$0xff]
        %s367 = scalar_lea.vmem %s222, 225
        %v368 = vld [vmem:[%s367] ss:$2 sm:$0xff]
        %s369 = scalar_lea.vmem %s222, 241
        %v370 = vld [vmem:[%s369] ss:$2 sm:$0xff]
        %s371 = scalar_lea.vmem [#allocation2], 16
        %372 = vst [vmem:[%s371 + $0x1] sm:$0xff] %v340
        %373 = vst [vmem:[%s371 + $0x11] sm:$0xff] %v342
        %374 = vst [vmem:[%s371 + $0x21] sm:$0xff] %v344
        %375 = vst [vmem:[%s371 + $0x31] sm:$0xff] %v346
        %376 = vst [vmem:[%s371 + $0x41] sm:$0xff] %v348
        %377 = vst [vmem:[%s371 + $0x51] sm:$0xff] %v350
        %378 = vst [vmem:[%s371 + $0x61] sm:$0xff] %v352
        %379 = vst [vmem:[%s371 + $0x71] sm:$0xff] %v354
        %380 = vst [vmem:[%s371 + $0x81] sm:$0xff] %v356
        %381 = vst [vmem:[%s371 + $0x91] sm:$0xff] %v358
        %382 = vst [vmem:[%s371 + $0xa1] sm:$0xff] %v360
        %383 = vst [vmem:[%s371 + $0xb1] sm:$0xff] %v362
        %384 = vst [vmem:[%s371 + $0xc1] sm:$0xff] %v364
        %385 = vst [vmem:[%s371 + $0xd1] sm:$0xff] %v366
        %386 = vst [vmem:[%s371 + $0xe1] sm:$0xff] %v368
        %387 = vst [vmem:[%s371 + $0xf1] sm:$0xff] %v370
        %v388 = vld [vmem:[%s2] sm:$0x1]
        %v389 = vld [vmem:[%s4] sm:$0x1]
        %v390 = vld [vmem:[#allocation2] sm:$0xff]
        %v391 = vld [vmem:[#allocation2 + $0x10] sm:$0xff]
        %v392 = vld [vmem:[#allocation2 + $0x20] sm:$0xff]
        %v393 = vld [vmem:[#allocation2 + $0x30] sm:$0xff]
        %v394 = vld [vmem:[#allocation2 + $0x40] sm:$0xff]
        %v395 = vld [vmem:[#allocation2 + $0x50] sm:$0xff]
        %v396 = vld [vmem:[#allocation2 + $0x60] sm:$0xff]
        %v397 = vld [vmem:[#allocation2 + $0x70] sm:$0xff]
        %v398 = vld [vmem:[#allocation2 + $0x80] sm:$0xff]
        %v399 = vld [vmem:[#allocation2 + $0x90] sm:$0xff]
        %v400 = vld [vmem:[#allocation2 + $0xa0] sm:$0xff]
        %v401 = vld [vmem:[#allocation2 + $0xb0] sm:$0xff]
        %v402 = vld [vmem:[#allocation2 + $0xc0] sm:$0xff]
        %v403 = vld [vmem:[#allocation2 + $0xd0] sm:$0xff]
        %v404 = vld [vmem:[#allocation2 + $0xe0] sm:$0xff]
        %v405 = vld [vmem:[#allocation2 + $0xf0] sm:$0xff]
        %v406 = vpack.c.bf16 %v391, %v390
        %v407 = vpack.c.bf16 %v393, %v392
        %v408 = vpack.c.bf16 %v395, %v394
        %v409 = vpack.c.bf16 %v397, %v396
        %v410 = vpack.c.bf16 %v399, %v398
        %v411 = vpack.c.bf16 %v401, %v400
        %v412 = vpack.c.bf16 %v403, %v402
        %v413 = vpack.c.bf16 %v405, %v404
        %v414 = vld [vmem:[#allocation3] sm:$0xff]
        %v415 = vld [vmem:[#allocation3 + $0x10] sm:$0xff]
        %v416 = vld [vmem:[#allocation3 + $0x20] sm:$0xff]
        %v417 = vld [vmem:[#allocation3 + $0x30] sm:$0xff]
        %v418 = vld [vmem:[#allocation3 + $0x40] sm:$0xff]
        %v419 = vld [vmem:[#allocation3 + $0x50] sm:$0xff]
        %v420 = vld [vmem:[#allocation3 + $0x60] sm:$0xff]
        %v421 = vld [vmem:[#allocation3 + $0x70] sm:$0xff]
        %v422 = vld [vmem:[#allocation3 + $0x80] sm:$0xff]
        %v423 = vld [vmem:[#allocation3 + $0x90] sm:$0xff]
        %v424 = vld [vmem:[#allocation3 + $0xa0] sm:$0xff]
        %v425 = vld [vmem:[#allocation3 + $0xb0] sm:$0xff]
        %v426 = vld [vmem:[#allocation3 + $0xc0] sm:$0xff]
        %v427 = vld [vmem:[#allocation3 + $0xd0] sm:$0xff]
        %v428 = vld [vmem:[#allocation3 + $0xe0] sm:$0xff]
        %v429 = vld [vmem:[#allocation3 + $0xf0] sm:$0xff]
        %v430 = vpack.c.bf16 %v415, %v414
        %v431 = vpack.c.bf16 %v417, %v416
        %v432 = vpack.c.bf16 %v419, %v418
        %v433 = vpack.c.bf16 %v421, %v420
        %v434 = vpack.c.bf16 %v423, %v422
        %v435 = vpack.c.bf16 %v425, %v424
        %v436 = vpack.c.bf16 %v427, %v426
        %v437 = vpack.c.bf16 %v429, %v428
        %v438 = vld [vmem:[#allocation2 + $0x1] sm:$0xff]
        %v439 = vld [vmem:[#allocation2 + $0x11] sm:$0xff]
        %v440 = vld [vmem:[#allocation2 + $0x21] sm:$0xff]
        %v441 = vld [vmem:[#allocation2 + $0x31] sm:$0xff]
        %v442 = vld [vmem:[#allocation2 + $0x41] sm:$0xff]
        %v443 = vld [vmem:[#allocation2 + $0x51] sm:$0xff]
        %v444 = vld [vmem:[#allocation2 + $0x61] sm:$0xff]
        %v445 = vld [vmem:[#allocation2 + $0x71] sm:$0xff]
        %v446 = vld [vmem:[#allocation2 + $0x81] sm:$0xff]
        %v447 = vld [vmem:[#allocation2 + $0x91] sm:$0xff]
        %v448 = vld [vmem:[#allocation2 + $0xa1] sm:$0xff]
        %v449 = vld [vmem:[#allocation2 + $0xb1] sm:$0xff]
        %v450 = vld [vmem:[#allocation2 + $0xc1] sm:$0xff]
        %v451 = vld [vmem:[#allocation2 + $0xd1] sm:$0xff]
        %v452 = vld [vmem:[#allocation2 + $0xe1] sm:$0xff]
        %v453 = vld [vmem:[#allocation2 + $0xf1] sm:$0xff]
        %v454 = vpack.c.bf16 %v439, %v438
        %v455 = vpack.c.bf16 %v441, %v440
        %v456 = vpack.c.bf16 %v443, %v442
        %v457 = vpack.c.bf16 %v445, %v444
        %v458 = vpack.c.bf16 %v447, %v446
        %v459 = vpack.c.bf16 %v449, %v448
        %v460 = vpack.c.bf16 %v451, %v450
        %v461 = vpack.c.bf16 %v453, %v452
        %v462 = vld [vmem:[%s1] sm:$0xf]
        %v463 = vld [vmem:[%s1 + $0x4] sm:$0xf]
        %v464 = vld [vmem:[%s1 + $0x8] sm:$0xf]
        %v465 = vld [vmem:[%s1 + $0xc] sm:$0xf]
        %v466 = vld [vmem:[%s1 + $0x10] sm:$0xf]
        %v467 = vld [vmem:[%s1 + $0x14] sm:$0xf]
        %v468 = vld [vmem:[%s1 + $0x18] sm:$0xf]
        %v469 = vld [vmem:[%s1 + $0x1c] sm:$0xf]
        %v470 = vld [vmem:[%s1 + $0x20] sm:$0xf]
        %v471 = vld [vmem:[%s1 + $0x24] sm:$0xf]
        %v472 = vld [vmem:[%s1 + $0x28] sm:$0xf]
        %v473 = vld [vmem:[%s1 + $0x2c] sm:$0xf]
        %v474 = vld [vmem:[%s1 + $0x30] sm:$0xf]
        %v475 = vld [vmem:[%s1 + $0x34] sm:$0xf]
        %v476 = vld [vmem:[%s1 + $0x38] sm:$0xf]
        %v477 = vld [vmem:[%s1 + $0x3c] sm:$0xf]
        %v478 = vld [vmem:[%s1 + $0x40] sm:$0xf]
        %v479 = vld [vmem:[%s1 + $0x44] sm:$0xf]
        %v480 = vld [vmem:[%s1 + $0x48] sm:$0xf]
        %v481 = vld [vmem:[%s1 + $0x4c] sm:$0xf]
        %v482 = vld [vmem:[%s1 + $0x50] sm:$0xf]
        %v483 = vld [vmem:[%s1 + $0x54] sm:$0xf]
        %v484 = vld [vmem:[%s1 + $0x58] sm:$0xf]
        %v485 = vld [vmem:[%s1 + $0x5c] sm:$0xf]
        %v486 = vld [vmem:[%s1 + $0x60] sm:$0xf]
        %v487 = vld [vmem:[%s1 + $0x64] sm:$0xf]
        %v488 = vld [vmem:[%s1 + $0x68] sm:$0xf]
        %v489 = vld [vmem:[%s1 + $0x6c] sm:$0xf]
        %v490 = vld [vmem:[%s1 + $0x70] sm:$0xf]
        %v491 = vld [vmem:[%s1 + $0x74] sm:$0xf]
        %v492 = vld [vmem:[%s1 + $0x78] sm:$0xf]
        %v493 = vld [vmem:[%s1 + $0x7c] sm:$0xf]
        %v494 = vld [vmem:[%s1 + $0x80] sm:$0xf]
        %v495 = vld [vmem:[%s1 + $0x84] sm:$0xf]
        %v496 = vld [vmem:[%s1 + $0x88] sm:$0xf]
        %v497 = vld [vmem:[%s1 + $0x8c] sm:$0xf]
        %v498 = vld [vmem:[%s1 + $0x90] sm:$0xf]
        %v499 = vld [vmem:[%s1 + $0x94] sm:$0xf]
        %v500 = vld [vmem:[%s1 + $0x98] sm:$0xf]
        %v501 = vld [vmem:[%s1 + $0x9c] sm:$0xf]
        %v502 = vld [vmem:[%s1 + $0xa0] sm:$0xf]
        %v503 = vld [vmem:[%s1 + $0xa4] sm:$0xf]
        %v504 = vld [vmem:[%s1 + $0xa8] sm:$0xf]
        %v505 = vld [vmem:[%s1 + $0xac] sm:$0xf]
        %v506 = vld [vmem:[%s1 + $0xb0] sm:$0xf]
        %v507 = vld [vmem:[%s1 + $0xb4] sm:$0xf]
        %v508 = vld [vmem:[%s1 + $0xb8] sm:$0xf]
        %v509 = vld [vmem:[%s1 + $0xbc] sm:$0xf]
        %v510 = vld [vmem:[%s371] sm:$0xff]
        %v511 = vld [vmem:[%s371 + $0x10] sm:$0xff]
        %v512 = vld [vmem:[%s371 + $0x20] sm:$0xff]
        %v513 = vld [vmem:[%s371 + $0x30] sm:$0xff]
        %v514 = vld [vmem:[%s371 + $0x40] sm:$0xff]
        %v515 = vld [vmem:[%s371 + $0x50] sm:$0xff]
        %v516 = vld [vmem:[%s371 + $0x60] sm:$0xff]
        %v517 = vld [vmem:[%s371 + $0x70] sm:$0xff]
        %v518 = vld [vmem:[%s371 + $0x80] sm:$0xff]
        %v519 = vld [vmem:[%s371 + $0x90] sm:$0xff]
        %v520 = vld [vmem:[%s371 + $0xa0] sm:$0xff]
        %v521 = vld [vmem:[%s371 + $0xb0] sm:$0xff]
        %v522 = vld [vmem:[%s371 + $0xc0] sm:$0xff]
        %v523 = vld [vmem:[%s371 + $0xd0] sm:$0xff]
        %v524 = vld [vmem:[%s371 + $0xe0] sm:$0xff]
        %v525 = vld [vmem:[%s371 + $0xf0] sm:$0xff]
        %v526 = vpack.c.bf16 %v511, %v510
        %v527 = vpack.c.bf16 %v513, %v512
        %v528 = vpack.c.bf16 %v515, %v514
        %v529 = vpack.c.bf16 %v517, %v516
        %v530 = vpack.c.bf16 %v519, %v518
        %v531 = vpack.c.bf16 %v521, %v520
        %v532 = vpack.c.bf16 %v523, %v522
        %v533 = vpack.c.bf16 %v525, %v524
        %v534 = vld [vmem:[%s322] sm:$0xff]
        %v535 = vld [vmem:[%s322 + $0x10] sm:$0xff]
        %v536 = vld [vmem:[%s322 + $0x20] sm:$0xff]
        %v537 = vld [vmem:[%s322 + $0x30] sm:$0xff]
        %v538 = vld [vmem:[%s322 + $0x40] sm:$0xff]
        %v539 = vld [vmem:[%s322 + $0x50] sm:$0xff]
        %v540 = vld [vmem:[%s322 + $0x60] sm:$0xff]
        %v541 = vld [vmem:[%s322 + $0x70] sm:$0xff]
        %v542 = vld [vmem:[%s322 + $0x80] sm:$0xff]
        %v543 = vld [vmem:[%s322 + $0x90] sm:$0xff]
        %v544 = vld [vmem:[%s322 + $0xa0] sm:$0xff]
        %v545 = vld [vmem:[%s322 + $0xb0] sm:$0xff]
        %v546 = vld [vmem:[%s322 + $0xc0] sm:$0xff]
        %v547 = vld [vmem:[%s322 + $0xd0] sm:$0xff]
        %v548 = vld [vmem:[%s322 + $0xe0] sm:$0xff]
        %v549 = vld [vmem:[%s322 + $0xf0] sm:$0xff]
        %v550 = vpack.c.bf16 %v535, %v534
        %v551 = vpack.c.bf16 %v537, %v536
        %v552 = vpack.c.bf16 %v539, %v538
        %v553 = vpack.c.bf16 %v541, %v540
        %v554 = vpack.c.bf16 %v543, %v542
        %v555 = vpack.c.bf16 %v545, %v544
        %v556 = vpack.c.bf16 %v547, %v546
        %v557 = vpack.c.bf16 %v549, %v548
        %v558 = vld [vmem:[%s371 + $0x1] sm:$0xff]
        %v559 = vld [vmem:[%s371 + $0x11] sm:$0xff]
        %v560 = vld [vmem:[%s371 + $0x21] sm:$0xff]
        %v561 = vld [vmem:[%s371 + $0x31] sm:$0xff]
        %v562 = vld [vmem:[%s371 + $0x41] sm:$0xff]
        %v563 = vld [vmem:[%s371 + $0x51] sm:$0xff]
        %v564 = vld [vmem:[%s371 + $0x61] sm:$0xff]
        %v565 = vld [vmem:[%s371 + $0x71] sm:$0xff]
        %v566 = vld [vmem:[%s371 + $0x81] sm:$0xff]
        %v567 = vld [vmem:[%s371 + $0x91] sm:$0xff]
        %v568 = vld [vmem:[%s371 + $0xa1] sm:$0xff]
        %v569 = vld [vmem:[%s371 + $0xb1] sm:$0xff]
        %v570 = vld [vmem:[%s371 + $0xc1] sm:$0xff]
        %v571 = vld [vmem:[%s371 + $0xd1] sm:$0xff]
        %v572 = vld [vmem:[%s371 + $0xe1] sm:$0xff]
        %v573 = vld [vmem:[%s371 + $0xf1] sm:$0xff]
        %v574 = vpack.c.bf16 %v559, %v558
        %v575 = vpack.c.bf16 %v561, %v560
        %v576 = vpack.c.bf16 %v563, %v562
        %v577 = vpack.c.bf16 %v565, %v564
        %v578 = vpack.c.bf16 %v567, %v566
        %v579 = vpack.c.bf16 %v569, %v568
        %v580 = vpack.c.bf16 %v571, %v570
        %v581 = vpack.c.bf16 %v573, %v572
        %s582 = scalar_lea.vmem %s1, 192
        %v583 = vld [vmem:[%s582] sm:$0xf]
        %v584 = vld [vmem:[%s582 + $0x4] sm:$0xf]
        %v585 = vld [vmem:[%s582 + $0x8] sm:$0xf]
        %v586 = vld [vmem:[%s582 + $0xc] sm:$0xf]
        %v587 = vld [vmem:[%s582 + $0x10] sm:$0xf]
        %v588 = vld [vmem:[%s582 + $0x14] sm:$0xf]
        %v589 = vld [vmem:[%s582 + $0x18] sm:$0xf]
        %v590 = vld [vmem:[%s582 + $0x1c] sm:$0xf]
        %v591 = vld [vmem:[%s582 + $0x20] sm:$0xf]
        %v592 = vld [vmem:[%s582 + $0x24] sm:$0xf]
        %v593 = vld [vmem:[%s582 + $0x28] sm:$0xf]
        %v594 = vld [vmem:[%s582 + $0x2c] sm:$0xf]
        %v595 = vld [vmem:[%s582 + $0x30] sm:$0xf]
        %v596 = vld [vmem:[%s582 + $0x34] sm:$0xf]
        %v597 = vld [vmem:[%s582 + $0x38] sm:$0xf]
        %v598 = vld [vmem:[%s582 + $0x3c] sm:$0xf]
        %v599 = vld [vmem:[%s582 + $0x40] sm:$0xf]
        %v600 = vld [vmem:[%s582 + $0x44] sm:$0xf]
        %v601 = vld [vmem:[%s582 + $0x48] sm:$0xf]
        %v602 = vld [vmem:[%s582 + $0x4c] sm:$0xf]
        %v603 = vld [vmem:[%s582 + $0x50] sm:$0xf]
        %v604 = vld [vmem:[%s582 + $0x54] sm:$0xf]
        %v605 = vld [vmem:[%s582 + $0x58] sm:$0xf]
        %v606 = vld [vmem:[%s582 + $0x5c] sm:$0xf]
        %v607 = vld [vmem:[%s582 + $0x60] sm:$0xf]
        %v608 = vld [vmem:[%s582 + $0x64] sm:$0xf]
        %v609 = vld [vmem:[%s582 + $0x68] sm:$0xf]
        %v610 = vld [vmem:[%s582 + $0x6c] sm:$0xf]
        %v611 = vld [vmem:[%s582 + $0x70] sm:$0xf]
        %v612 = vld [vmem:[%s582 + $0x74] sm:$0xf]
        %v613 = vld [vmem:[%s582 + $0x78] sm:$0xf]
        %v614 = vld [vmem:[%s582 + $0x7c] sm:$0xf]
        %v615 = vld [vmem:[%s582 + $0x80] sm:$0xf]
        %v616 = vld [vmem:[%s582 + $0x84] sm:$0xf]
        %v617 = vld [vmem:[%s582 + $0x88] sm:$0xf]
        %v618 = vld [vmem:[%s582 + $0x8c] sm:$0xf]
        %v619 = vld [vmem:[%s582 + $0x90] sm:$0xf]
        %v620 = vld [vmem:[%s582 + $0x94] sm:$0xf]
        %v621 = vld [vmem:[%s582 + $0x98] sm:$0xf]
        %v622 = vld [vmem:[%s582 + $0x9c] sm:$0xf]
        %v623 = vld [vmem:[%s582 + $0xa0] sm:$0xf]
        %v624 = vld [vmem:[%s582 + $0xa4] sm:$0xf]
        %v625 = vld [vmem:[%s582 + $0xa8] sm:$0xf]
        %v626 = vld [vmem:[%s582 + $0xac] sm:$0xf]
        %v627 = vld [vmem:[%s582 + $0xb0] sm:$0xf]
        %v628 = vld [vmem:[%s582 + $0xb4] sm:$0xf]
        %v629 = vld [vmem:[%s582 + $0xb8] sm:$0xf]
        %v630 = vld [vmem:[%s582 + $0xbc] sm:$0xf]
        %v679 = vunpack.c.l.b16 %v583
        %v680 = vunpack.c.l.b16 %v584
        %v681 = vunpack.c.l.b16 %v585
        %v682 = vunpack.c.l.b16 %v586
        %v683 = vunpack.c.l.b16 %v587
        %v684 = vunpack.c.l.b16 %v588
        %v685 = vunpack.c.l.b16 %v589
        %v686 = vunpack.c.l.b16 %v590
        %v687 = vunpack.c.l.b16 %v591
        %v688 = vunpack.c.l.b16 %v592
        %v689 = vunpack.c.l.b16 %v593
        %v690 = vunpack.c.l.b16 %v594
        %v691 = vunpack.c.l.b16 %v595
        %v692 = vunpack.c.l.b16 %v596
        %v693 = vunpack.c.l.b16 %v597
        %v694 = vunpack.c.l.b16 %v598
        %v695 = vunpack.c.l.b16 %v599
        %v696 = vunpack.c.l.b16 %v600
        %v697 = vunpack.c.l.b16 %v601
        %v698 = vunpack.c.l.b16 %v602
        %v699 = vunpack.c.l.b16 %v603
        %v700 = vunpack.c.l.b16 %v604
        %v701 = vunpack.c.l.b16 %v605
        %v702 = vunpack.c.l.b16 %v606
        %v703 = vunpack.c.l.b16 %v607
        %v704 = vunpack.c.l.b16 %v608
        %v705 = vunpack.c.l.b16 %v609
        %v706 = vunpack.c.l.b16 %v610
        %v707 = vunpack.c.l.b16 %v611
        %v708 = vunpack.c.l.b16 %v612
        %v709 = vunpack.c.l.b16 %v613
        %v710 = vunpack.c.l.b16 %v614
        %v711 = vunpack.c.l.b16 %v615
        %v712 = vunpack.c.l.b16 %v616
        %v713 = vunpack.c.l.b16 %v617
        %v714 = vunpack.c.l.b16 %v618
        %v715 = vunpack.c.l.b16 %v619
        %v716 = vunpack.c.l.b16 %v620
        %v717 = vunpack.c.l.b16 %v621
        %v718 = vunpack.c.l.b16 %v622
        %v719 = vunpack.c.l.b16 %v623
        %v720 = vunpack.c.l.b16 %v624
        %v721 = vunpack.c.l.b16 %v625
        %v722 = vunpack.c.l.b16 %v626
        %v723 = vunpack.c.l.b16 %v627
        %v724 = vunpack.c.l.b16 %v628
        %v725 = vunpack.c.l.b16 %v629
        %v726 = vunpack.c.l.b16 %v630
        %v727 = vpack.c.b16 %v680, %v679
        %v728 = vpack.c.b16 %v682, %v681
        %v729 = vpack.c.b16 %v684, %v683
        %v730 = vpack.c.b16 %v686, %v685
        %v731 = vpack.c.b16 %v688, %v687
        %v732 = vpack.c.b16 %v690, %v689
        %v733 = vpack.c.b16 %v692, %v691
        %v734 = vpack.c.b16 %v694, %v693
        %v735 = vpack.c.b16 %v696, %v695
        %v736 = vpack.c.b16 %v698, %v697
        %v737 = vpack.c.b16 %v700, %v699
        %v738 = vpack.c.b16 %v702, %v701
        %v739 = vpack.c.b16 %v704, %v703
        %v740 = vpack.c.b16 %v706, %v705
        %v741 = vpack.c.b16 %v708, %v707
        %v742 = vpack.c.b16 %v710, %v709
        %v743 = vpack.c.b16 %v712, %v711
        %v744 = vpack.c.b16 %v714, %v713
        %v745 = vpack.c.b16 %v716, %v715
        %v746 = vpack.c.b16 %v718, %v717
        %v747 = vpack.c.b16 %v720, %v719
        %v748 = vpack.c.b16 %v722, %v721
        %v749 = vpack.c.b16 %v724, %v723
        %v750 = vpack.c.b16 %v726, %v725
        %775 = vmatprep.subr.bf16.mxu0 0
        %776 = vmatpush1.bf16.msra.mxu0 %v734
        %777 = vmatprep.subr.bf16.mxu0 0
        %778 = vmatpush1.bf16.msra.mxu0 %v733
        %779 = vmatprep.subr.bf16.mxu0 0
        %780 = vmatpush1.bf16.msra.mxu0 %v732
        %781 = vmatprep.subr.bf16.mxu0 0
        %782 = vmatpush1.bf16.msra.mxu0 %v731
        %783 = vmatprep.subr.bf16.mxu0 0
        %784 = vmatpush1.bf16.msra.mxu0 %v730
        %785 = vmatprep.subr.bf16.mxu0 0
        %786 = vmatpush1.bf16.msra.mxu0 %v729
        %787 = vmatprep.subr.bf16.mxu0 0
        %788 = vmatpush1.bf16.msra.mxu0 %v728
        %789 = vmatprep.subr.bf16.mxu0 0
        %790 = vmatpush1.bf16.msra.mxu0 %v727
        %791 = vmatprep.subr.bf16.mxu0 0
        %792 = vmatpush2.bf16.msra.mxu0 %v742
        %793 = vmatprep.subr.bf16.mxu0 0
        %794 = vmatpush2.bf16.msra.mxu0 %v741
        %795 = vmatprep.subr.bf16.mxu0 0
        %796 = vmatpush2.bf16.msra.mxu0 %v740
        %797 = vmatprep.subr.bf16.mxu0 0
        %798 = vmatpush2.bf16.msra.mxu0 %v739
        %799 = vmatprep.subr.bf16.mxu0 0
        %800 = vmatpush2.bf16.msra.mxu0 %v738
        %801 = vmatprep.subr.bf16.mxu0 0
        %802 = vmatpush2.bf16.msra.mxu0 %v737
        %803 = vmatprep.subr.bf16.mxu0 0
        %804 = vmatpush2.bf16.msra.mxu0 %v736
        %805 = vmatprep.subr.bf16.mxu0 0
        %806 = vmatpush2.bf16.msra.mxu0 %v735
        %807 = vmatprep.mubr.bf16.mxu0 %v550
        %808 = vmatmul.mubr.bf16.gmra.mxu0 %v526
        %v809 = vpop.f32.mrf.mxu0
        %v810 = vadd.f32 0.0, %v809
        %v811 = vpop.f32.mrf.mxu0
        %v812 = vpop.f32.mrf.mxu0
        %v813 = vadd.f32 0.0, %v812
        %v814 = vpop.f32.mrf.mxu0
        %815 = vmatprep.mubr.bf16.mxu0 %v551
        %816 = vmatmul.mubr.bf16.gmra.mxu0 %v527
        %v817 = vpop.f32.mrf.mxu0
        %v818 = vadd.f32 0.0, %v817
        %v819 = vpop.f32.mrf.mxu0
        %v820 = vpop.f32.mrf.mxu0
        %v821 = vadd.f32 0.0, %v820
        %v822 = vpop.f32.mrf.mxu0
        %823 = vmatprep.mubr.bf16.mxu0 %v552
        %824 = vmatmul.mubr.bf16.gmra.mxu0 %v528
        %v825 = vpop.f32.mrf.mxu0
        %v826 = vadd.f32 0.0, %v825
        %v827 = vpop.f32.mrf.mxu0
        %v828 = vpop.f32.mrf.mxu0
        %v829 = vadd.f32 0.0, %v828
        %v830 = vpop.f32.mrf.mxu0
        %831 = vmatprep.mubr.bf16.mxu0 %v553
        %832 = vmatmul.mubr.bf16.gmra.mxu0 %v529
        %v833 = vpop.f32.mrf.mxu0
        %v834 = vadd.f32 0.0, %v833
        %v835 = vpop.f32.mrf.mxu0
        %v836 = vpop.f32.mrf.mxu0
        %v837 = vadd.f32 0.0, %v836
        %v838 = vpop.f32.mrf.mxu0
        %839 = vmatprep.mubr.bf16.mxu0 %v554
        %840 = vmatmul.mubr.bf16.gmra.mxu0 %v530
        %v841 = vpop.f32.mrf.mxu0
        %v842 = vadd.f32 0.0, %v841
        %v843 = vpop.f32.mrf.mxu0
        %v844 = vpop.f32.mrf.mxu0
        %v845 = vadd.f32 0.0, %v844
        %v846 = vpop.f32.mrf.mxu0
        %847 = vmatprep.mubr.bf16.mxu0 %v555
        %848 = vmatmul.mubr.bf16.gmra.mxu0 %v531
        %v849 = vpop.f32.mrf.mxu0
        %v850 = vadd.f32 0.0, %v849
        %v851 = vpop.f32.mrf.mxu0
        %v852 = vpop.f32.mrf.mxu0
        %v853 = vadd.f32 0.0, %v852
        %v854 = vpop.f32.mrf.mxu0
        %855 = vmatprep.mubr.bf16.mxu0 %v556
        %856 = vmatmul.mubr.bf16.gmra.mxu0 %v532
        %v857 = vpop.f32.mrf.mxu0
        %v858 = vadd.f32 0.0, %v857
        %v859 = vpop.f32.mrf.mxu0
        %v860 = vpop.f32.mrf.mxu0
        %v861 = vadd.f32 0.0, %v860
        %v862 = vpop.f32.mrf.mxu0
        %863 = vmatprep.mubr.bf16.mxu0 %v557
        %864 = vmatmul.mubr.bf16.gmra.mxu0 %v533
        %v865 = vpop.f32.mrf.mxu0
        %v866 = vadd.f32 0.0, %v865
        %v867 = vpop.f32.mrf.mxu0
        %v868 = vpop.f32.mrf.mxu0
        %v869 = vadd.f32 0.0, %v868
        %v870 = vpop.f32.mrf.mxu0
        %871 = vdwg.mxu0
        %872 = vmatprep.subr.bf16.mxu0 0
        %873 = vmatpush1.bf16.msra.mxu0 %v750
        %874 = vmatprep.subr.bf16.mxu0 0
        %875 = vmatpush1.bf16.msra.mxu0 %v749
        %876 = vmatprep.subr.bf16.mxu0 0
        %877 = vmatpush1.bf16.msra.mxu0 %v748
        %878 = vmatprep.subr.bf16.mxu0 0
        %879 = vmatpush1.bf16.msra.mxu0 %v747
        %880 = vmatprep.subr.bf16.mxu0 0
        %881 = vmatpush1.bf16.msra.mxu0 %v746
        %882 = vmatprep.subr.bf16.mxu0 0
        %883 = vmatpush1.bf16.msra.mxu0 %v745
        %884 = vmatprep.subr.bf16.mxu0 0
        %885 = vmatpush1.bf16.msra.mxu0 %v744
        %886 = vmatprep.subr.bf16.mxu0 0
        %887 = vmatpush1.bf16.msra.mxu0 %v743
        %888 = vmatprep.subr.bf16.mxu0 0
        %889 = vmatpush2.bf16.msra.mxu0 0
        %890 = vmatprep.subr.bf16.mxu0 0
        %891 = vmatpush2.bf16.msra.mxu0 0
        %892 = vmatprep.subr.bf16.mxu0 0
        %893 = vmatpush2.bf16.msra.mxu0 0
        %894 = vmatprep.subr.bf16.mxu0 0
        %895 = vmatpush2.bf16.msra.mxu0 0
        %896 = vmatprep.subr.bf16.mxu0 0
        %897 = vmatpush2.bf16.msra.mxu0 0
        %898 = vmatprep.subr.bf16.mxu0 0
        %899 = vmatpush2.bf16.msra.mxu0 0
        %900 = vmatprep.subr.bf16.mxu0 0
        %901 = vmatpush2.bf16.msra.mxu0 0
        %902 = vmatprep.subr.bf16.mxu0 0
        %903 = vmatpush2.bf16.msra.mxu0 0
        %904 = vmatprep.mubr.bf16.mxu0 0
        %905 = vmatmul.mubr.bf16.gmra.mxu0 %v574
        %v906 = vpop.f32.mrf.mxu0
        %v907 = vadd.f32 %v810, %v906
        %v908 = vpop.f32.mrf.mxu0
        %v909 = vpop.f32.mrf.mxu0
        %v910 = vadd.f32 %v813, %v909
        %v911 = vpop.f32.mrf.mxu0
        %912 = vmatprep.mubr.bf16.mxu0 0
        %913 = vmatmul.mubr.bf16.gmra.mxu0 %v575
        %v914 = vpop.f32.mrf.mxu0
        %v915 = vadd.f32 %v818, %v914
        %v916 = vpop.f32.mrf.mxu0
        %v917 = vpop.f32.mrf.mxu0
        %v918 = vadd.f32 %v821, %v917
        %v919 = vpop.f32.mrf.mxu0
        %920 = vmatprep.mubr.bf16.mxu0 0
        %921 = vmatmul.mubr.bf16.gmra.mxu0 %v576
        %v922 = vpop.f32.mrf.mxu0
        %v923 = vadd.f32 %v826, %v922
        %v924 = vpop.f32.mrf.mxu0
        %v925 = vpop.f32.mrf.mxu0
        %v926 = vadd.f32 %v829, %v925
        %v927 = vpop.f32.mrf.mxu0
        %928 = vmatprep.mubr.bf16.mxu0 0
        %929 = vmatmul.mubr.bf16.gmra.mxu0 %v577
        %v930 = vpop.f32.mrf.mxu0
        %v931 = vadd.f32 %v834, %v930
        %v932 = vpop.f32.mrf.mxu0
        %v933 = vpop.f32.mrf.mxu0
        %v934 = vadd.f32 %v837, %v933
        %v935 = vpop.f32.mrf.mxu0
        %936 = vmatprep.mubr.bf16.mxu0 0
        %937 = vmatmul.mubr.bf16.gmra.mxu0 %v578
        %v938 = vpop.f32.mrf.mxu0
        %v939 = vadd.f32 %v842, %v938
        %v940 = vpop.f32.mrf.mxu0
        %v941 = vpop.f32.mrf.mxu0
        %v942 = vadd.f32 %v845, %v941
        %v943 = vpop.f32.mrf.mxu0
        %944 = vmatprep.mubr.bf16.mxu0 0
        %945 = vmatmul.mubr.bf16.gmra.mxu0 %v579
        %v946 = vpop.f32.mrf.mxu0
        %v947 = vadd.f32 %v850, %v946
        %v948 = vpop.f32.mrf.mxu0
        %v949 = vpop.f32.mrf.mxu0
        %v950 = vadd.f32 %v853, %v949
        %v951 = vpop.f32.mrf.mxu0
        %952 = vmatprep.mubr.bf16.mxu0 0
        %953 = vmatmul.mubr.bf16.gmra.mxu0 %v580
        %v954 = vpop.f32.mrf.mxu0
        %v955 = vadd.f32 %v858, %v954
        %v956 = vpop.f32.mrf.mxu0
        %v957 = vpop.f32.mrf.mxu0
        %v958 = vadd.f32 %v861, %v957
        %v959 = vpop.f32.mrf.mxu0
        %960 = vmatprep.mubr.bf16.mxu0 0
        %961 = vmatmul.mubr.bf16.gmra.mxu0 %v581
        %v962 = vpop.f32.mrf.mxu0
        %v963 = vadd.f32 %v866, %v962
        %v964 = vpop.f32.mrf.mxu0
        %v965 = vpop.f32.mrf.mxu0
        %v966 = vadd.f32 %v869, %v965
        %v967 = vpop.f32.mrf.mxu0
        %968 = vdwg.mxu0
        %v1017 = vunpack.c.l.b16 %v462
        %v1018 = vunpack.c.l.b16 %v463
        %v1019 = vunpack.c.l.b16 %v464
        %v1020 = vunpack.c.l.b16 %v465
        %v1021 = vunpack.c.l.b16 %v466
        %v1022 = vunpack.c.l.b16 %v467
        %v1023 = vunpack.c.l.b16 %v468
        %v1024 = vunpack.c.l.b16 %v469
        %v1025 = vunpack.c.l.b16 %v470
        %v1026 = vunpack.c.l.b16 %v471
        %v1027 = vunpack.c.l.b16 %v472
        %v1028 = vunpack.c.l.b16 %v473
        %v1029 = vunpack.c.l.b16 %v474
        %v1030 = vunpack.c.l.b16 %v475
        %v1031 = vunpack.c.l.b16 %v476
        %v1032 = vunpack.c.l.b16 %v477
        %v1033 = vunpack.c.l.b16 %v478
        %v1034 = vunpack.c.l.b16 %v479
        %v1035 = vunpack.c.l.b16 %v480
        %v1036 = vunpack.c.l.b16 %v481
        %v1037 = vunpack.c.l.b16 %v482
        %v1038 = vunpack.c.l.b16 %v483
        %v1039 = vunpack.c.l.b16 %v484
        %v1040 = vunpack.c.l.b16 %v485
        %v1041 = vunpack.c.l.b16 %v486
        %v1042 = vunpack.c.l.b16 %v487
        %v1043 = vunpack.c.l.b16 %v488
        %v1044 = vunpack.c.l.b16 %v489
        %v1045 = vunpack.c.l.b16 %v490
        %v1046 = vunpack.c.l.b16 %v491
        %v1047 = vunpack.c.l.b16 %v492
        %v1048 = vunpack.c.l.b16 %v493
        %v1049 = vunpack.c.l.b16 %v494
        %v1050 = vunpack.c.l.b16 %v495
        %v1051 = vunpack.c.l.b16 %v496
        %v1052 = vunpack.c.l.b16 %v497
        %v1053 = vunpack.c.l.b16 %v498
        %v1054 = vunpack.c.l.b16 %v499
        %v1055 = vunpack.c.l.b16 %v500
        %v1056 = vunpack.c.l.b16 %v501
        %v1057 = vunpack.c.l.b16 %v502
        %v1058 = vunpack.c.l.b16 %v503
        %v1059 = vunpack.c.l.b16 %v504
        %v1060 = vunpack.c.l.b16 %v505
        %v1061 = vunpack.c.l.b16 %v506
        %v1062 = vunpack.c.l.b16 %v507
        %v1063 = vunpack.c.l.b16 %v508
        %v1064 = vunpack.c.l.b16 %v509
        %v1065 = vpack.c.b16 %v1018, %v1017
        %v1066 = vpack.c.b16 %v1020, %v1019
        %v1067 = vpack.c.b16 %v1022, %v1021
        %v1068 = vpack.c.b16 %v1024, %v1023
        %v1069 = vpack.c.b16 %v1026, %v1025
        %v1070 = vpack.c.b16 %v1028, %v1027
        %v1071 = vpack.c.b16 %v1030, %v1029
        %v1072 = vpack.c.b16 %v1032, %v1031
        %v1073 = vpack.c.b16 %v1034, %v1033
        %v1074 = vpack.c.b16 %v1036, %v1035
        %v1075 = vpack.c.b16 %v1038, %v1037
        %v1076 = vpack.c.b16 %v1040, %v1039
        %v1077 = vpack.c.b16 %v1042, %v1041
        %v1078 = vpack.c.b16 %v1044, %v1043
        %v1079 = vpack.c.b16 %v1046, %v1045
        %v1080 = vpack.c.b16 %v1048, %v1047
        %v1081 = vpack.c.b16 %v1050, %v1049
        %v1082 = vpack.c.b16 %v1052, %v1051
        %v1083 = vpack.c.b16 %v1054, %v1053
        %v1084 = vpack.c.b16 %v1056, %v1055
        %v1085 = vpack.c.b16 %v1058, %v1057
        %v1086 = vpack.c.b16 %v1060, %v1059
        %v1087 = vpack.c.b16 %v1062, %v1061
        %v1088 = vpack.c.b16 %v1064, %v1063
        %1113 = vmatprep.subr.bf16.mxu0 0
        %1114 = vmatpush1.bf16.msra.mxu0 %v1072
        %1115 = vmatprep.subr.bf16.mxu0 0
        %1116 = vmatpush1.bf16.msra.mxu0 %v1071
        %1117 = vmatprep.subr.bf16.mxu0 0
        %1118 = vmatpush1.bf16.msra.mxu0 %v1070
        %1119 = vmatprep.subr.bf16.mxu0 0
        %1120 = vmatpush1.bf16.msra.mxu0 %v1069
        %1121 = vmatprep.subr.bf16.mxu0 0
        %1122 = vmatpush1.bf16.msra.mxu0 %v1068
        %1123 = vmatprep.subr.bf16.mxu0 0
        %1124 = vmatpush1.bf16.msra.mxu0 %v1067
        %1125 = vmatprep.subr.bf16.mxu0 0
        %1126 = vmatpush1.bf16.msra.mxu0 %v1066
        %1127 = vmatprep.subr.bf16.mxu0 0
        %1128 = vmatpush1.bf16.msra.mxu0 %v1065
        %1129 = vmatprep.subr.bf16.mxu0 0
        %1130 = vmatpush2.bf16.msra.mxu0 %v1080
        %1131 = vmatprep.subr.bf16.mxu0 0
        %1132 = vmatpush2.bf16.msra.mxu0 %v1079
        %1133 = vmatprep.subr.bf16.mxu0 0
        %1134 = vmatpush2.bf16.msra.mxu0 %v1078
        %1135 = vmatprep.subr.bf16.mxu0 0
        %1136 = vmatpush2.bf16.msra.mxu0 %v1077
        %1137 = vmatprep.subr.bf16.mxu0 0
        %1138 = vmatpush2.bf16.msra.mxu0 %v1076
        %1139 = vmatprep.subr.bf16.mxu0 0
        %1140 = vmatpush2.bf16.msra.mxu0 %v1075
        %1141 = vmatprep.subr.bf16.mxu0 0
        %1142 = vmatpush2.bf16.msra.mxu0 %v1074
        %1143 = vmatprep.subr.bf16.mxu0 0
        %1144 = vmatpush2.bf16.msra.mxu0 %v1073
        %1145 = vmatprep.mubr.bf16.mxu0 %v430
        %1146 = vmatmul.mubr.bf16.gmra.mxu0 %v406
        %v1147 = vpop.f32.mrf.mxu0
        %v1148 = vadd.f32 %v907, %v1147
        %v1149 = vpop.f32.mrf.mxu0
        %v1150 = vpop.f32.mrf.mxu0
        %v1151 = vadd.f32 %v910, %v1150
        %v1152 = vpop.f32.mrf.mxu0
        %1153 = vmatprep.mubr.bf16.mxu0 %v431
        %1154 = vmatmul.mubr.bf16.gmra.mxu0 %v407
        %v1155 = vpop.f32.mrf.mxu0
        %v1156 = vadd.f32 %v915, %v1155
        %v1157 = vpop.f32.mrf.mxu0
        %v1158 = vpop.f32.mrf.mxu0
        %v1159 = vadd.f32 %v918, %v1158
        %v1160 = vpop.f32.mrf.mxu0
        %1161 = vmatprep.mubr.bf16.mxu0 %v432
        %1162 = vmatmul.mubr.bf16.gmra.mxu0 %v408
        %v1163 = vpop.f32.mrf.mxu0
        %v1164 = vadd.f32 %v923, %v1163
        %v1165 = vpop.f32.mrf.mxu0
        %v1166 = vpop.f32.mrf.mxu0
        %v1167 = vadd.f32 %v926, %v1166
        %v1168 = vpop.f32.mrf.mxu0
        %1169 = vmatprep.mubr.bf16.mxu0 %v433
        %1170 = vmatmul.mubr.bf16.gmra.mxu0 %v409
        %v1171 = vpop.f32.mrf.mxu0
        %v1172 = vadd.f32 %v931, %v1171
        %v1173 = vpop.f32.mrf.mxu0
        %v1174 = vpop.f32.mrf.mxu0
        %v1175 = vadd.f32 %v934, %v1174
        %v1176 = vpop.f32.mrf.mxu0
        %1177 = vmatprep.mubr.bf16.mxu0 %v434
        %1178 = vmatmul.mubr.bf16.gmra.mxu0 %v410
        %v1179 = vpop.f32.mrf.mxu0
        %v1180 = vadd.f32 %v939, %v1179
        %v1181 = vpop.f32.mrf.mxu0
        %v1182 = vpop.f32.mrf.mxu0
        %v1183 = vadd.f32 %v942, %v1182
        %v1184 = vpop.f32.mrf.mxu0
        %1185 = vmatprep.mubr.bf16.mxu0 %v435
        %1186 = vmatmul.mubr.bf16.gmra.mxu0 %v411
        %v1187 = vpop.f32.mrf.mxu0
        %v1188 = vadd.f32 %v947, %v1187
        %v1189 = vpop.f32.mrf.mxu0
        %v1190 = vpop.f32.mrf.mxu0
        %v1191 = vadd.f32 %v950, %v1190
        %v1192 = vpop.f32.mrf.mxu0
        %1193 = vmatprep.mubr.bf16.mxu0 %v436
        %1194 = vmatmul.mubr.bf16.gmra.mxu0 %v412
        %v1195 = vpop.f32.mrf.mxu0
        %v1196 = vadd.f32 %v955, %v1195
        %v1197 = vpop.f32.mrf.mxu0
        %v1198 = vpop.f32.mrf.mxu0
        %v1199 = vadd.f32 %v958, %v1198
        %v1200 = vpop.f32.mrf.mxu0
        %1201 = vmatprep.mubr.bf16.mxu0 %v437
        %1202 = vmatmul.mubr.bf16.gmra.mxu0 %v413
        %v1203 = vpop.f32.mrf.mxu0
        %v1204 = vadd.f32 %v963, %v1203
        %v1205 = vpop.f32.mrf.mxu0
        %v1206 = vpop.f32.mrf.mxu0
        %v1207 = vadd.f32 %v966, %v1206
        %v1208 = vpop.f32.mrf.mxu0
        %1209 = vdwg.mxu0
        %1210 = vmatprep.subr.bf16.mxu0 0
        %1211 = vmatpush1.bf16.msra.mxu0 %v1088
        %1212 = vmatprep.subr.bf16.mxu0 0
        %1213 = vmatpush1.bf16.msra.mxu0 %v1087
        %1214 = vmatprep.subr.bf16.mxu0 0
        %1215 = vmatpush1.bf16.msra.mxu0 %v1086
        %1216 = vmatprep.subr.bf16.mxu0 0
        %1217 = vmatpush1.bf16.msra.mxu0 %v1085
        %1218 = vmatprep.subr.bf16.mxu0 0
        %1219 = vmatpush1.bf16.msra.mxu0 %v1084
        %1220 = vmatprep.subr.bf16.mxu0 0
        %1221 = vmatpush1.bf16.msra.mxu0 %v1083
        %1222 = vmatprep.subr.bf16.mxu0 0
        %1223 = vmatpush1.bf16.msra.mxu0 %v1082
        %1224 = vmatprep.subr.bf16.mxu0 0
        %1225 = vmatpush1.bf16.msra.mxu0 %v1081
        %1226 = vmatprep.subr.bf16.mxu0 0
        %1227 = vmatpush2.bf16.msra.mxu0 0
        %1228 = vmatprep.subr.bf16.mxu0 0
        %1229 = vmatpush2.bf16.msra.mxu0 0
        %1230 = vmatprep.subr.bf16.mxu0 0
        %1231 = vmatpush2.bf16.msra.mxu0 0
        %1232 = vmatprep.subr.bf16.mxu0 0
        %1233 = vmatpush2.bf16.msra.mxu0 0
        %1234 = vmatprep.subr.bf16.mxu0 0
        %1235 = vmatpush2.bf16.msra.mxu0 0
        %1236 = vmatprep.subr.bf16.mxu0 0
        %1237 = vmatpush2.bf16.msra.mxu0 0
        %1238 = vmatprep.subr.bf16.mxu0 0
        %1239 = vmatpush2.bf16.msra.mxu0 0
        %1240 = vmatprep.subr.bf16.mxu0 0
        %1241 = vmatpush2.bf16.msra.mxu0 0
        %1242 = vmatprep.mubr.bf16.mxu0 0
        %1243 = vmatmul.mubr.bf16.gmra.mxu0 %v454
        %v1244 = vpop.f32.mrf.mxu0
        %v1245 = vadd.f32 %v1148, %v1244
        %v1246 = vpop.f32.mrf.mxu0
        %v1247 = vpop.f32.mrf.mxu0
        %v1248 = vadd.f32 %v1151, %v1247
        %v1249 = vpop.f32.mrf.mxu0
        %1250 = vmatprep.mubr.bf16.mxu0 0
        %1251 = vmatmul.mubr.bf16.gmra.mxu0 %v455
        %v1252 = vpop.f32.mrf.mxu0
        %v1253 = vadd.f32 %v1156, %v1252
        %v1254 = vpop.f32.mrf.mxu0
        %v1255 = vpop.f32.mrf.mxu0
        %v1256 = vadd.f32 %v1159, %v1255
        %v1257 = vpop.f32.mrf.mxu0
        %1258 = vmatprep.mubr.bf16.mxu0 0
        %1259 = vmatmul.mubr.bf16.gmra.mxu0 %v456
        %v1260 = vpop.f32.mrf.mxu0
        %v1261 = vadd.f32 %v1164, %v1260
        %v1262 = vpop.f32.mrf.mxu0
        %v1263 = vpop.f32.mrf.mxu0
        %v1264 = vadd.f32 %v1167, %v1263
        %v1265 = vpop.f32.mrf.mxu0
        %1266 = vmatprep.mubr.bf16.mxu0 0
        %1267 = vmatmul.mubr.bf16.gmra.mxu0 %v457
        %v1268 = vpop.f32.mrf.mxu0
        %v1269 = vadd.f32 %v1172, %v1268
        %v1270 = vpop.f32.mrf.mxu0
        %v1271 = vpop.f32.mrf.mxu0
        %v1272 = vadd.f32 %v1175, %v1271
        %v1273 = vpop.f32.mrf.mxu0
        %1274 = vmatprep.mubr.bf16.mxu0 0
        %1275 = vmatmul.mubr.bf16.gmra.mxu0 %v458
        %v1276 = vpop.f32.mrf.mxu0
        %v1277 = vadd.f32 %v1180, %v1276
        %v1278 = vpop.f32.mrf.mxu0
        %v1279 = vpop.f32.mrf.mxu0
        %v1280 = vadd.f32 %v1183, %v1279
        %v1281 = vpop.f32.mrf.mxu0
        %1282 = vmatprep.mubr.bf16.mxu0 0
        %1283 = vmatmul.mubr.bf16.gmra.mxu0 %v459
        %v1284 = vpop.f32.mrf.mxu0
        %v1285 = vadd.f32 %v1188, %v1284
        %v1286 = vpop.f32.mrf.mxu0
        %v1287 = vpop.f32.mrf.mxu0
        %v1288 = vadd.f32 %v1191, %v1287
        %v1289 = vpop.f32.mrf.mxu0
        %1290 = vmatprep.mubr.bf16.mxu0 0
        %1291 = vmatmul.mubr.bf16.gmra.mxu0 %v460
        %v1292 = vpop.f32.mrf.mxu0
        %v1293 = vadd.f32 %v1196, %v1292
        %v1294 = vpop.f32.mrf.mxu0
        %v1295 = vpop.f32.mrf.mxu0
        %v1296 = vadd.f32 %v1199, %v1295
        %v1297 = vpop.f32.mrf.mxu0
        %1298 = vmatprep.mubr.bf16.mxu0 0
        %1299 = vmatmul.mubr.bf16.gmra.mxu0 %v461
        %v1300 = vpop.f32.mrf.mxu0
        %v1301 = vadd.f32 %v1204, %v1300
        %v1302 = vpop.f32.mrf.mxu0
        %v1303 = vpop.f32.mrf.mxu0
        %v1304 = vadd.f32 %v1207, %v1303
        %v1305 = vpop.f32.mrf.mxu0
        %1306 = vdwg.mxu0
        %s1307 = scalar_lea.vmem [#allocation2], 32
        %v1308 = vld [vmem:[%s1307] sm:$0xff]
        %v1309 = vld [vmem:[%s1307 + $0x10] sm:$0xff]
        %v1310 = vld [vmem:[%s1307 + $0x20] sm:$0xff]
        %v1311 = vld [vmem:[%s1307 + $0x30] sm:$0xff]
        %v1312 = vld [vmem:[%s1307 + $0x40] sm:$0xff]
        %v1313 = vld [vmem:[%s1307 + $0x50] sm:$0xff]
        %v1314 = vld [vmem:[%s1307 + $0x60] sm:$0xff]
        %v1315 = vld [vmem:[%s1307 + $0x70] sm:$0xff]
        %v1316 = vld [vmem:[%s1307 + $0x80] sm:$0xff]
        %v1317 = vld [vmem:[%s1307 + $0x90] sm:$0xff]
        %v1318 = vld [vmem:[%s1307 + $0xa0] sm:$0xff]
        %v1319 = vld [vmem:[%s1307 + $0xb0] sm:$0xff]
        %v1320 = vld [vmem:[%s1307 + $0xc0] sm:$0xff]
        %v1321 = vld [vmem:[%s1307 + $0xd0] sm:$0xff]
        %v1322 = vld [vmem:[%s1307 + $0xe0] sm:$0xff]
        %v1323 = vld [vmem:[%s1307 + $0xf0] sm:$0xff]
        %v1324 = vpack.c.bf16 %v1309, %v1308
        %v1325 = vpack.c.bf16 %v1311, %v1310
        %v1326 = vpack.c.bf16 %v1313, %v1312
        %v1327 = vpack.c.bf16 %v1315, %v1314
        %v1328 = vpack.c.bf16 %v1317, %v1316
        %v1329 = vpack.c.bf16 %v1319, %v1318
        %v1330 = vpack.c.bf16 %v1321, %v1320
        %v1331 = vpack.c.bf16 %v1323, %v1322
        %s1332 = scalar_lea.vmem [#allocation3], 32
        %v1333 = vld [vmem:[%s1332] sm:$0xff]
        %v1334 = vld [vmem:[%s1332 + $0x10] sm:$0xff]
        %v1335 = vld [vmem:[%s1332 + $0x20] sm:$0xff]
        %v1336 = vld [vmem:[%s1332 + $0x30] sm:$0xff]
        %v1337 = vld [vmem:[%s1332 + $0x40] sm:$0xff]
        %v1338 = vld [vmem:[%s1332 + $0x50] sm:$0xff]
        %v1339 = vld [vmem:[%s1332 + $0x60] sm:$0xff]
        %v1340 = vld [vmem:[%s1332 + $0x70] sm:$0xff]
        %v1341 = vld [vmem:[%s1332 + $0x80] sm:$0xff]
        %v1342 = vld [vmem:[%s1332 + $0x90] sm:$0xff]
        %v1343 = vld [vmem:[%s1332 + $0xa0] sm:$0xff]
        %v1344 = vld [vmem:[%s1332 + $0xb0] sm:$0xff]
        %v1345 = vld [vmem:[%s1332 + $0xc0] sm:$0xff]
        %v1346 = vld [vmem:[%s1332 + $0xd0] sm:$0xff]
        %v1347 = vld [vmem:[%s1332 + $0xe0] sm:$0xff]
        %v1348 = vld [vmem:[%s1332 + $0xf0] sm:$0xff]
        %v1349 = vpack.c.bf16 %v1334, %v1333
        %v1350 = vpack.c.bf16 %v1336, %v1335
        %v1351 = vpack.c.bf16 %v1338, %v1337
        %v1352 = vpack.c.bf16 %v1340, %v1339
        %v1353 = vpack.c.bf16 %v1342, %v1341
        %v1354 = vpack.c.bf16 %v1344, %v1343
        %v1355 = vpack.c.bf16 %v1346, %v1345
        %v1356 = vpack.c.bf16 %v1348, %v1347
        %v1357 = vld [vmem:[%s1307 + $0x1] sm:$0xff]
        %v1358 = vld [vmem:[%s1307 + $0x11] sm:$0xff]
        %v1359 = vld [vmem:[%s1307 + $0x21] sm:$0xff]
        %v1360 = vld [vmem:[%s1307 + $0x31] sm:$0xff]
        %v1361 = vld [vmem:[%s1307 + $0x41] sm:$0xff]
        %v1362 = vld [vmem:[%s1307 + $0x51] sm:$0xff]
        %v1363 = vld [vmem:[%s1307 + $0x61] sm:$0xff]
        %v1364 = vld [vmem:[%s1307 + $0x71] sm:$0xff]
        %v1365 = vld [vmem:[%s1307 + $0x81] sm:$0xff]
        %v1366 = vld [vmem:[%s1307 + $0x91] sm:$0xff]
        %v1367 = vld [vmem:[%s1307 + $0xa1] sm:$0xff]
        %v1368 = vld [vmem:[%s1307 + $0xb1] sm:$0xff]
        %v1369 = vld [vmem:[%s1307 + $0xc1] sm:$0xff]
        %v1370 = vld [vmem:[%s1307 + $0xd1] sm:$0xff]
        %v1371 = vld [vmem:[%s1307 + $0xe1] sm:$0xff]
        %v1372 = vld [vmem:[%s1307 + $0xf1] sm:$0xff]
        %v1373 = vpack.c.bf16 %v1358, %v1357
        %v1374 = vpack.c.bf16 %v1360, %v1359
        %v1375 = vpack.c.bf16 %v1362, %v1361
        %v1376 = vpack.c.bf16 %v1364, %v1363
        %v1377 = vpack.c.bf16 %v1366, %v1365
        %v1378 = vpack.c.bf16 %v1368, %v1367
        %v1379 = vpack.c.bf16 %v1370, %v1369
        %v1380 = vpack.c.bf16 %v1372, %v1371
        %s1381 = scalar_lea.vmem %s1, 384
        %v1382 = vld [vmem:[%s1381] sm:$0xf]
        %v1383 = vld [vmem:[%s1381 + $0x4] sm:$0xf]
        %v1384 = vld [vmem:[%s1381 + $0x8] sm:$0xf]
        %v1385 = vld [vmem:[%s1381 + $0xc] sm:$0xf]
        %v1386 = vld [vmem:[%s1381 + $0x10] sm:$0xf]
        %v1387 = vld [vmem:[%s1381 + $0x14] sm:$0xf]
        %v1388 = vld [vmem:[%s1381 + $0x18] sm:$0xf]
        %v1389 = vld [vmem:[%s1381 + $0x1c] sm:$0xf]
        %v1390 = vld [vmem:[%s1381 + $0x20] sm:$0xf]
        %v1391 = vld [vmem:[%s1381 + $0x24] sm:$0xf]
        %v1392 = vld [vmem:[%s1381 + $0x28] sm:$0xf]
        %v1393 = vld [vmem:[%s1381 + $0x2c] sm:$0xf]
        %v1394 = vld [vmem:[%s1381 + $0x30] sm:$0xf]
        %v1395 = vld [vmem:[%s1381 + $0x34] sm:$0xf]
        %v1396 = vld [vmem:[%s1381 + $0x38] sm:$0xf]
        %v1397 = vld [vmem:[%s1381 + $0x3c] sm:$0xf]
        %v1398 = vld [vmem:[%s1381 + $0x40] sm:$0xf]
        %v1399 = vld [vmem:[%s1381 + $0x44] sm:$0xf]
        %v1400 = vld [vmem:[%s1381 + $0x48] sm:$0xf]
        %v1401 = vld [vmem:[%s1381 + $0x4c] sm:$0xf]
        %v1402 = vld [vmem:[%s1381 + $0x50] sm:$0xf]
        %v1403 = vld [vmem:[%s1381 + $0x54] sm:$0xf]
        %v1404 = vld [vmem:[%s1381 + $0x58] sm:$0xf]
        %v1405 = vld [vmem:[%s1381 + $0x5c] sm:$0xf]
        %v1406 = vld [vmem:[%s1381 + $0x60] sm:$0xf]
        %v1407 = vld [vmem:[%s1381 + $0x64] sm:$0xf]
        %v1408 = vld [vmem:[%s1381 + $0x68] sm:$0xf]
        %v1409 = vld [vmem:[%s1381 + $0x6c] sm:$0xf]
        %v1410 = vld [vmem:[%s1381 + $0x70] sm:$0xf]
        %v1411 = vld [vmem:[%s1381 + $0x74] sm:$0xf]
        %v1412 = vld [vmem:[%s1381 + $0x78] sm:$0xf]
        %v1413 = vld [vmem:[%s1381 + $0x7c] sm:$0xf]
        %v1414 = vld [vmem:[%s1381 + $0x80] sm:$0xf]
        %v1415 = vld [vmem:[%s1381 + $0x84] sm:$0xf]
        %v1416 = vld [vmem:[%s1381 + $0x88] sm:$0xf]
        %v1417 = vld [vmem:[%s1381 + $0x8c] sm:$0xf]
        %v1418 = vld [vmem:[%s1381 + $0x90] sm:$0xf]
        %v1419 = vld [vmem:[%s1381 + $0x94] sm:$0xf]
        %v1420 = vld [vmem:[%s1381 + $0x98] sm:$0xf]
        %v1421 = vld [vmem:[%s1381 + $0x9c] sm:$0xf]
        %v1422 = vld [vmem:[%s1381 + $0xa0] sm:$0xf]
        %v1423 = vld [vmem:[%s1381 + $0xa4] sm:$0xf]
        %v1424 = vld [vmem:[%s1381 + $0xa8] sm:$0xf]
        %v1425 = vld [vmem:[%s1381 + $0xac] sm:$0xf]
        %v1426 = vld [vmem:[%s1381 + $0xb0] sm:$0xf]
        %v1427 = vld [vmem:[%s1381 + $0xb4] sm:$0xf]
        %v1428 = vld [vmem:[%s1381 + $0xb8] sm:$0xf]
        %v1429 = vld [vmem:[%s1381 + $0xbc] sm:$0xf]
        %v1478 = vunpack.c.l.b16 %v1382
        %v1479 = vunpack.c.l.b16 %v1383
        %v1480 = vunpack.c.l.b16 %v1384
        %v1481 = vunpack.c.l.b16 %v1385
        %v1482 = vunpack.c.l.b16 %v1386
        %v1483 = vunpack.c.l.b16 %v1387
        %v1484 = vunpack.c.l.b16 %v1388
        %v1485 = vunpack.c.l.b16 %v1389
        %v1486 = vunpack.c.l.b16 %v1390
        %v1487 = vunpack.c.l.b16 %v1391
        %v1488 = vunpack.c.l.b16 %v1392
        %v1489 = vunpack.c.l.b16 %v1393
        %v1490 = vunpack.c.l.b16 %v1394
        %v1491 = vunpack.c.l.b16 %v1395
        %v1492 = vunpack.c.l.b16 %v1396
        %v1493 = vunpack.c.l.b16 %v1397
        %v1494 = vunpack.c.l.b16 %v1398
        %v1495 = vunpack.c.l.b16 %v1399
        %v1496 = vunpack.c.l.b16 %v1400
        %v1497 = vunpack.c.l.b16 %v1401
        %v1498 = vunpack.c.l.b16 %v1402
        %v1499 = vunpack.c.l.b16 %v1403
        %v1500 = vunpack.c.l.b16 %v1404
        %v1501 = vunpack.c.l.b16 %v1405
        %v1502 = vunpack.c.l.b16 %v1406
        %v1503 = vunpack.c.l.b16 %v1407
        %v1504 = vunpack.c.l.b16 %v1408
        %v1505 = vunpack.c.l.b16 %v1409
        %v1506 = vunpack.c.l.b16 %v1410
        %v1507 = vunpack.c.l.b16 %v1411
        %v1508 = vunpack.c.l.b16 %v1412
        %v1509 = vunpack.c.l.b16 %v1413
        %v1510 = vunpack.c.l.b16 %v1414
        %v1511 = vunpack.c.l.b16 %v1415
        %v1512 = vunpack.c.l.b16 %v1416
        %v1513 = vunpack.c.l.b16 %v1417
        %v1514 = vunpack.c.l.b16 %v1418
        %v1515 = vunpack.c.l.b16 %v1419
        %v1516 = vunpack.c.l.b16 %v1420
        %v1517 = vunpack.c.l.b16 %v1421
        %v1518 = vunpack.c.l.b16 %v1422
        %v1519 = vunpack.c.l.b16 %v1423
        %v1520 = vunpack.c.l.b16 %v1424
        %v1521 = vunpack.c.l.b16 %v1425
        %v1522 = vunpack.c.l.b16 %v1426
        %v1523 = vunpack.c.l.b16 %v1427
        %v1524 = vunpack.c.l.b16 %v1428
        %v1525 = vunpack.c.l.b16 %v1429
        %v1526 = vpack.c.b16 %v1479, %v1478
        %v1527 = vpack.c.b16 %v1481, %v1480
        %v1528 = vpack.c.b16 %v1483, %v1482
        %v1529 = vpack.c.b16 %v1485, %v1484
        %v1530 = vpack.c.b16 %v1487, %v1486
        %v1531 = vpack.c.b16 %v1489, %v1488
        %v1532 = vpack.c.b16 %v1491, %v1490
        %v1533 = vpack.c.b16 %v1493, %v1492
        %v1534 = vpack.c.b16 %v1495, %v1494
        %v1535 = vpack.c.b16 %v1497, %v1496
        %v1536 = vpack.c.b16 %v1499, %v1498
        %v1537 = vpack.c.b16 %v1501, %v1500
        %v1538 = vpack.c.b16 %v1503, %v1502
        %v1539 = vpack.c.b16 %v1505, %v1504
        %v1540 = vpack.c.b16 %v1507, %v1506
        %v1541 = vpack.c.b16 %v1509, %v1508
        %v1542 = vpack.c.b16 %v1511, %v1510
        %v1543 = vpack.c.b16 %v1513, %v1512
        %v1544 = vpack.c.b16 %v1515, %v1514
        %v1545 = vpack.c.b16 %v1517, %v1516
        %v1546 = vpack.c.b16 %v1519, %v1518
        %v1547 = vpack.c.b16 %v1521, %v1520
        %v1548 = vpack.c.b16 %v1523, %v1522
        %v1549 = vpack.c.b16 %v1525, %v1524
        %1574 = vmatprep.subr.bf16.mxu0 0
        %1575 = vmatpush1.bf16.msra.mxu0 %v1533
        %1576 = vmatprep.subr.bf16.mxu0 0
        %1577 = vmatpush1.bf16.msra.mxu0 %v1532
        %1578 = vmatprep.subr.bf16.mxu0 0
        %1579 = vmatpush1.bf16.msra.mxu0 %v1531
        %1580 = vmatprep.subr.bf16.mxu0 0
        %1581 = vmatpush1.bf16.msra.mxu0 %v1530
        %1582 = vmatprep.subr.bf16.mxu0 0
        %1583 = vmatpush1.bf16.msra.mxu0 %v1529
        %1584 = vmatprep.subr.bf16.mxu0 0
        %1585 = vmatpush1.bf16.msra.mxu0 %v1528
        %1586 = vmatprep.subr.bf16.mxu0 0
        %1587 = vmatpush1.bf16.msra.mxu0 %v1527
        %1588 = vmatprep.subr.bf16.mxu0 0
        %1589 = vmatpush1.bf16.msra.mxu0 %v1526
        %1590 = vmatprep.subr.bf16.mxu0 0
        %1591 = vmatpush2.bf16.msra.mxu0 %v1541
        %1592 = vmatprep.subr.bf16.mxu0 0
        %1593 = vmatpush2.bf16.msra.mxu0 %v1540
        %1594 = vmatprep.subr.bf16.mxu0 0
        %1595 = vmatpush2.bf16.msra.mxu0 %v1539
        %1596 = vmatprep.subr.bf16.mxu0 0
        %1597 = vmatpush2.bf16.msra.mxu0 %v1538
        %1598 = vmatprep.subr.bf16.mxu0 0
        %1599 = vmatpush2.bf16.msra.mxu0 %v1537
        %1600 = vmatprep.subr.bf16.mxu0 0
        %1601 = vmatpush2.bf16.msra.mxu0 %v1536
        %1602 = vmatprep.subr.bf16.mxu0 0
        %1603 = vmatpush2.bf16.msra.mxu0 %v1535
        %1604 = vmatprep.subr.bf16.mxu0 0
        %1605 = vmatpush2.bf16.msra.mxu0 %v1534
        %1606 = vmatprep.mubr.bf16.mxu0 %v1349
        %1607 = vmatmul.mubr.bf16.gmra.mxu0 %v1324
        %v1608 = vpop.f32.mrf.mxu0
        %v1609 = vadd.f32 0.0, %v1608
        %v1610 = vpop.f32.mrf.mxu0
        %v1611 = vpop.f32.mrf.mxu0
        %v1612 = vadd.f32 0.0, %v1611
        %v1613 = vpop.f32.mrf.mxu0
        %1614 = vmatprep.mubr.bf16.mxu0 %v1350
        %1615 = vmatmul.mubr.bf16.gmra.mxu0 %v1325
        %v1616 = vpop.f32.mrf.mxu0
        %v1617 = vadd.f32 0.0, %v1616
        %v1618 = vpop.f32.mrf.mxu0
        %v1619 = vpop.f32.mrf.mxu0
        %v1620 = vadd.f32 0.0, %v1619
        %v1621 = vpop.f32.mrf.mxu0
        %1622 = vmatprep.mubr.bf16.mxu0 %v1351
        %1623 = vmatmul.mubr.bf16.gmra.mxu0 %v1326
        %v1624 = vpop.f32.mrf.mxu0
        %v1625 = vadd.f32 0.0, %v1624
        %v1626 = vpop.f32.mrf.mxu0
        %v1627 = vpop.f32.mrf.mxu0
        %v1628 = vadd.f32 0.0, %v1627
        %v1629 = vpop.f32.mrf.mxu0
        %1630 = vmatprep.mubr.bf16.mxu0 %v1352
        %1631 = vmatmul.mubr.bf16.gmra.mxu0 %v1327
        %v1632 = vpop.f32.mrf.mxu0
        %v1633 = vadd.f32 0.0, %v1632
        %v1634 = vpop.f32.mrf.mxu0
        %v1635 = vpop.f32.mrf.mxu0
        %v1636 = vadd.f32 0.0, %v1635
        %v1637 = vpop.f32.mrf.mxu0
        %1638 = vmatprep.mubr.bf16.mxu0 %v1353
        %1639 = vmatmul.mubr.bf16.gmra.mxu0 %v1328
        %v1640 = vpop.f32.mrf.mxu0
        %v1641 = vadd.f32 0.0, %v1640
        %v1642 = vpop.f32.mrf.mxu0
        %v1643 = vpop.f32.mrf.mxu0
        %v1644 = vadd.f32 0.0, %v1643
        %v1645 = vpop.f32.mrf.mxu0
        %1646 = vmatprep.mubr.bf16.mxu0 %v1354
        %1647 = vmatmul.mubr.bf16.gmra.mxu0 %v1329
        %v1648 = vpop.f32.mrf.mxu0
        %v1649 = vadd.f32 0.0, %v1648
        %v1650 = vpop.f32.mrf.mxu0
        %v1651 = vpop.f32.mrf.mxu0
        %v1652 = vadd.f32 0.0, %v1651
        %v1653 = vpop.f32.mrf.mxu0
        %1654 = vmatprep.mubr.bf16.mxu0 %v1355
        %1655 = vmatmul.mubr.bf16.gmra.mxu0 %v1330
        %v1656 = vpop.f32.mrf.mxu0
        %v1657 = vadd.f32 0.0, %v1656
        %v1658 = vpop.f32.mrf.mxu0
        %v1659 = vpop.f32.mrf.mxu0
        %v1660 = vadd.f32 0.0, %v1659
        %v1661 = vpop.f32.mrf.mxu0
        %1662 = vmatprep.mubr.bf16.mxu0 %v1356
        %1663 = vmatmul.mubr.bf16.gmra.mxu0 %v1331
        %v1664 = vpop.f32.mrf.mxu0
        %v1665 = vadd.f32 0.0, %v1664
        %v1666 = vpop.f32.mrf.mxu0
        %v1667 = vpop.f32.mrf.mxu0
        %v1668 = vadd.f32 0.0, %v1667
        %v1669 = vpop.f32.mrf.mxu0
        %1670 = vdwg.mxu0
        %1671 = vmatprep.subr.bf16.mxu0 0
        %1672 = vmatpush1.bf16.msra.mxu0 %v1549
        %1673 = vmatprep.subr.bf16.mxu0 0
        %1674 = vmatpush1.bf16.msra.mxu0 %v1548
        %1675 = vmatprep.subr.bf16.mxu0 0
        %1676 = vmatpush1.bf16.msra.mxu0 %v1547
        %1677 = vmatprep.subr.bf16.mxu0 0
        %1678 = vmatpush1.bf16.msra.mxu0 %v1546
        %1679 = vmatprep.subr.bf16.mxu0 0
        %1680 = vmatpush1.bf16.msra.mxu0 %v1545
        %1681 = vmatprep.subr.bf16.mxu0 0
        %1682 = vmatpush1.bf16.msra.mxu0 %v1544
        %1683 = vmatprep.subr.bf16.mxu0 0
        %1684 = vmatpush1.bf16.msra.mxu0 %v1543
        %1685 = vmatprep.subr.bf16.mxu0 0
        %1686 = vmatpush1.bf16.msra.mxu0 %v1542
        %1687 = vmatprep.subr.bf16.mxu0 0
        %1688 = vmatpush2.bf16.msra.mxu0 0
        %1689 = vmatprep.subr.bf16.mxu0 0
        %1690 = vmatpush2.bf16.msra.mxu0 0
        %1691 = vmatprep.subr.bf16.mxu0 0
        %1692 = vmatpush2.bf16.msra.mxu0 0
        %1693 = vmatprep.subr.bf16.mxu0 0
        %1694 = vmatpush2.bf16.msra.mxu0 0
        %1695 = vmatprep.subr.bf16.mxu0 0
        %1696 = vmatpush2.bf16.msra.mxu0 0
        %1697 = vmatprep.subr.bf16.mxu0 0
        %1698 = vmatpush2.bf16.msra.mxu0 0
        %1699 = vmatprep.subr.bf16.mxu0 0
        %1700 = vmatpush2.bf16.msra.mxu0 0
        %1701 = vmatprep.subr.bf16.mxu0 0
        %1702 = vmatpush2.bf16.msra.mxu0 0
        %1703 = vmatprep.mubr.bf16.mxu0 0
        %1704 = vmatmul.mubr.bf16.gmra.mxu0 %v1373
        %v1705 = vpop.f32.mrf.mxu0
        %v1706 = vadd.f32 %v1609, %v1705
        %v1707 = vpop.f32.mrf.mxu0
        %v1708 = vpop.f32.mrf.mxu0
        %v1709 = vadd.f32 %v1612, %v1708
        %v1710 = vpop.f32.mrf.mxu0
        %1711 = vmatprep.mubr.bf16.mxu0 0
        %1712 = vmatmul.mubr.bf16.gmra.mxu0 %v1374
        %v1713 = vpop.f32.mrf.mxu0
        %v1714 = vadd.f32 %v1617, %v1713
        %v1715 = vpop.f32.mrf.mxu0
        %v1716 = vpop.f32.mrf.mxu0
        %v1717 = vadd.f32 %v1620, %v1716
        %v1718 = vpop.f32.mrf.mxu0
        %1719 = vmatprep.mubr.bf16.mxu0 0
        %1720 = vmatmul.mubr.bf16.gmra.mxu0 %v1375
        %v1721 = vpop.f32.mrf.mxu0
        %v1722 = vadd.f32 %v1625, %v1721
        %v1723 = vpop.f32.mrf.mxu0
        %v1724 = vpop.f32.mrf.mxu0
        %v1725 = vadd.f32 %v1628, %v1724
        %v1726 = vpop.f32.mrf.mxu0
        %1727 = vmatprep.mubr.bf16.mxu0 0
        %1728 = vmatmul.mubr.bf16.gmra.mxu0 %v1376
        %v1729 = vpop.f32.mrf.mxu0
        %v1730 = vadd.f32 %v1633, %v1729
        %v1731 = vpop.f32.mrf.mxu0
        %v1732 = vpop.f32.mrf.mxu0
        %v1733 = vadd.f32 %v1636, %v1732
        %v1734 = vpop.f32.mrf.mxu0
        %1735 = vmatprep.mubr.bf16.mxu0 0
        %1736 = vmatmul.mubr.bf16.gmra.mxu0 %v1377
        %v1737 = vpop.f32.mrf.mxu0
        %v1738 = vadd.f32 %v1641, %v1737
        %v1739 = vpop.f32.mrf.mxu0
        %v1740 = vpop.f32.mrf.mxu0
        %v1741 = vadd.f32 %v1644, %v1740
        %v1742 = vpop.f32.mrf.mxu0
        %1743 = vmatprep.mubr.bf16.mxu0 0
        %1744 = vmatmul.mubr.bf16.gmra.mxu0 %v1378
        %v1745 = vpop.f32.mrf.mxu0
        %v1746 = vadd.f32 %v1649, %v1745
        %v1747 = vpop.f32.mrf.mxu0
        %v1748 = vpop.f32.mrf.mxu0
        %v1749 = vadd.f32 %v1652, %v1748
        %v1750 = vpop.f32.mrf.mxu0
        %1751 = vmatprep.mubr.bf16.mxu0 0
        %1752 = vmatmul.mubr.bf16.gmra.mxu0 %v1379
        %v1753 = vpop.f32.mrf.mxu0
        %v1754 = vadd.f32 %v1657, %v1753
        %v1755 = vpop.f32.mrf.mxu0
        %v1756 = vpop.f32.mrf.mxu0
        %v1757 = vadd.f32 %v1660, %v1756
        %v1758 = vpop.f32.mrf.mxu0
        %1759 = vmatprep.mubr.bf16.mxu0 0
        %1760 = vmatmul.mubr.bf16.gmra.mxu0 %v1380
        %v1761 = vpop.f32.mrf.mxu0
        %v1762 = vadd.f32 %v1665, %v1761
        %v1763 = vpop.f32.mrf.mxu0
        %v1764 = vpop.f32.mrf.mxu0
        %v1765 = vadd.f32 %v1668, %v1764
        %v1766 = vpop.f32.mrf.mxu0
        %1767 = vdwg.mxu0
        %v1768 = vadd.f32 %v1245, %v1706
        %v1769 = vadd.f32 %v1248, %v1709
        %v1770 = vadd.f32 %v1253, %v1714
        %v1771 = vadd.f32 %v1256, %v1717
        %v1772 = vadd.f32 %v1261, %v1722
        %v1773 = vadd.f32 %v1264, %v1725
        %v1774 = vadd.f32 %v1269, %v1730
        %v1775 = vadd.f32 %v1272, %v1733
        %v1776 = vadd.f32 %v1277, %v1738
        %v1777 = vadd.f32 %v1280, %v1741
        %v1778 = vadd.f32 %v1285, %v1746
        %v1779 = vadd.f32 %v1288, %v1749
        %v1780 = vadd.f32 %v1293, %v1754
        %v1781 = vadd.f32 %v1296, %v1757
        %v1782 = vadd.f32 %v1301, %v1762
        %v1783 = vadd.f32 %v1304, %v1765
        %v1785 = vlaneseq
        %v1786 = vshrl.u32 %v1785, 7
        %v1787 = vsub.s32 0, %v1786
        %v1788 = vrot.slane %v388, %v1787
        %v1790 = vadd.f32 %v1768, %v1788
        %v1791 = vadd.f32 %v1769, %v1788
        %v1792 = vadd.f32 %v1770, %v1788
        %v1793 = vadd.f32 %v1771, %v1788
        %v1794 = vadd.f32 %v1772, %v1788
        %v1795 = vadd.f32 %v1773, %v1788
        %v1796 = vadd.f32 %v1774, %v1788
        %v1797 = vadd.f32 %v1775, %v1788
        %v1798 = vadd.f32 %v1776, %v1788
        %v1799 = vadd.f32 %v1777, %v1788
        %v1800 = vadd.f32 %v1778, %v1788
        %v1801 = vadd.f32 %v1779, %v1788
        %v1802 = vadd.f32 %v1780, %v1788
        %v1803 = vadd.f32 %v1781, %v1788
        %v1804 = vadd.f32 %v1782, %v1788
        %v1805 = vadd.f32 %v1783, %v1788
        %v1806 = vtanh.pop %v1790
        %v1807 = vtanh.pop %v1791
        %v1808 = vtanh.pop %v1792
        %v1809 = vtanh.pop %v1793
        %v1810 = vtanh.pop %v1794
        %v1811 = vtanh.pop %v1795
        %v1812 = vtanh.pop %v1796
        %v1813 = vtanh.pop %v1797
        %v1814 = vtanh.pop %v1798
        %v1815 = vtanh.pop %v1799
        %v1816 = vtanh.pop %v1800
        %v1817 = vtanh.pop %v1801
        %v1818 = vtanh.pop %v1802
        %v1819 = vtanh.pop %v1803
        %v1820 = vtanh.pop %v1804
        %v1821 = vtanh.pop %v1805
        %v1822 = vmax.f32 %v1806, 0.0
        %v1823 = vmax.f32 %v1807, 0.0
        %v1824 = vmax.f32 %v1808, 0.0
        %v1825 = vmax.f32 %v1809, 0.0
        %v1826 = vmax.f32 %v1810, 0.0
        %v1827 = vmax.f32 %v1811, 0.0
        %v1828 = vmax.f32 %v1812, 0.0
        %v1829 = vmax.f32 %v1813, 0.0
        %v1830 = vmax.f32 %v1814, 0.0
        %v1831 = vmax.f32 %v1815, 0.0
        %v1832 = vmax.f32 %v1816, 0.0
        %v1833 = vmax.f32 %v1817, 0.0
        %v1834 = vmax.f32 %v1818, 0.0
        %v1835 = vmax.f32 %v1819, 0.0
        %v1836 = vmax.f32 %v1820, 0.0
        %v1837 = vmax.f32 %v1821, 0.0
        %s1838 = scalar_lea.vmem [#allocation5], 8
        %1839 = vst [vmem:[%s1838] sm:$0xff] %v1822
        %1840 = vst [vmem:[%s1838 + $0x8] sm:$0xff] %v1823
        %1841 = vst [vmem:[%s1838 + $0x10] sm:$0xff] %v1824
        %1842 = vst [vmem:[%s1838 + $0x18] sm:$0xff] %v1825
        %1843 = vst [vmem:[%s1838 + $0x20] sm:$0xff] %v1826
        %1844 = vst [vmem:[%s1838 + $0x28] sm:$0xff] %v1827
        %1845 = vst [vmem:[%s1838 + $0x30] sm:$0xff] %v1828
        %1846 = vst [vmem:[%s1838 + $0x38] sm:$0xff] %v1829
        %1847 = vst [vmem:[%s1838 + $0x40] sm:$0xff] %v1830
        %1848 = vst [vmem:[%s1838 + $0x48] sm:$0xff] %v1831
        %1849 = vst [vmem:[%s1838 + $0x50] sm:$0xff] %v1832
        %1850 = vst [vmem:[%s1838 + $0x58] sm:$0xff] %v1833
        %1851 = vst [vmem:[%s1838 + $0x60] sm:$0xff] %v1834
        %1852 = vst [vmem:[%s1838 + $0x68] sm:$0xff] %v1835
        %1853 = vst [vmem:[%s1838 + $0x70] sm:$0xff] %v1836
        %1854 = vst [vmem:[%s1838 + $0x78] sm:$0xff] %v1837
        %v1855 = vld [vmem:[#allocation3] sm:$0xff]
        %v1856 = vld [vmem:[#allocation3 + $0x10] sm:$0xff]
        %v1857 = vld [vmem:[#allocation3 + $0x20] sm:$0xff]
        %v1858 = vld [vmem:[#allocation3 + $0x30] sm:$0xff]
        %v1859 = vld [vmem:[#allocation3 + $0x40] sm:$0xff]
        %v1860 = vld [vmem:[#allocation3 + $0x50] sm:$0xff]
        %v1861 = vld [vmem:[#allocation3 + $0x60] sm:$0xff]
        %v1862 = vld [vmem:[#allocation3 + $0x70] sm:$0xff]
        %v1863 = vld [vmem:[#allocation3 + $0x80] sm:$0xff]
        %v1864 = vld [vmem:[#allocation3 + $0x90] sm:$0xff]
        %v1865 = vld [vmem:[#allocation3 + $0xa0] sm:$0xff]
        %v1866 = vld [vmem:[#allocation3 + $0xb0] sm:$0xff]
        %v1867 = vld [vmem:[#allocation3 + $0xc0] sm:$0xff]
        %v1868 = vld [vmem:[#allocation3 + $0xd0] sm:$0xff]
        %v1869 = vld [vmem:[#allocation3 + $0xe0] sm:$0xff]
        %v1870 = vld [vmem:[#allocation3 + $0xf0] sm:$0xff]
        %v1871 = vpack.c.bf16 %v1856, %v1855
        %v1872 = vpack.c.bf16 %v1858, %v1857
        %v1873 = vpack.c.bf16 %v1860, %v1859
        %v1874 = vpack.c.bf16 %v1862, %v1861
        %v1875 = vpack.c.bf16 %v1864, %v1863
        %v1876 = vpack.c.bf16 %v1866, %v1865
        %v1877 = vpack.c.bf16 %v1868, %v1867
        %v1878 = vpack.c.bf16 %v1870, %v1869
        %v1879 = vld [vmem:[#allocation2 + $0x1] sm:$0xff]
        %v1880 = vld [vmem:[#allocation2 + $0x11] sm:$0xff]
        %v1881 = vld [vmem:[#allocation2 + $0x21] sm:$0xff]
        %v1882 = vld [vmem:[#allocation2 + $0x31] sm:$0xff]
        %v1883 = vld [vmem:[#allocation2 + $0x41] sm:$0xff]
        %v1884 = vld [vmem:[#allocation2 + $0x51] sm:$0xff]
        %v1885 = vld [vmem:[#allocation2 + $0x61] sm:$0xff]
        %v1886 = vld [vmem:[#allocation2 + $0x71] sm:$0xff]
        %v1887 = vld [vmem:[#allocation2 + $0x81] sm:$0xff]
        %v1888 = vld [vmem:[#allocation2 + $0x91] sm:$0xff]
        %v1889 = vld [vmem:[#allocation2 + $0xa1] sm:$0xff]
        %v1890 = vld [vmem:[#allocation2 + $0xb1] sm:$0xff]
        %v1891 = vld [vmem:[#allocation2 + $0xc1] sm:$0xff]
        %v1892 = vld [vmem:[#allocation2 + $0xd1] sm:$0xff]
        %v1893 = vld [vmem:[#allocation2 + $0xe1] sm:$0xff]
        %v1894 = vld [vmem:[#allocation2 + $0xf1] sm:$0xff]
        %v1895 = vpack.c.bf16 %v1880, %v1879
        %v1896 = vpack.c.bf16 %v1882, %v1881
        %v1897 = vpack.c.bf16 %v1884, %v1883
        %v1898 = vpack.c.bf16 %v1886, %v1885
        %v1899 = vpack.c.bf16 %v1888, %v1887
        %v1900 = vpack.c.bf16 %v1890, %v1889
        %v1901 = vpack.c.bf16 %v1892, %v1891
        %v1902 = vpack.c.bf16 %v1894, %v1893
        %v1903 = vld [vmem:[#allocation3 + $0x1] sm:$0xff]
        %v1904 = vld [vmem:[#allocation3 + $0x11] sm:$0xff]
        %v1905 = vld [vmem:[#allocation3 + $0x21] sm:$0xff]
        %v1906 = vld [vmem:[#allocation3 + $0x31] sm:$0xff]
        %v1907 = vld [vmem:[#allocation3 + $0x41] sm:$0xff]
        %v1908 = vld [vmem:[#allocation3 + $0x51] sm:$0xff]
        %v1909 = vld [vmem:[#allocation3 + $0x61] sm:$0xff]
        %v1910 = vld [vmem:[#allocation3 + $0x71] sm:$0xff]
        %v1911 = vld [vmem:[#allocation3 + $0x81] sm:$0xff]
        %v1912 = vld [vmem:[#allocation3 + $0x91] sm:$0xff]
        %v1913 = vld [vmem:[#allocation3 + $0xa1] sm:$0xff]
        %v1914 = vld [vmem:[#allocation3 + $0xb1] sm:$0xff]
        %v1915 = vld [vmem:[#allocation3 + $0xc1] sm:$0xff]
        %v1916 = vld [vmem:[#allocation3 + $0xd1] sm:$0xff]
        %v1917 = vld [vmem:[#allocation3 + $0xe1] sm:$0xff]
        %v1918 = vld [vmem:[#allocation3 + $0xf1] sm:$0xff]
        %v1919 = vpack.c.bf16 %v1904, %v1903
        %v1920 = vpack.c.bf16 %v1906, %v1905
        %v1921 = vpack.c.bf16 %v1908, %v1907
        %v1922 = vpack.c.bf16 %v1910, %v1909
        %v1923 = vpack.c.bf16 %v1912, %v1911
        %v1924 = vpack.c.bf16 %v1914, %v1913
        %v1925 = vpack.c.bf16 %v1916, %v1915
        %v1926 = vpack.c.bf16 %v1918, %v1917
        %v1927 = vld [vmem:[%s1] sm:$0xf]
        %v1928 = vld [vmem:[%s1 + $0x4] sm:$0xf]
        %v1929 = vld [vmem:[%s1 + $0x8] sm:$0xf]
        %v1930 = vld [vmem:[%s1 + $0xc] sm:$0xf]
        %v1931 = vld [vmem:[%s1 + $0x10] sm:$0xf]
        %v1932 = vld [vmem:[%s1 + $0x14] sm:$0xf]
        %v1933 = vld [vmem:[%s1 + $0x18] sm:$0xf]
        %v1934 = vld [vmem:[%s1 + $0x1c] sm:$0xf]
        %v1935 = vld [vmem:[%s1 + $0x20] sm:$0xf]
        %v1936 = vld [vmem:[%s1 + $0x24] sm:$0xf]
        %v1937 = vld [vmem:[%s1 + $0x28] sm:$0xf]
        %v1938 = vld [vmem:[%s1 + $0x2c] sm:$0xf]
        %v1939 = vld [vmem:[%s1 + $0x30] sm:$0xf]
        %v1940 = vld [vmem:[%s1 + $0x34] sm:$0xf]
        %v1941 = vld [vmem:[%s1 + $0x38] sm:$0xf]
        %v1942 = vld [vmem:[%s1 + $0x3c] sm:$0xf]
        %v1943 = vld [vmem:[%s1 + $0x40] sm:$0xf]
        %v1944 = vld [vmem:[%s1 + $0x44] sm:$0xf]
        %v1945 = vld [vmem:[%s1 + $0x48] sm:$0xf]
        %v1946 = vld [vmem:[%s1 + $0x4c] sm:$0xf]
        %v1947 = vld [vmem:[%s1 + $0x50] sm:$0xf]
        %v1948 = vld [vmem:[%s1 + $0x54] sm:$0xf]
        %v1949 = vld [vmem:[%s1 + $0x58] sm:$0xf]
        %v1950 = vld [vmem:[%s1 + $0x5c] sm:$0xf]
        %v1951 = vld [vmem:[%s1 + $0x60] sm:$0xf]
        %v1952 = vld [vmem:[%s1 + $0x64] sm:$0xf]
        %v1953 = vld [vmem:[%s1 + $0x68] sm:$0xf]
        %v1954 = vld [vmem:[%s1 + $0x6c] sm:$0xf]
        %v1955 = vld [vmem:[%s1 + $0x70] sm:$0xf]
        %v1956 = vld [vmem:[%s1 + $0x74] sm:$0xf]
        %v1957 = vld [vmem:[%s1 + $0x78] sm:$0xf]
        %v1958 = vld [vmem:[%s1 + $0x7c] sm:$0xf]
        %v1959 = vld [vmem:[%s1 + $0x80] sm:$0xf]
        %v1960 = vld [vmem:[%s1 + $0x84] sm:$0xf]
        %v1961 = vld [vmem:[%s1 + $0x88] sm:$0xf]
        %v1962 = vld [vmem:[%s1 + $0x8c] sm:$0xf]
        %v1963 = vld [vmem:[%s1 + $0x90] sm:$0xf]
        %v1964 = vld [vmem:[%s1 + $0x94] sm:$0xf]
        %v1965 = vld [vmem:[%s1 + $0x98] sm:$0xf]
        %v1966 = vld [vmem:[%s1 + $0x9c] sm:$0xf]
        %v1967 = vld [vmem:[%s1 + $0xa0] sm:$0xf]
        %v1968 = vld [vmem:[%s1 + $0xa4] sm:$0xf]
        %v1969 = vld [vmem:[%s1 + $0xa8] sm:$0xf]
        %v1970 = vld [vmem:[%s1 + $0xac] sm:$0xf]
        %v1971 = vld [vmem:[%s1 + $0xb0] sm:$0xf]
        %v1972 = vld [vmem:[%s1 + $0xb4] sm:$0xf]
        %v1973 = vld [vmem:[%s1 + $0xb8] sm:$0xf]
        %v1974 = vld [vmem:[%s1 + $0xbc] sm:$0xf]
        %v1975 = vld [vmem:[%s322] sm:$0xff]
        %v1976 = vld [vmem:[%s322 + $0x10] sm:$0xff]
        %v1977 = vld [vmem:[%s322 + $0x20] sm:$0xff]
        %v1978 = vld [vmem:[%s322 + $0x30] sm:$0xff]
        %v1979 = vld [vmem:[%s322 + $0x40] sm:$0xff]
        %v1980 = vld [vmem:[%s322 + $0x50] sm:$0xff]
        %v1981 = vld [vmem:[%s322 + $0x60] sm:$0xff]
        %v1982 = vld [vmem:[%s322 + $0x70] sm:$0xff]
        %v1983 = vld [vmem:[%s322 + $0x80] sm:$0xff]
        %v1984 = vld [vmem:[%s322 + $0x90] sm:$0xff]
        %v1985 = vld [vmem:[%s322 + $0xa0] sm:$0xff]
        %v1986 = vld [vmem:[%s322 + $0xb0] sm:$0xff]
        %v1987 = vld [vmem:[%s322 + $0xc0] sm:$0xff]
        %v1988 = vld [vmem:[%s322 + $0xd0] sm:$0xff]
        %v1989 = vld [vmem:[%s322 + $0xe0] sm:$0xff]
        %v1990 = vld [vmem:[%s322 + $0xf0] sm:$0xff]
        %v1991 = vpack.c.bf16 %v1976, %v1975
        %v1992 = vpack.c.bf16 %v1978, %v1977
        %v1993 = vpack.c.bf16 %v1980, %v1979
        %v1994 = vpack.c.bf16 %v1982, %v1981
        %v1995 = vpack.c.bf16 %v1984, %v1983
        %v1996 = vpack.c.bf16 %v1986, %v1985
        %v1997 = vpack.c.bf16 %v1988, %v1987
        %v1998 = vpack.c.bf16 %v1990, %v1989
        %v1999 = vld [vmem:[%s371 + $0x1] sm:$0xff]
        %v2000 = vld [vmem:[%s371 + $0x11] sm:$0xff]
        %v2001 = vld [vmem:[%s371 + $0x21] sm:$0xff]
        %v2002 = vld [vmem:[%s371 + $0x31] sm:$0xff]
        %v2003 = vld [vmem:[%s371 + $0x41] sm:$0xff]
        %v2004 = vld [vmem:[%s371 + $0x51] sm:$0xff]
        %v2005 = vld [vmem:[%s371 + $0x61] sm:$0xff]
        %v2006 = vld [vmem:[%s371 + $0x71] sm:$0xff]
        %v2007 = vld [vmem:[%s371 + $0x81] sm:$0xff]
        %v2008 = vld [vmem:[%s371 + $0x91] sm:$0xff]
        %v2009 = vld [vmem:[%s371 + $0xa1] sm:$0xff]
        %v2010 = vld [vmem:[%s371 + $0xb1] sm:$0xff]
        %v2011 = vld [vmem:[%s371 + $0xc1] sm:$0xff]
        %v2012 = vld [vmem:[%s371 + $0xd1] sm:$0xff]
        %v2013 = vld [vmem:[%s371 + $0xe1] sm:$0xff]
        %v2014 = vld [vmem:[%s371 + $0xf1] sm:$0xff]
        %v2015 = vpack.c.bf16 %v2000, %v1999
        %v2016 = vpack.c.bf16 %v2002, %v2001
        %v2017 = vpack.c.bf16 %v2004, %v2003
        %v2018 = vpack.c.bf16 %v2006, %v2005
        %v2019 = vpack.c.bf16 %v2008, %v2007
        %v2020 = vpack.c.bf16 %v2010, %v2009
        %v2021 = vpack.c.bf16 %v2012, %v2011
        %v2022 = vpack.c.bf16 %v2014, %v2013
        %v2023 = vld [vmem:[%s322 + $0x1] sm:$0xff]
        %v2024 = vld [vmem:[%s322 + $0x11] sm:$0xff]
        %v2025 = vld [vmem:[%s322 + $0x21] sm:$0xff]
        %v2026 = vld [vmem:[%s322 + $0x31] sm:$0xff]
        %v2027 = vld [vmem:[%s322 + $0x41] sm:$0xff]
        %v2028 = vld [vmem:[%s322 + $0x51] sm:$0xff]
        %v2029 = vld [vmem:[%s322 + $0x61] sm:$0xff]
        %v2030 = vld [vmem:[%s322 + $0x71] sm:$0xff]
        %v2031 = vld [vmem:[%s322 + $0x81] sm:$0xff]
        %v2032 = vld [vmem:[%s322 + $0x91] sm:$0xff]
        %v2033 = vld [vmem:[%s322 + $0xa1] sm:$0xff]
        %v2034 = vld [vmem:[%s322 + $0xb1] sm:$0xff]
        %v2035 = vld [vmem:[%s322 + $0xc1] sm:$0xff]
        %v2036 = vld [vmem:[%s322 + $0xd1] sm:$0xff]
        %v2037 = vld [vmem:[%s322 + $0xe1] sm:$0xff]
        %v2038 = vld [vmem:[%s322 + $0xf1] sm:$0xff]
        %v2039 = vpack.c.bf16 %v2024, %v2023
        %v2040 = vpack.c.bf16 %v2026, %v2025
        %v2041 = vpack.c.bf16 %v2028, %v2027
        %v2042 = vpack.c.bf16 %v2030, %v2029
        %v2043 = vpack.c.bf16 %v2032, %v2031
        %v2044 = vpack.c.bf16 %v2034, %v2033
        %v2045 = vpack.c.bf16 %v2036, %v2035
        %v2046 = vpack.c.bf16 %v2038, %v2037
        %v2047 = vld [vmem:[%s582] sm:$0xf]
        %v2048 = vld [vmem:[%s582 + $0x4] sm:$0xf]
        %v2049 = vld [vmem:[%s582 + $0x8] sm:$0xf]
        %v2050 = vld [vmem:[%s582 + $0xc] sm:$0xf]
        %v2051 = vld [vmem:[%s582 + $0x10] sm:$0xf]
        %v2052 = vld [vmem:[%s582 + $0x14] sm:$0xf]
        %v2053 = vld [vmem:[%s582 + $0x18] sm:$0xf]
        %v2054 = vld [vmem:[%s582 + $0x1c] sm:$0xf]
        %v2055 = vld [vmem:[%s582 + $0x20] sm:$0xf]
        %v2056 = vld [vmem:[%s582 + $0x24] sm:$0xf]
        %v2057 = vld [vmem:[%s582 + $0x28] sm:$0xf]
        %v2058 = vld [vmem:[%s582 + $0x2c] sm:$0xf]
        %v2059 = vld [vmem:[%s582 + $0x30] sm:$0xf]
        %v2060 = vld [vmem:[%s582 + $0x34] sm:$0xf]
        %v2061 = vld [vmem:[%s582 + $0x38] sm:$0xf]
        %v2062 = vld [vmem:[%s582 + $0x3c] sm:$0xf]
        %v2063 = vld [vmem:[%s582 + $0x40] sm:$0xf]
        %v2064 = vld [vmem:[%s582 + $0x44] sm:$0xf]
        %v2065 = vld [vmem:[%s582 + $0x48] sm:$0xf]
        %v2066 = vld [vmem:[%s582 + $0x4c] sm:$0xf]
        %v2067 = vld [vmem:[%s582 + $0x50] sm:$0xf]
        %v2068 = vld [vmem:[%s582 + $0x54] sm:$0xf]
        %v2069 = vld [vmem:[%s582 + $0x58] sm:$0xf]
        %v2070 = vld [vmem:[%s582 + $0x5c] sm:$0xf]
        %v2071 = vld [vmem:[%s582 + $0x60] sm:$0xf]
        %v2072 = vld [vmem:[%s582 + $0x64] sm:$0xf]
        %v2073 = vld [vmem:[%s582 + $0x68] sm:$0xf]
        %v2074 = vld [vmem:[%s582 + $0x6c] sm:$0xf]
        %v2075 = vld [vmem:[%s582 + $0x70] sm:$0xf]
        %v2076 = vld [vmem:[%s582 + $0x74] sm:$0xf]
        %v2077 = vld [vmem:[%s582 + $0x78] sm:$0xf]
        %v2078 = vld [vmem:[%s582 + $0x7c] sm:$0xf]
        %v2079 = vld [vmem:[%s582 + $0x80] sm:$0xf]
        %v2080 = vld [vmem:[%s582 + $0x84] sm:$0xf]
        %v2081 = vld [vmem:[%s582 + $0x88] sm:$0xf]
        %v2082 = vld [vmem:[%s582 + $0x8c] sm:$0xf]
        %v2083 = vld [vmem:[%s582 + $0x90] sm:$0xf]
        %v2084 = vld [vmem:[%s582 + $0x94] sm:$0xf]
        %v2085 = vld [vmem:[%s582 + $0x98] sm:$0xf]
        %v2086 = vld [vmem:[%s582 + $0x9c] sm:$0xf]
        %v2087 = vld [vmem:[%s582 + $0xa0] sm:$0xf]
        %v2088 = vld [vmem:[%s582 + $0xa4] sm:$0xf]
        %v2089 = vld [vmem:[%s582 + $0xa8] sm:$0xf]
        %v2090 = vld [vmem:[%s582 + $0xac] sm:$0xf]
        %v2091 = vld [vmem:[%s582 + $0xb0] sm:$0xf]
        %v2092 = vld [vmem:[%s582 + $0xb4] sm:$0xf]
        %v2093 = vld [vmem:[%s582 + $0xb8] sm:$0xf]
        %v2094 = vld [vmem:[%s582 + $0xbc] sm:$0xf]
        %v2143 = vunpack.c.l.b16 %v2047
        %v2144 = vunpack.c.l.b16 %v2048
        %v2145 = vunpack.c.l.b16 %v2049
        %v2146 = vunpack.c.l.b16 %v2050
        %v2147 = vunpack.c.l.b16 %v2051
        %v2148 = vunpack.c.l.b16 %v2052
        %v2149 = vunpack.c.l.b16 %v2053
        %v2150 = vunpack.c.l.b16 %v2054
        %v2151 = vunpack.c.l.b16 %v2055
        %v2152 = vunpack.c.l.b16 %v2056
        %v2153 = vunpack.c.l.b16 %v2057
        %v2154 = vunpack.c.l.b16 %v2058
        %v2155 = vunpack.c.l.b16 %v2059
        %v2156 = vunpack.c.l.b16 %v2060
        %v2157 = vunpack.c.l.b16 %v2061
        %v2158 = vunpack.c.l.b16 %v2062
        %v2159 = vunpack.c.l.b16 %v2063
        %v2160 = vunpack.c.l.b16 %v2064
        %v2161 = vunpack.c.l.b16 %v2065
        %v2162 = vunpack.c.l.b16 %v2066
        %v2163 = vunpack.c.l.b16 %v2067
        %v2164 = vunpack.c.l.b16 %v2068
        %v2165 = vunpack.c.l.b16 %v2069
        %v2166 = vunpack.c.l.b16 %v2070
        %v2167 = vunpack.c.l.b16 %v2071
        %v2168 = vunpack.c.l.b16 %v2072
        %v2169 = vunpack.c.l.b16 %v2073
        %v2170 = vunpack.c.l.b16 %v2074
        %v2171 = vunpack.c.l.b16 %v2075
        %v2172 = vunpack.c.l.b16 %v2076
        %v2173 = vunpack.c.l.b16 %v2077
        %v2174 = vunpack.c.l.b16 %v2078
        %v2175 = vunpack.c.l.b16 %v2079
        %v2176 = vunpack.c.l.b16 %v2080
        %v2177 = vunpack.c.l.b16 %v2081
        %v2178 = vunpack.c.l.b16 %v2082
        %v2179 = vunpack.c.l.b16 %v2083
        %v2180 = vunpack.c.l.b16 %v2084
        %v2181 = vunpack.c.l.b16 %v2085
        %v2182 = vunpack.c.l.b16 %v2086
        %v2183 = vunpack.c.l.b16 %v2087
        %v2184 = vunpack.c.l.b16 %v2088
        %v2185 = vunpack.c.l.b16 %v2089
        %v2186 = vunpack.c.l.b16 %v2090
        %v2187 = vunpack.c.l.b16 %v2091
        %v2188 = vunpack.c.l.b16 %v2092
        %v2189 = vunpack.c.l.b16 %v2093
        %v2190 = vunpack.c.l.b16 %v2094
        %v2191 = vpack.c.b16 %v2144, %v2143
        %v2192 = vpack.c.b16 %v2146, %v2145
        %v2193 = vpack.c.b16 %v2148, %v2147
        %v2194 = vpack.c.b16 %v2150, %v2149
        %v2195 = vpack.c.b16 %v2152, %v2151
        %v2196 = vpack.c.b16 %v2154, %v2153
        %v2197 = vpack.c.b16 %v2156, %v2155
        %v2198 = vpack.c.b16 %v2158, %v2157
        %v2199 = vpack.c.b16 %v2160, %v2159
        %v2200 = vpack.c.b16 %v2162, %v2161
        %v2201 = vpack.c.b16 %v2164, %v2163
        %v2202 = vpack.c.b16 %v2166, %v2165
        %v2203 = vpack.c.b16 %v2168, %v2167
        %v2204 = vpack.c.b16 %v2170, %v2169
        %v2205 = vpack.c.b16 %v2172, %v2171
        %v2206 = vpack.c.b16 %v2174, %v2173
        %v2207 = vpack.c.b16 %v2176, %v2175
        %v2208 = vpack.c.b16 %v2178, %v2177
        %v2209 = vpack.c.b16 %v2180, %v2179
        %v2210 = vpack.c.b16 %v2182, %v2181
        %v2211 = vpack.c.b16 %v2184, %v2183
        %v2212 = vpack.c.b16 %v2186, %v2185
        %v2213 = vpack.c.b16 %v2188, %v2187
        %v2214 = vpack.c.b16 %v2190, %v2189
        %2239 = vmatprep.subr.bf16.mxu0 0
        %2240 = vmatpush1.bf16.msra.mxu0 %v2198
        %2241 = vmatprep.subr.bf16.mxu0 0
        %2242 = vmatpush1.bf16.msra.mxu0 %v2197
        %2243 = vmatprep.subr.bf16.mxu0 0
        %2244 = vmatpush1.bf16.msra.mxu0 %v2196
        %2245 = vmatprep.subr.bf16.mxu0 0
        %2246 = vmatpush1.bf16.msra.mxu0 %v2195
        %2247 = vmatprep.subr.bf16.mxu0 0
        %2248 = vmatpush1.bf16.msra.mxu0 %v2194
        %2249 = vmatprep.subr.bf16.mxu0 0
        %2250 = vmatpush1.bf16.msra.mxu0 %v2193
        %2251 = vmatprep.subr.bf16.mxu0 0
        %2252 = vmatpush1.bf16.msra.mxu0 %v2192
        %2253 = vmatprep.subr.bf16.mxu0 0
        %2254 = vmatpush1.bf16.msra.mxu0 %v2191
        %2255 = vmatprep.subr.bf16.mxu0 0
        %2256 = vmatpush2.bf16.msra.mxu0 %v2206
        %2257 = vmatprep.subr.bf16.mxu0 0
        %2258 = vmatpush2.bf16.msra.mxu0 %v2205
        %2259 = vmatprep.subr.bf16.mxu0 0
        %2260 = vmatpush2.bf16.msra.mxu0 %v2204
        %2261 = vmatprep.subr.bf16.mxu0 0
        %2262 = vmatpush2.bf16.msra.mxu0 %v2203
        %2263 = vmatprep.subr.bf16.mxu0 0
        %2264 = vmatpush2.bf16.msra.mxu0 %v2202
        %2265 = vmatprep.subr.bf16.mxu0 0
        %2266 = vmatpush2.bf16.msra.mxu0 %v2201
        %2267 = vmatprep.subr.bf16.mxu0 0
        %2268 = vmatpush2.bf16.msra.mxu0 %v2200
        %2269 = vmatprep.subr.bf16.mxu0 0
        %2270 = vmatpush2.bf16.msra.mxu0 %v2199
        %2271 = vmatprep.mubr.bf16.mxu0 %v2015
        %2272 = vmatmul.mubr.bf16.gmra.mxu0 %v1991
        %v2273 = vpop.f32.mrf.mxu0
        %v2274 = vadd.f32 0.0, %v2273
        %v2275 = vpop.f32.mrf.mxu0
        %v2276 = vpop.f32.mrf.mxu0
        %v2277 = vadd.f32 0.0, %v2276
        %v2278 = vpop.f32.mrf.mxu0
        %2279 = vmatprep.mubr.bf16.mxu0 %v2016
        %2280 = vmatmul.mubr.bf16.gmra.mxu0 %v1992
        %v2281 = vpop.f32.mrf.mxu0
        %v2282 = vadd.f32 0.0, %v2281
        %v2283 = vpop.f32.mrf.mxu0
        %v2284 = vpop.f32.mrf.mxu0
        %v2285 = vadd.f32 0.0, %v2284
        %v2286 = vpop.f32.mrf.mxu0
        %2287 = vmatprep.mubr.bf16.mxu0 %v2017
        %2288 = vmatmul.mubr.bf16.gmra.mxu0 %v1993
        %v2289 = vpop.f32.mrf.mxu0
        %v2290 = vadd.f32 0.0, %v2289
        %v2291 = vpop.f32.mrf.mxu0
        %v2292 = vpop.f32.mrf.mxu0
        %v2293 = vadd.f32 0.0, %v2292
        %v2294 = vpop.f32.mrf.mxu0
        %2295 = vmatprep.mubr.bf16.mxu0 %v2018
        %2296 = vmatmul.mubr.bf16.gmra.mxu0 %v1994
        %v2297 = vpop.f32.mrf.mxu0
        %v2298 = vadd.f32 0.0, %v2297
        %v2299 = vpop.f32.mrf.mxu0
        %v2300 = vpop.f32.mrf.mxu0
        %v2301 = vadd.f32 0.0, %v2300
        %v2302 = vpop.f32.mrf.mxu0
        %2303 = vmatprep.mubr.bf16.mxu0 %v2019
        %2304 = vmatmul.mubr.bf16.gmra.mxu0 %v1995
        %v2305 = vpop.f32.mrf.mxu0
        %v2306 = vadd.f32 0.0, %v2305
        %v2307 = vpop.f32.mrf.mxu0
        %v2308 = vpop.f32.mrf.mxu0
        %v2309 = vadd.f32 0.0, %v2308
        %v2310 = vpop.f32.mrf.mxu0
        %2311 = vmatprep.mubr.bf16.mxu0 %v2020
        %2312 = vmatmul.mubr.bf16.gmra.mxu0 %v1996
        %v2313 = vpop.f32.mrf.mxu0
        %v2314 = vadd.f32 0.0, %v2313
        %v2315 = vpop.f32.mrf.mxu0
        %v2316 = vpop.f32.mrf.mxu0
        %v2317 = vadd.f32 0.0, %v2316
        %v2318 = vpop.f32.mrf.mxu0
        %2319 = vmatprep.mubr.bf16.mxu0 %v2021
        %2320 = vmatmul.mubr.bf16.gmra.mxu0 %v1997
        %v2321 = vpop.f32.mrf.mxu0
        %v2322 = vadd.f32 0.0, %v2321
        %v2323 = vpop.f32.mrf.mxu0
        %v2324 = vpop.f32.mrf.mxu0
        %v2325 = vadd.f32 0.0, %v2324
        %v2326 = vpop.f32.mrf.mxu0
        %2327 = vmatprep.mubr.bf16.mxu0 %v2022
        %2328 = vmatmul.mubr.bf16.gmra.mxu0 %v1998
        %v2329 = vpop.f32.mrf.mxu0
        %v2330 = vadd.f32 0.0, %v2329
        %v2331 = vpop.f32.mrf.mxu0
        %v2332 = vpop.f32.mrf.mxu0
        %v2333 = vadd.f32 0.0, %v2332
        %v2334 = vpop.f32.mrf.mxu0
        %2335 = vdwg.mxu0
        %2336 = vmatprep.subr.bf16.mxu0 0
        %2337 = vmatpush1.bf16.msra.mxu0 %v2214
        %2338 = vmatprep.subr.bf16.mxu0 0
        %2339 = vmatpush1.bf16.msra.mxu0 %v2213
        %2340 = vmatprep.subr.bf16.mxu0 0
        %2341 = vmatpush1.bf16.msra.mxu0 %v2212
        %2342 = vmatprep.subr.bf16.mxu0 0
        %2343 = vmatpush1.bf16.msra.mxu0 %v2211
        %2344 = vmatprep.subr.bf16.mxu0 0
        %2345 = vmatpush1.bf16.msra.mxu0 %v2210
        %2346 = vmatprep.subr.bf16.mxu0 0
        %2347 = vmatpush1.bf16.msra.mxu0 %v2209
        %2348 = vmatprep.subr.bf16.mxu0 0
        %2349 = vmatpush1.bf16.msra.mxu0 %v2208
        %2350 = vmatprep.subr.bf16.mxu0 0
        %2351 = vmatpush1.bf16.msra.mxu0 %v2207
        %2352 = vmatprep.subr.bf16.mxu0 0
        %2353 = vmatpush2.bf16.msra.mxu0 0
        %2354 = vmatprep.subr.bf16.mxu0 0
        %2355 = vmatpush2.bf16.msra.mxu0 0
        %2356 = vmatprep.subr.bf16.mxu0 0
        %2357 = vmatpush2.bf16.msra.mxu0 0
        %2358 = vmatprep.subr.bf16.mxu0 0
        %2359 = vmatpush2.bf16.msra.mxu0 0
        %2360 = vmatprep.subr.bf16.mxu0 0
        %2361 = vmatpush2.bf16.msra.mxu0 0
        %2362 = vmatprep.subr.bf16.mxu0 0
        %2363 = vmatpush2.bf16.msra.mxu0 0
        %2364 = vmatprep.subr.bf16.mxu0 0
        %2365 = vmatpush2.bf16.msra.mxu0 0
        %2366 = vmatprep.subr.bf16.mxu0 0
        %2367 = vmatpush2.bf16.msra.mxu0 0
        %2368 = vmatprep.mubr.bf16.mxu0 0
        %2369 = vmatmul.mubr.bf16.gmra.mxu0 %v2039
        %v2370 = vpop.f32.mrf.mxu0
        %v2371 = vadd.f32 %v2274, %v2370
        %v2372 = vpop.f32.mrf.mxu0
        %v2373 = vpop.f32.mrf.mxu0
        %v2374 = vadd.f32 %v2277, %v2373
        %v2375 = vpop.f32.mrf.mxu0
        %2376 = vmatprep.mubr.bf16.mxu0 0
        %2377 = vmatmul.mubr.bf16.gmra.mxu0 %v2040
        %v2378 = vpop.f32.mrf.mxu0
        %v2379 = vadd.f32 %v2282, %v2378
        %v2380 = vpop.f32.mrf.mxu0
        %v2381 = vpop.f32.mrf.mxu0
        %v2382 = vadd.f32 %v2285, %v2381
        %v2383 = vpop.f32.mrf.mxu0
        %2384 = vmatprep.mubr.bf16.mxu0 0
        %2385 = vmatmul.mubr.bf16.gmra.mxu0 %v2041
        %v2386 = vpop.f32.mrf.mxu0
        %v2387 = vadd.f32 %v2290, %v2386
        %v2388 = vpop.f32.mrf.mxu0
        %v2389 = vpop.f32.mrf.mxu0
        %v2390 = vadd.f32 %v2293, %v2389
        %v2391 = vpop.f32.mrf.mxu0
        %2392 = vmatprep.mubr.bf16.mxu0 0
        %2393 = vmatmul.mubr.bf16.gmra.mxu0 %v2042
        %v2394 = vpop.f32.mrf.mxu0
        %v2395 = vadd.f32 %v2298, %v2394
        %v2396 = vpop.f32.mrf.mxu0
        %v2397 = vpop.f32.mrf.mxu0
        %v2398 = vadd.f32 %v2301, %v2397
        %v2399 = vpop.f32.mrf.mxu0
        %2400 = vmatprep.mubr.bf16.mxu0 0
        %2401 = vmatmul.mubr.bf16.gmra.mxu0 %v2043
        %v2402 = vpop.f32.mrf.mxu0
        %v2403 = vadd.f32 %v2306, %v2402
        %v2404 = vpop.f32.mrf.mxu0
        %v2405 = vpop.f32.mrf.mxu0
        %v2406 = vadd.f32 %v2309, %v2405
        %v2407 = vpop.f32.mrf.mxu0
        %2408 = vmatprep.mubr.bf16.mxu0 0
        %2409 = vmatmul.mubr.bf16.gmra.mxu0 %v2044
        %v2410 = vpop.f32.mrf.mxu0
        %v2411 = vadd.f32 %v2314, %v2410
        %v2412 = vpop.f32.mrf.mxu0
        %v2413 = vpop.f32.mrf.mxu0
        %v2414 = vadd.f32 %v2317, %v2413
        %v2415 = vpop.f32.mrf.mxu0
        %2416 = vmatprep.mubr.bf16.mxu0 0
        %2417 = vmatmul.mubr.bf16.gmra.mxu0 %v2045
        %v2418 = vpop.f32.mrf.mxu0
        %v2419 = vadd.f32 %v2322, %v2418
        %v2420 = vpop.f32.mrf.mxu0
        %v2421 = vpop.f32.mrf.mxu0
        %v2422 = vadd.f32 %v2325, %v2421
        %v2423 = vpop.f32.mrf.mxu0
        %2424 = vmatprep.mubr.bf16.mxu0 0
        %2425 = vmatmul.mubr.bf16.gmra.mxu0 %v2046
        %v2426 = vpop.f32.mrf.mxu0
        %v2427 = vadd.f32 %v2330, %v2426
        %v2428 = vpop.f32.mrf.mxu0
        %v2429 = vpop.f32.mrf.mxu0
        %v2430 = vadd.f32 %v2333, %v2429
        %v2431 = vpop.f32.mrf.mxu0
        %2432 = vdwg.mxu0
        %v2481 = vunpack.c.l.b16 %v1927
        %v2482 = vunpack.c.l.b16 %v1928
        %v2483 = vunpack.c.l.b16 %v1929
        %v2484 = vunpack.c.l.b16 %v1930
        %v2485 = vunpack.c.l.b16 %v1931
        %v2486 = vunpack.c.l.b16 %v1932
        %v2487 = vunpack.c.l.b16 %v1933
        %v2488 = vunpack.c.l.b16 %v1934
        %v2489 = vunpack.c.l.b16 %v1935
        %v2490 = vunpack.c.l.b16 %v1936
        %v2491 = vunpack.c.l.b16 %v1937
        %v2492 = vunpack.c.l.b16 %v1938
        %v2493 = vunpack.c.l.b16 %v1939
        %v2494 = vunpack.c.l.b16 %v1940
        %v2495 = vunpack.c.l.b16 %v1941
        %v2496 = vunpack.c.l.b16 %v1942
        %v2497 = vunpack.c.l.b16 %v1943
        %v2498 = vunpack.c.l.b16 %v1944
        %v2499 = vunpack.c.l.b16 %v1945
        %v2500 = vunpack.c.l.b16 %v1946
        %v2501 = vunpack.c.l.b16 %v1947
        %v2502 = vunpack.c.l.b16 %v1948
        %v2503 = vunpack.c.l.b16 %v1949
        %v2504 = vunpack.c.l.b16 %v1950
        %v2505 = vunpack.c.l.b16 %v1951
        %v2506 = vunpack.c.l.b16 %v1952
        %v2507 = vunpack.c.l.b16 %v1953
        %v2508 = vunpack.c.l.b16 %v1954
        %v2509 = vunpack.c.l.b16 %v1955
        %v2510 = vunpack.c.l.b16 %v1956
        %v2511 = vunpack.c.l.b16 %v1957
        %v2512 = vunpack.c.l.b16 %v1958
        %v2513 = vunpack.c.l.b16 %v1959
        %v2514 = vunpack.c.l.b16 %v1960
        %v2515 = vunpack.c.l.b16 %v1961
        %v2516 = vunpack.c.l.b16 %v1962
        %v2517 = vunpack.c.l.b16 %v1963
        %v2518 = vunpack.c.l.b16 %v1964
        %v2519 = vunpack.c.l.b16 %v1965
        %v2520 = vunpack.c.l.b16 %v1966
        %v2521 = vunpack.c.l.b16 %v1967
        %v2522 = vunpack.c.l.b16 %v1968
        %v2523 = vunpack.c.l.b16 %v1969
        %v2524 = vunpack.c.l.b16 %v1970
        %v2525 = vunpack.c.l.b16 %v1971
        %v2526 = vunpack.c.l.b16 %v1972
        %v2527 = vunpack.c.l.b16 %v1973
        %v2528 = vunpack.c.l.b16 %v1974
        %v2529 = vpack.c.b16 %v2482, %v2481
        %v2530 = vpack.c.b16 %v2484, %v2483
        %v2531 = vpack.c.b16 %v2486, %v2485
        %v2532 = vpack.c.b16 %v2488, %v2487
        %v2533 = vpack.c.b16 %v2490, %v2489
        %v2534 = vpack.c.b16 %v2492, %v2491
        %v2535 = vpack.c.b16 %v2494, %v2493
        %v2536 = vpack.c.b16 %v2496, %v2495
        %v2537 = vpack.c.b16 %v2498, %v2497
        %v2538 = vpack.c.b16 %v2500, %v2499
        %v2539 = vpack.c.b16 %v2502, %v2501
        %v2540 = vpack.c.b16 %v2504, %v2503
        %v2541 = vpack.c.b16 %v2506, %v2505
        %v2542 = vpack.c.b16 %v2508, %v2507
        %v2543 = vpack.c.b16 %v2510, %v2509
        %v2544 = vpack.c.b16 %v2512, %v2511
        %v2545 = vpack.c.b16 %v2514, %v2513
        %v2546 = vpack.c.b16 %v2516, %v2515
        %v2547 = vpack.c.b16 %v2518, %v2517
        %v2548 = vpack.c.b16 %v2520, %v2519
        %v2549 = vpack.c.b16 %v2522, %v2521
        %v2550 = vpack.c.b16 %v2524, %v2523
        %v2551 = vpack.c.b16 %v2526, %v2525
        %v2552 = vpack.c.b16 %v2528, %v2527
        %2577 = vmatprep.subr.bf16.mxu0 0
        %2578 = vmatpush1.bf16.msra.mxu0 %v2536
        %2579 = vmatprep.subr.bf16.mxu0 0
        %2580 = vmatpush1.bf16.msra.mxu0 %v2535
        %2581 = vmatprep.subr.bf16.mxu0 0
        %2582 = vmatpush1.bf16.msra.mxu0 %v2534
        %2583 = vmatprep.subr.bf16.mxu0 0
        %2584 = vmatpush1.bf16.msra.mxu0 %v2533
        %2585 = vmatprep.subr.bf16.mxu0 0
        %2586 = vmatpush1.bf16.msra.mxu0 %v2532
        %2587 = vmatprep.subr.bf16.mxu0 0
        %2588 = vmatpush1.bf16.msra.mxu0 %v2531
        %2589 = vmatprep.subr.bf16.mxu0 0
        %2590 = vmatpush1.bf16.msra.mxu0 %v2530
        %2591 = vmatprep.subr.bf16.mxu0 0
        %2592 = vmatpush1.bf16.msra.mxu0 %v2529
        %2593 = vmatprep.subr.bf16.mxu0 0
        %2594 = vmatpush2.bf16.msra.mxu0 %v2544
        %2595 = vmatprep.subr.bf16.mxu0 0
        %2596 = vmatpush2.bf16.msra.mxu0 %v2543
        %2597 = vmatprep.subr.bf16.mxu0 0
        %2598 = vmatpush2.bf16.msra.mxu0 %v2542
        %2599 = vmatprep.subr.bf16.mxu0 0
        %2600 = vmatpush2.bf16.msra.mxu0 %v2541
        %2601 = vmatprep.subr.bf16.mxu0 0
        %2602 = vmatpush2.bf16.msra.mxu0 %v2540
        %2603 = vmatprep.subr.bf16.mxu0 0
        %2604 = vmatpush2.bf16.msra.mxu0 %v2539
        %2605 = vmatprep.subr.bf16.mxu0 0
        %2606 = vmatpush2.bf16.msra.mxu0 %v2538
        %2607 = vmatprep.subr.bf16.mxu0 0
        %2608 = vmatpush2.bf16.msra.mxu0 %v2537
        %2609 = vmatprep.mubr.bf16.mxu0 %v1895
        %2610 = vmatmul.mubr.bf16.gmra.mxu0 %v1871
        %v2611 = vpop.f32.mrf.mxu0
        %v2612 = vadd.f32 %v2371, %v2611
        %v2613 = vpop.f32.mrf.mxu0
        %v2614 = vpop.f32.mrf.mxu0
        %v2615 = vadd.f32 %v2374, %v2614
        %v2616 = vpop.f32.mrf.mxu0
        %2617 = vmatprep.mubr.bf16.mxu0 %v1896
        %2618 = vmatmul.mubr.bf16.gmra.mxu0 %v1872
        %v2619 = vpop.f32.mrf.mxu0
        %v2620 = vadd.f32 %v2379, %v2619
        %v2621 = vpop.f32.mrf.mxu0
        %v2622 = vpop.f32.mrf.mxu0
        %v2623 = vadd.f32 %v2382, %v2622
        %v2624 = vpop.f32.mrf.mxu0
        %2625 = vmatprep.mubr.bf16.mxu0 %v1897
        %2626 = vmatmul.mubr.bf16.gmra.mxu0 %v1873
        %v2627 = vpop.f32.mrf.mxu0
        %v2628 = vadd.f32 %v2387, %v2627
        %v2629 = vpop.f32.mrf.mxu0
        %v2630 = vpop.f32.mrf.mxu0
        %v2631 = vadd.f32 %v2390, %v2630
        %v2632 = vpop.f32.mrf.mxu0
        %2633 = vmatprep.mubr.bf16.mxu0 %v1898
        %2634 = vmatmul.mubr.bf16.gmra.mxu0 %v1874
        %v2635 = vpop.f32.mrf.mxu0
        %v2636 = vadd.f32 %v2395, %v2635
        %v2637 = vpop.f32.mrf.mxu0
        %v2638 = vpop.f32.mrf.mxu0
        %v2639 = vadd.f32 %v2398, %v2638
        %v2640 = vpop.f32.mrf.mxu0
        %2641 = vmatprep.mubr.bf16.mxu0 %v1899
        %2642 = vmatmul.mubr.bf16.gmra.mxu0 %v1875
        %v2643 = vpop.f32.mrf.mxu0
        %v2644 = vadd.f32 %v2403, %v2643
        %v2645 = vpop.f32.mrf.mxu0
        %v2646 = vpop.f32.mrf.mxu0
        %v2647 = vadd.f32 %v2406, %v2646
        %v2648 = vpop.f32.mrf.mxu0
        %2649 = vmatprep.mubr.bf16.mxu0 %v1900
        %2650 = vmatmul.mubr.bf16.gmra.mxu0 %v1876
        %v2651 = vpop.f32.mrf.mxu0
        %v2652 = vadd.f32 %v2411, %v2651
        %v2653 = vpop.f32.mrf.mxu0
        %v2654 = vpop.f32.mrf.mxu0
        %v2655 = vadd.f32 %v2414, %v2654
        %v2656 = vpop.f32.mrf.mxu0
        %2657 = vmatprep.mubr.bf16.mxu0 %v1901
        %2658 = vmatmul.mubr.bf16.gmra.mxu0 %v1877
        %v2659 = vpop.f32.mrf.mxu0
        %v2660 = vadd.f32 %v2419, %v2659
        %v2661 = vpop.f32.mrf.mxu0
        %v2662 = vpop.f32.mrf.mxu0
        %v2663 = vadd.f32 %v2422, %v2662
        %v2664 = vpop.f32.mrf.mxu0
        %2665 = vmatprep.mubr.bf16.mxu0 %v1902
        %2666 = vmatmul.mubr.bf16.gmra.mxu0 %v1878
        %v2667 = vpop.f32.mrf.mxu0
        %v2668 = vadd.f32 %v2427, %v2667
        %v2669 = vpop.f32.mrf.mxu0
        %v2670 = vpop.f32.mrf.mxu0
        %v2671 = vadd.f32 %v2430, %v2670
        %v2672 = vpop.f32.mrf.mxu0
        %2673 = vdwg.mxu0
        %2674 = vmatprep.subr.bf16.mxu0 0
        %2675 = vmatpush1.bf16.msra.mxu0 %v2552
        %2676 = vmatprep.subr.bf16.mxu0 0
        %2677 = vmatpush1.bf16.msra.mxu0 %v2551
        %2678 = vmatprep.subr.bf16.mxu0 0
        %2679 = vmatpush1.bf16.msra.mxu0 %v2550
        %2680 = vmatprep.subr.bf16.mxu0 0
        %2681 = vmatpush1.bf16.msra.mxu0 %v2549
        %2682 = vmatprep.subr.bf16.mxu0 0
        %2683 = vmatpush1.bf16.msra.mxu0 %v2548
        %2684 = vmatprep.subr.bf16.mxu0 0
        %2685 = vmatpush1.bf16.msra.mxu0 %v2547
        %2686 = vmatprep.subr.bf16.mxu0 0
        %2687 = vmatpush1.bf16.msra.mxu0 %v2546
        %2688 = vmatprep.subr.bf16.mxu0 0
        %2689 = vmatpush1.bf16.msra.mxu0 %v2545
        %2690 = vmatprep.subr.bf16.mxu0 0
        %2691 = vmatpush2.bf16.msra.mxu0 0
        %2692 = vmatprep.subr.bf16.mxu0 0
        %2693 = vmatpush2.bf16.msra.mxu0 0
        %2694 = vmatprep.subr.bf16.mxu0 0
        %2695 = vmatpush2.bf16.msra.mxu0 0
        %2696 = vmatprep.subr.bf16.mxu0 0
        %2697 = vmatpush2.bf16.msra.mxu0 0
        %2698 = vmatprep.subr.bf16.mxu0 0
        %2699 = vmatpush2.bf16.msra.mxu0 0
        %2700 = vmatprep.subr.bf16.mxu0 0
        %2701 = vmatpush2.bf16.msra.mxu0 0
        %2702 = vmatprep.subr.bf16.mxu0 0
        %2703 = vmatpush2.bf16.msra.mxu0 0
        %2704 = vmatprep.subr.bf16.mxu0 0
        %2705 = vmatpush2.bf16.msra.mxu0 0
        %2706 = vmatprep.mubr.bf16.mxu0 0
        %2707 = vmatmul.mubr.bf16.gmra.mxu0 %v1919
        %v2708 = vpop.f32.mrf.mxu0
        %v2709 = vadd.f32 %v2612, %v2708
        %v2710 = vpop.f32.mrf.mxu0
        %v2711 = vpop.f32.mrf.mxu0
        %v2712 = vadd.f32 %v2615, %v2711
        %v2713 = vpop.f32.mrf.mxu0
        %2714 = vmatprep.mubr.bf16.mxu0 0
        %2715 = vmatmul.mubr.bf16.gmra.mxu0 %v1920
        %v2716 = vpop.f32.mrf.mxu0
        %v2717 = vadd.f32 %v2620, %v2716
        %v2718 = vpop.f32.mrf.mxu0
        %v2719 = vpop.f32.mrf.mxu0
        %v2720 = vadd.f32 %v2623, %v2719
        %v2721 = vpop.f32.mrf.mxu0
        %2722 = vmatprep.mubr.bf16.mxu0 0
        %2723 = vmatmul.mubr.bf16.gmra.mxu0 %v1921
        %v2724 = vpop.f32.mrf.mxu0
        %v2725 = vadd.f32 %v2628, %v2724
        %v2726 = vpop.f32.mrf.mxu0
        %v2727 = vpop.f32.mrf.mxu0
        %v2728 = vadd.f32 %v2631, %v2727
        %v2729 = vpop.f32.mrf.mxu0
        %2730 = vmatprep.mubr.bf16.mxu0 0
        %2731 = vmatmul.mubr.bf16.gmra.mxu0 %v1922
        %v2732 = vpop.f32.mrf.mxu0
        %v2733 = vadd.f32 %v2636, %v2732
        %v2734 = vpop.f32.mrf.mxu0
        %v2735 = vpop.f32.mrf.mxu0
        %v2736 = vadd.f32 %v2639, %v2735
        %v2737 = vpop.f32.mrf.mxu0
        %2738 = vmatprep.mubr.bf16.mxu0 0
        %2739 = vmatmul.mubr.bf16.gmra.mxu0 %v1923
        %v2740 = vpop.f32.mrf.mxu0
        %v2741 = vadd.f32 %v2644, %v2740
        %v2742 = vpop.f32.mrf.mxu0
        %v2743 = vpop.f32.mrf.mxu0
        %v2744 = vadd.f32 %v2647, %v2743
        %v2745 = vpop.f32.mrf.mxu0
        %2746 = vmatprep.mubr.bf16.mxu0 0
        %2747 = vmatmul.mubr.bf16.gmra.mxu0 %v1924
        %v2748 = vpop.f32.mrf.mxu0
        %v2749 = vadd.f32 %v2652, %v2748
        %v2750 = vpop.f32.mrf.mxu0
        %v2751 = vpop.f32.mrf.mxu0
        %v2752 = vadd.f32 %v2655, %v2751
        %v2753 = vpop.f32.mrf.mxu0
        %2754 = vmatprep.mubr.bf16.mxu0 0
        %2755 = vmatmul.mubr.bf16.gmra.mxu0 %v1925
        %v2756 = vpop.f32.mrf.mxu0
        %v2757 = vadd.f32 %v2660, %v2756
        %v2758 = vpop.f32.mrf.mxu0
        %v2759 = vpop.f32.mrf.mxu0
        %v2760 = vadd.f32 %v2663, %v2759
        %v2761 = vpop.f32.mrf.mxu0
        %2762 = vmatprep.mubr.bf16.mxu0 0
        %2763 = vmatmul.mubr.bf16.gmra.mxu0 %v1926
        %v2764 = vpop.f32.mrf.mxu0
        %v2765 = vadd.f32 %v2668, %v2764
        %v2766 = vpop.f32.mrf.mxu0
        %v2767 = vpop.f32.mrf.mxu0
        %v2768 = vadd.f32 %v2671, %v2767
        %v2769 = vpop.f32.mrf.mxu0
        %2770 = vdwg.mxu0
        %v2771 = vld [vmem:[%s1332] sm:$0xff]
        %v2772 = vld [vmem:[%s1332 + $0x10] sm:$0xff]
        %v2773 = vld [vmem:[%s1332 + $0x20] sm:$0xff]
        %v2774 = vld [vmem:[%s1332 + $0x30] sm:$0xff]
        %v2775 = vld [vmem:[%s1332 + $0x40] sm:$0xff]
        %v2776 = vld [vmem:[%s1332 + $0x50] sm:$0xff]
        %v2777 = vld [vmem:[%s1332 + $0x60] sm:$0xff]
        %v2778 = vld [vmem:[%s1332 + $0x70] sm:$0xff]
        %v2779 = vld [vmem:[%s1332 + $0x80] sm:$0xff]
        %v2780 = vld [vmem:[%s1332 + $0x90] sm:$0xff]
        %v2781 = vld [vmem:[%s1332 + $0xa0] sm:$0xff]
        %v2782 = vld [vmem:[%s1332 + $0xb0] sm:$0xff]
        %v2783 = vld [vmem:[%s1332 + $0xc0] sm:$0xff]
        %v2784 = vld [vmem:[%s1332 + $0xd0] sm:$0xff]
        %v2785 = vld [vmem:[%s1332 + $0xe0] sm:$0xff]
        %v2786 = vld [vmem:[%s1332 + $0xf0] sm:$0xff]
        %v2787 = vpack.c.bf16 %v2772, %v2771
        %v2788 = vpack.c.bf16 %v2774, %v2773
        %v2789 = vpack.c.bf16 %v2776, %v2775
        %v2790 = vpack.c.bf16 %v2778, %v2777
        %v2791 = vpack.c.bf16 %v2780, %v2779
        %v2792 = vpack.c.bf16 %v2782, %v2781
        %v2793 = vpack.c.bf16 %v2784, %v2783
        %v2794 = vpack.c.bf16 %v2786, %v2785
        %v2795 = vld [vmem:[%s1307 + $0x1] sm:$0xff]
        %v2796 = vld [vmem:[%s1307 + $0x11] sm:$0xff]
        %v2797 = vld [vmem:[%s1307 + $0x21] sm:$0xff]
        %v2798 = vld [vmem:[%s1307 + $0x31] sm:$0xff]
        %v2799 = vld [vmem:[%s1307 + $0x41] sm:$0xff]
        %v2800 = vld [vmem:[%s1307 + $0x51] sm:$0xff]
        %v2801 = vld [vmem:[%s1307 + $0x61] sm:$0xff]
        %v2802 = vld [vmem:[%s1307 + $0x71] sm:$0xff]
        %v2803 = vld [vmem:[%s1307 + $0x81] sm:$0xff]
        %v2804 = vld [vmem:[%s1307 + $0x91] sm:$0xff]
        %v2805 = vld [vmem:[%s1307 + $0xa1] sm:$0xff]
        %v2806 = vld [vmem:[%s1307 + $0xb1] sm:$0xff]
        %v2807 = vld [vmem:[%s1307 + $0xc1] sm:$0xff]
        %v2808 = vld [vmem:[%s1307 + $0xd1] sm:$0xff]
        %v2809 = vld [vmem:[%s1307 + $0xe1] sm:$0xff]
        %v2810 = vld [vmem:[%s1307 + $0xf1] sm:$0xff]
        %v2811 = vpack.c.bf16 %v2796, %v2795
        %v2812 = vpack.c.bf16 %v2798, %v2797
        %v2813 = vpack.c.bf16 %v2800, %v2799
        %v2814 = vpack.c.bf16 %v2802, %v2801
        %v2815 = vpack.c.bf16 %v2804, %v2803
        %v2816 = vpack.c.bf16 %v2806, %v2805
        %v2817 = vpack.c.bf16 %v2808, %v2807
        %v2818 = vpack.c.bf16 %v2810, %v2809
        %v2819 = vld [vmem:[%s1332 + $0x1] sm:$0xff]
        %v2820 = vld [vmem:[%s1332 + $0x11] sm:$0xff]
        %v2821 = vld [vmem:[%s1332 + $0x21] sm:$0xff]
        %v2822 = vld [vmem:[%s1332 + $0x31] sm:$0xff]
        %v2823 = vld [vmem:[%s1332 + $0x41] sm:$0xff]
        %v2824 = vld [vmem:[%s1332 + $0x51] sm:$0xff]
        %v2825 = vld [vmem:[%s1332 + $0x61] sm:$0xff]
        %v2826 = vld [vmem:[%s1332 + $0x71] sm:$0xff]
        %v2827 = vld [vmem:[%s1332 + $0x81] sm:$0xff]
        %v2828 = vld [vmem:[%s1332 + $0x91] sm:$0xff]
        %v2829 = vld [vmem:[%s1332 + $0xa1] sm:$0xff]
        %v2830 = vld [vmem:[%s1332 + $0xb1] sm:$0xff]
        %v2831 = vld [vmem:[%s1332 + $0xc1] sm:$0xff]
        %v2832 = vld [vmem:[%s1332 + $0xd1] sm:$0xff]
        %v2833 = vld [vmem:[%s1332 + $0xe1] sm:$0xff]
        %v2834 = vld [vmem:[%s1332 + $0xf1] sm:$0xff]
        %v2835 = vpack.c.bf16 %v2820, %v2819
        %v2836 = vpack.c.bf16 %v2822, %v2821
        %v2837 = vpack.c.bf16 %v2824, %v2823
        %v2838 = vpack.c.bf16 %v2826, %v2825
        %v2839 = vpack.c.bf16 %v2828, %v2827
        %v2840 = vpack.c.bf16 %v2830, %v2829
        %v2841 = vpack.c.bf16 %v2832, %v2831
        %v2842 = vpack.c.bf16 %v2834, %v2833
        %v2843 = vld [vmem:[%s1381] sm:$0xf]
        %v2844 = vld [vmem:[%s1381 + $0x4] sm:$0xf]
        %v2845 = vld [vmem:[%s1381 + $0x8] sm:$0xf]
        %v2846 = vld [vmem:[%s1381 + $0xc] sm:$0xf]
        %v2847 = vld [vmem:[%s1381 + $0x10] sm:$0xf]
        %v2848 = vld [vmem:[%s1381 + $0x14] sm:$0xf]
        %v2849 = vld [vmem:[%s1381 + $0x18] sm:$0xf]
        %v2850 = vld [vmem:[%s1381 + $0x1c] sm:$0xf]
        %v2851 = vld [vmem:[%s1381 + $0x20] sm:$0xf]
        %v2852 = vld [vmem:[%s1381 + $0x24] sm:$0xf]
        %v2853 = vld [vmem:[%s1381 + $0x28] sm:$0xf]
        %v2854 = vld [vmem:[%s1381 + $0x2c] sm:$0xf]
        %v2855 = vld [vmem:[%s1381 + $0x30] sm:$0xf]
        %v2856 = vld [vmem:[%s1381 + $0x34] sm:$0xf]
        %v2857 = vld [vmem:[%s1381 + $0x38] sm:$0xf]
        %v2858 = vld [vmem:[%s1381 + $0x3c] sm:$0xf]
        %v2859 = vld [vmem:[%s1381 + $0x40] sm:$0xf]
        %v2860 = vld [vmem:[%s1381 + $0x44] sm:$0xf]
        %v2861 = vld [vmem:[%s1381 + $0x48] sm:$0xf]
        %v2862 = vld [vmem:[%s1381 + $0x4c] sm:$0xf]
        %v2863 = vld [vmem:[%s1381 + $0x50] sm:$0xf]
        %v2864 = vld [vmem:[%s1381 + $0x54] sm:$0xf]
        %v2865 = vld [vmem:[%s1381 + $0x58] sm:$0xf]
        %v2866 = vld [vmem:[%s1381 + $0x5c] sm:$0xf]
        %v2867 = vld [vmem:[%s1381 + $0x60] sm:$0xf]
        %v2868 = vld [vmem:[%s1381 + $0x64] sm:$0xf]
        %v2869 = vld [vmem:[%s1381 + $0x68] sm:$0xf]
        %v2870 = vld [vmem:[%s1381 + $0x6c] sm:$0xf]
        %v2871 = vld [vmem:[%s1381 + $0x70] sm:$0xf]
        %v2872 = vld [vmem:[%s1381 + $0x74] sm:$0xf]
        %v2873 = vld [vmem:[%s1381 + $0x78] sm:$0xf]
        %v2874 = vld [vmem:[%s1381 + $0x7c] sm:$0xf]
        %v2875 = vld [vmem:[%s1381 + $0x80] sm:$0xf]
        %v2876 = vld [vmem:[%s1381 + $0x84] sm:$0xf]
        %v2877 = vld [vmem:[%s1381 + $0x88] sm:$0xf]
        %v2878 = vld [vmem:[%s1381 + $0x8c] sm:$0xf]
        %v2879 = vld [vmem:[%s1381 + $0x90] sm:$0xf]
        %v2880 = vld [vmem:[%s1381 + $0x94] sm:$0xf]
        %v2881 = vld [vmem:[%s1381 + $0x98] sm:$0xf]
        %v2882 = vld [vmem:[%s1381 + $0x9c] sm:$0xf]
        %v2883 = vld [vmem:[%s1381 + $0xa0] sm:$0xf]
        %v2884 = vld [vmem:[%s1381 + $0xa4] sm:$0xf]
        %v2885 = vld [vmem:[%s1381 + $0xa8] sm:$0xf]
        %v2886 = vld [vmem:[%s1381 + $0xac] sm:$0xf]
        %v2887 = vld [vmem:[%s1381 + $0xb0] sm:$0xf]
        %v2888 = vld [vmem:[%s1381 + $0xb4] sm:$0xf]
        %v2889 = vld [vmem:[%s1381 + $0xb8] sm:$0xf]
        %v2890 = vld [vmem:[%s1381 + $0xbc] sm:$0xf]
        %v2939 = vunpack.c.l.b16 %v2843
        %v2940 = vunpack.c.l.b16 %v2844
        %v2941 = vunpack.c.l.b16 %v2845
        %v2942 = vunpack.c.l.b16 %v2846
        %v2943 = vunpack.c.l.b16 %v2847
        %v2944 = vunpack.c.l.b16 %v2848
        %v2945 = vunpack.c.l.b16 %v2849
        %v2946 = vunpack.c.l.b16 %v2850
        %v2947 = vunpack.c.l.b16 %v2851
        %v2948 = vunpack.c.l.b16 %v2852
        %v2949 = vunpack.c.l.b16 %v2853
        %v2950 = vunpack.c.l.b16 %v2854
        %v2951 = vunpack.c.l.b16 %v2855
        %v2952 = vunpack.c.l.b16 %v2856
        %v2953 = vunpack.c.l.b16 %v2857
        %v2954 = vunpack.c.l.b16 %v2858
        %v2955 = vunpack.c.l.b16 %v2859
        %v2956 = vunpack.c.l.b16 %v2860
        %v2957 = vunpack.c.l.b16 %v2861
        %v2958 = vunpack.c.l.b16 %v2862
        %v2959 = vunpack.c.l.b16 %v2863
        %v2960 = vunpack.c.l.b16 %v2864
        %v2961 = vunpack.c.l.b16 %v2865
        %v2962 = vunpack.c.l.b16 %v2866
        %v2963 = vunpack.c.l.b16 %v2867
        %v2964 = vunpack.c.l.b16 %v2868
        %v2965 = vunpack.c.l.b16 %v2869
        %v2966 = vunpack.c.l.b16 %v2870
        %v2967 = vunpack.c.l.b16 %v2871
        %v2968 = vunpack.c.l.b16 %v2872
        %v2969 = vunpack.c.l.b16 %v2873
        %v2970 = vunpack.c.l.b16 %v2874
        %v2971 = vunpack.c.l.b16 %v2875
        %v2972 = vunpack.c.l.b16 %v2876
        %v2973 = vunpack.c.l.b16 %v2877
        %v2974 = vunpack.c.l.b16 %v2878
        %v2975 = vunpack.c.l.b16 %v2879
        %v2976 = vunpack.c.l.b16 %v2880
        %v2977 = vunpack.c.l.b16 %v2881
        %v2978 = vunpack.c.l.b16 %v2882
        %v2979 = vunpack.c.l.b16 %v2883
        %v2980 = vunpack.c.l.b16 %v2884
        %v2981 = vunpack.c.l.b16 %v2885
        %v2982 = vunpack.c.l.b16 %v2886
        %v2983 = vunpack.c.l.b16 %v2887
        %v2984 = vunpack.c.l.b16 %v2888
        %v2985 = vunpack.c.l.b16 %v2889
        %v2986 = vunpack.c.l.b16 %v2890
        %v2987 = vpack.c.b16 %v2940, %v2939
        %v2988 = vpack.c.b16 %v2942, %v2941
        %v2989 = vpack.c.b16 %v2944, %v2943
        %v2990 = vpack.c.b16 %v2946, %v2945
        %v2991 = vpack.c.b16 %v2948, %v2947
        %v2992 = vpack.c.b16 %v2950, %v2949
        %v2993 = vpack.c.b16 %v2952, %v2951
        %v2994 = vpack.c.b16 %v2954, %v2953
        %v2995 = vpack.c.b16 %v2956, %v2955
        %v2996 = vpack.c.b16 %v2958, %v2957
        %v2997 = vpack.c.b16 %v2960, %v2959
        %v2998 = vpack.c.b16 %v2962, %v2961
        %v2999 = vpack.c.b16 %v2964, %v2963
        %v3000 = vpack.c.b16 %v2966, %v2965
        %v3001 = vpack.c.b16 %v2968, %v2967
        %v3002 = vpack.c.b16 %v2970, %v2969
        %v3003 = vpack.c.b16 %v2972, %v2971
        %v3004 = vpack.c.b16 %v2974, %v2973
        %v3005 = vpack.c.b16 %v2976, %v2975
        %v3006 = vpack.c.b16 %v2978, %v2977
        %v3007 = vpack.c.b16 %v2980, %v2979
        %v3008 = vpack.c.b16 %v2982, %v2981
        %v3009 = vpack.c.b16 %v2984, %v2983
        %v3010 = vpack.c.b16 %v2986, %v2985
        %3035 = vmatprep.subr.bf16.mxu0 0
        %3036 = vmatpush1.bf16.msra.mxu0 %v2994
        %3037 = vmatprep.subr.bf16.mxu0 0
        %3038 = vmatpush1.bf16.msra.mxu0 %v2993
        %3039 = vmatprep.subr.bf16.mxu0 0
        %3040 = vmatpush1.bf16.msra.mxu0 %v2992
        %3041 = vmatprep.subr.bf16.mxu0 0
        %3042 = vmatpush1.bf16.msra.mxu0 %v2991
        %3043 = vmatprep.subr.bf16.mxu0 0
        %3044 = vmatpush1.bf16.msra.mxu0 %v2990
        %3045 = vmatprep.subr.bf16.mxu0 0
        %3046 = vmatpush1.bf16.msra.mxu0 %v2989
        %3047 = vmatprep.subr.bf16.mxu0 0
        %3048 = vmatpush1.bf16.msra.mxu0 %v2988
        %3049 = vmatprep.subr.bf16.mxu0 0
        %3050 = vmatpush1.bf16.msra.mxu0 %v2987
        %3051 = vmatprep.subr.bf16.mxu0 0
        %3052 = vmatpush2.bf16.msra.mxu0 %v3002
        %3053 = vmatprep.subr.bf16.mxu0 0
        %3054 = vmatpush2.bf16.msra.mxu0 %v3001
        %3055 = vmatprep.subr.bf16.mxu0 0
        %3056 = vmatpush2.bf16.msra.mxu0 %v3000
        %3057 = vmatprep.subr.bf16.mxu0 0
        %3058 = vmatpush2.bf16.msra.mxu0 %v2999
        %3059 = vmatprep.subr.bf16.mxu0 0
        %3060 = vmatpush2.bf16.msra.mxu0 %v2998
        %3061 = vmatprep.subr.bf16.mxu0 0
        %3062 = vmatpush2.bf16.msra.mxu0 %v2997
        %3063 = vmatprep.subr.bf16.mxu0 0
        %3064 = vmatpush2.bf16.msra.mxu0 %v2996
        %3065 = vmatprep.subr.bf16.mxu0 0
        %3066 = vmatpush2.bf16.msra.mxu0 %v2995
        %3067 = vmatprep.mubr.bf16.mxu0 %v2811
        %3068 = vmatmul.mubr.bf16.gmra.mxu0 %v2787
        %v3069 = vpop.f32.mrf.mxu0
        %v3070 = vadd.f32 0.0, %v3069
        %v3071 = vpop.f32.mrf.mxu0
        %v3072 = vpop.f32.mrf.mxu0
        %v3073 = vadd.f32 0.0, %v3072
        %v3074 = vpop.f32.mrf.mxu0
        %3075 = vmatprep.mubr.bf16.mxu0 %v2812
        %3076 = vmatmul.mubr.bf16.gmra.mxu0 %v2788
        %v3077 = vpop.f32.mrf.mxu0
        %v3078 = vadd.f32 0.0, %v3077
        %v3079 = vpop.f32.mrf.mxu0
        %v3080 = vpop.f32.mrf.mxu0
        %v3081 = vadd.f32 0.0, %v3080
        %v3082 = vpop.f32.mrf.mxu0
        %3083 = vmatprep.mubr.bf16.mxu0 %v2813
        %3084 = vmatmul.mubr.bf16.gmra.mxu0 %v2789
        %v3085 = vpop.f32.mrf.mxu0
        %v3086 = vadd.f32 0.0, %v3085
        %v3087 = vpop.f32.mrf.mxu0
        %v3088 = vpop.f32.mrf.mxu0
        %v3089 = vadd.f32 0.0, %v3088
        %v3090 = vpop.f32.mrf.mxu0
        %3091 = vmatprep.mubr.bf16.mxu0 %v2814
        %3092 = vmatmul.mubr.bf16.gmra.mxu0 %v2790
        %v3093 = vpop.f32.mrf.mxu0
        %v3094 = vadd.f32 0.0, %v3093
        %v3095 = vpop.f32.mrf.mxu0
        %v3096 = vpop.f32.mrf.mxu0
        %v3097 = vadd.f32 0.0, %v3096
        %v3098 = vpop.f32.mrf.mxu0
        %3099 = vmatprep.mubr.bf16.mxu0 %v2815
        %3100 = vmatmul.mubr.bf16.gmra.mxu0 %v2791
        %v3101 = vpop.f32.mrf.mxu0
        %v3102 = vadd.f32 0.0, %v3101
        %v3103 = vpop.f32.mrf.mxu0
        %v3104 = vpop.f32.mrf.mxu0
        %v3105 = vadd.f32 0.0, %v3104
        %v3106 = vpop.f32.mrf.mxu0
        %3107 = vmatprep.mubr.bf16.mxu0 %v2816
        %3108 = vmatmul.mubr.bf16.gmra.mxu0 %v2792
        %v3109 = vpop.f32.mrf.mxu0
        %v3110 = vadd.f32 0.0, %v3109
        %v3111 = vpop.f32.mrf.mxu0
        %v3112 = vpop.f32.mrf.mxu0
        %v3113 = vadd.f32 0.0, %v3112
        %v3114 = vpop.f32.mrf.mxu0
        %3115 = vmatprep.mubr.bf16.mxu0 %v2817
        %3116 = vmatmul.mubr.bf16.gmra.mxu0 %v2793
        %v3117 = vpop.f32.mrf.mxu0
        %v3118 = vadd.f32 0.0, %v3117
        %v3119 = vpop.f32.mrf.mxu0
        %v3120 = vpop.f32.mrf.mxu0
        %v3121 = vadd.f32 0.0, %v3120
        %v3122 = vpop.f32.mrf.mxu0
        %3123 = vmatprep.mubr.bf16.mxu0 %v2818
        %3124 = vmatmul.mubr.bf16.gmra.mxu0 %v2794
        %v3125 = vpop.f32.mrf.mxu0
        %v3126 = vadd.f32 0.0, %v3125
        %v3127 = vpop.f32.mrf.mxu0
        %v3128 = vpop.f32.mrf.mxu0
        %v3129 = vadd.f32 0.0, %v3128
        %v3130 = vpop.f32.mrf.mxu0
        %3131 = vdwg.mxu0
        %3132 = vmatprep.subr.bf16.mxu0 0
        %3133 = vmatpush1.bf16.msra.mxu0 %v3010
        %3134 = vmatprep.subr.bf16.mxu0 0
        %3135 = vmatpush1.bf16.msra.mxu0 %v3009
        %3136 = vmatprep.subr.bf16.mxu0 0
        %3137 = vmatpush1.bf16.msra.mxu0 %v3008
        %3138 = vmatprep.subr.bf16.mxu0 0
        %3139 = vmatpush1.bf16.msra.mxu0 %v3007
        %3140 = vmatprep.subr.bf16.mxu0 0
        %3141 = vmatpush1.bf16.msra.mxu0 %v3006
        %3142 = vmatprep.subr.bf16.mxu0 0
        %3143 = vmatpush1.bf16.msra.mxu0 %v3005
        %3144 = vmatprep.subr.bf16.mxu0 0
        %3145 = vmatpush1.bf16.msra.mxu0 %v3004
        %3146 = vmatprep.subr.bf16.mxu0 0
        %3147 = vmatpush1.bf16.msra.mxu0 %v3003
        %3148 = vmatprep.subr.bf16.mxu0 0
        %3149 = vmatpush2.bf16.msra.mxu0 0
        %3150 = vmatprep.subr.bf16.mxu0 0
        %3151 = vmatpush2.bf16.msra.mxu0 0
        %3152 = vmatprep.subr.bf16.mxu0 0
        %3153 = vmatpush2.bf16.msra.mxu0 0
        %3154 = vmatprep.subr.bf16.mxu0 0
        %3155 = vmatpush2.bf16.msra.mxu0 0
        %3156 = vmatprep.subr.bf16.mxu0 0
        %3157 = vmatpush2.bf16.msra.mxu0 0
        %3158 = vmatprep.subr.bf16.mxu0 0
        %3159 = vmatpush2.bf16.msra.mxu0 0
        %3160 = vmatprep.subr.bf16.mxu0 0
        %3161 = vmatpush2.bf16.msra.mxu0 0
        %3162 = vmatprep.subr.bf16.mxu0 0
        %3163 = vmatpush2.bf16.msra.mxu0 0
        %3164 = vmatprep.mubr.bf16.mxu0 0
        %3165 = vmatmul.mubr.bf16.gmra.mxu0 %v2835
        %v3166 = vpop.f32.mrf.mxu0
        %v3167 = vadd.f32 %v3070, %v3166
        %v3168 = vpop.f32.mrf.mxu0
        %v3169 = vpop.f32.mrf.mxu0
        %v3170 = vadd.f32 %v3073, %v3169
        %v3171 = vpop.f32.mrf.mxu0
        %3172 = vmatprep.mubr.bf16.mxu0 0
        %3173 = vmatmul.mubr.bf16.gmra.mxu0 %v2836
        %v3174 = vpop.f32.mrf.mxu0
        %v3175 = vadd.f32 %v3078, %v3174
        %v3176 = vpop.f32.mrf.mxu0
        %v3177 = vpop.f32.mrf.mxu0
        %v3178 = vadd.f32 %v3081, %v3177
        %v3179 = vpop.f32.mrf.mxu0
        %3180 = vmatprep.mubr.bf16.mxu0 0
        %3181 = vmatmul.mubr.bf16.gmra.mxu0 %v2837
        %v3182 = vpop.f32.mrf.mxu0
        %v3183 = vadd.f32 %v3086, %v3182
        %v3184 = vpop.f32.mrf.mxu0
        %v3185 = vpop.f32.mrf.mxu0
        %v3186 = vadd.f32 %v3089, %v3185
        %v3187 = vpop.f32.mrf.mxu0
        %3188 = vmatprep.mubr.bf16.mxu0 0
        %3189 = vmatmul.mubr.bf16.gmra.mxu0 %v2838
        %v3190 = vpop.f32.mrf.mxu0
        %v3191 = vadd.f32 %v3094, %v3190
        %v3192 = vpop.f32.mrf.mxu0
        %v3193 = vpop.f32.mrf.mxu0
        %v3194 = vadd.f32 %v3097, %v3193
        %v3195 = vpop.f32.mrf.mxu0
        %3196 = vmatprep.mubr.bf16.mxu0 0
        %3197 = vmatmul.mubr.bf16.gmra.mxu0 %v2839
        %v3198 = vpop.f32.mrf.mxu0
        %v3199 = vadd.f32 %v3102, %v3198
        %v3200 = vpop.f32.mrf.mxu0
        %v3201 = vpop.f32.mrf.mxu0
        %v3202 = vadd.f32 %v3105, %v3201
        %v3203 = vpop.f32.mrf.mxu0
        %3204 = vmatprep.mubr.bf16.mxu0 0
        %3205 = vmatmul.mubr.bf16.gmra.mxu0 %v2840
        %v3206 = vpop.f32.mrf.mxu0
        %v3207 = vadd.f32 %v3110, %v3206
        %v3208 = vpop.f32.mrf.mxu0
        %v3209 = vpop.f32.mrf.mxu0
        %v3210 = vadd.f32 %v3113, %v3209
        %v3211 = vpop.f32.mrf.mxu0
        %3212 = vmatprep.mubr.bf16.mxu0 0
        %3213 = vmatmul.mubr.bf16.gmra.mxu0 %v2841
        %v3214 = vpop.f32.mrf.mxu0
        %v3215 = vadd.f32 %v3118, %v3214
        %v3216 = vpop.f32.mrf.mxu0
        %v3217 = vpop.f32.mrf.mxu0
        %v3218 = vadd.f32 %v3121, %v3217
        %v3219 = vpop.f32.mrf.mxu0
        %3220 = vmatprep.mubr.bf16.mxu0 0
        %3221 = vmatmul.mubr.bf16.gmra.mxu0 %v2842
        %v3222 = vpop.f32.mrf.mxu0
        %v3223 = vadd.f32 %v3126, %v3222
        %v3224 = vpop.f32.mrf.mxu0
        %v3225 = vpop.f32.mrf.mxu0
        %v3226 = vadd.f32 %v3129, %v3225
        %v3227 = vpop.f32.mrf.mxu0
        %3228 = vdwg.mxu0
        %v3229 = vadd.f32 %v2709, %v3167
        %v3230 = vadd.f32 %v2712, %v3170
        %v3231 = vadd.f32 %v2717, %v3175
        %v3232 = vadd.f32 %v2720, %v3178
        %v3233 = vadd.f32 %v2725, %v3183
        %v3234 = vadd.f32 %v2728, %v3186
        %v3235 = vadd.f32 %v2733, %v3191
        %v3236 = vadd.f32 %v2736, %v3194
        %v3237 = vadd.f32 %v2741, %v3199
        %v3238 = vadd.f32 %v2744, %v3202
        %v3239 = vadd.f32 %v2749, %v3207
        %v3240 = vadd.f32 %v2752, %v3210
        %v3241 = vadd.f32 %v2757, %v3215
        %v3242 = vadd.f32 %v2760, %v3218
        %v3243 = vadd.f32 %v2765, %v3223
        %v3244 = vadd.f32 %v2768, %v3226
        %v3245 = vadd.f32 %v3229, %v1788
        %v3246 = vadd.f32 %v3230, %v1788
        %v3247 = vadd.f32 %v3231, %v1788
        %v3248 = vadd.f32 %v3232, %v1788
        %v3249 = vadd.f32 %v3233, %v1788
        %v3250 = vadd.f32 %v3234, %v1788
        %v3251 = vadd.f32 %v3235, %v1788
        %v3252 = vadd.f32 %v3236, %v1788
        %v3253 = vadd.f32 %v3237, %v1788
        %v3254 = vadd.f32 %v3238, %v1788
        %v3255 = vadd.f32 %v3239, %v1788
        %v3256 = vadd.f32 %v3240, %v1788
        %v3257 = vadd.f32 %v3241, %v1788
        %v3258 = vadd.f32 %v3242, %v1788
        %v3259 = vadd.f32 %v3243, %v1788
        %v3260 = vadd.f32 %v3244, %v1788
        %v3261 = vtanh.pop %v3245
        %v3262 = vtanh.pop %v3246
        %v3263 = vtanh.pop %v3247
        %v3264 = vtanh.pop %v3248
        %v3265 = vtanh.pop %v3249
        %v3266 = vtanh.pop %v3250
        %v3267 = vtanh.pop %v3251
        %v3268 = vtanh.pop %v3252
        %v3269 = vtanh.pop %v3253
        %v3270 = vtanh.pop %v3254
        %v3271 = vtanh.pop %v3255
        %v3272 = vtanh.pop %v3256
        %v3273 = vtanh.pop %v3257
        %v3274 = vtanh.pop %v3258
        %v3275 = vtanh.pop %v3259
        %v3276 = vtanh.pop %v3260
        %v3277 = vmax.f32 %v3261, 0.0
        %v3278 = vmax.f32 %v3262, 0.0
        %v3279 = vmax.f32 %v3263, 0.0
        %v3280 = vmax.f32 %v3264, 0.0
        %v3281 = vmax.f32 %v3265, 0.0
        %v3282 = vmax.f32 %v3266, 0.0
        %v3283 = vmax.f32 %v3267, 0.0
        %v3284 = vmax.f32 %v3268, 0.0
        %v3285 = vmax.f32 %v3269, 0.0
        %v3286 = vmax.f32 %v3270, 0.0
        %v3287 = vmax.f32 %v3271, 0.0
        %v3288 = vmax.f32 %v3272, 0.0
        %v3289 = vmax.f32 %v3273, 0.0
        %v3290 = vmax.f32 %v3274, 0.0
        %v3291 = vmax.f32 %v3275, 0.0
        %v3292 = vmax.f32 %v3276, 0.0
        %s3293 = scalar_lea.vmem [#allocation4], 16
        %3294 = vst [vmem:[%s3293 + $0x1] sm:$0xff] %v3277
        %3295 = vst [vmem:[%s3293 + $0x11] sm:$0xff] %v3278
        %3296 = vst [vmem:[%s3293 + $0x21] sm:$0xff] %v3279
        %3297 = vst [vmem:[%s3293 + $0x31] sm:$0xff] %v3280
        %3298 = vst [vmem:[%s3293 + $0x41] sm:$0xff] %v3281
        %3299 = vst [vmem:[%s3293 + $0x51] sm:$0xff] %v3282
        %3300 = vst [vmem:[%s3293 + $0x61] sm:$0xff] %v3283
        %3301 = vst [vmem:[%s3293 + $0x71] sm:$0xff] %v3284
        %3302 = vst [vmem:[%s3293 + $0x81] sm:$0xff] %v3285
        %3303 = vst [vmem:[%s3293 + $0x91] sm:$0xff] %v3286
        %3304 = vst [vmem:[%s3293 + $0xa1] sm:$0xff] %v3287
        %3305 = vst [vmem:[%s3293 + $0xb1] sm:$0xff] %v3288
        %3306 = vst [vmem:[%s3293 + $0xc1] sm:$0xff] %v3289
        %3307 = vst [vmem:[%s3293 + $0xd1] sm:$0xff] %v3290
        %3308 = vst [vmem:[%s3293 + $0xe1] sm:$0xff] %v3291
        %3309 = vst [vmem:[%s3293 + $0xf1] sm:$0xff] %v3292
        %v3310 = vld [vmem:[#allocation4] sm:$0xff]
        %v3311 = vld [vmem:[#allocation4 + $0x20] sm:$0xff]
        %v3312 = vld [vmem:[#allocation4 + $0x40] sm:$0xff]
        %v3313 = vld [vmem:[#allocation4 + $0x60] sm:$0xff]
        %v3314 = vld [vmem:[#allocation4 + $0x80] sm:$0xff]
        %v3315 = vld [vmem:[#allocation4 + $0xa0] sm:$0xff]
        %v3316 = vld [vmem:[#allocation4 + $0xc0] sm:$0xff]
        %v3317 = vld [vmem:[#allocation4 + $0xe0] sm:$0xff]
        %v3318 = vpack.c.bf16 %v3311, %v3310
        %v3319 = vpack.c.bf16 %v3313, %v3312
        %v3320 = vpack.c.bf16 %v3315, %v3314
        %v3321 = vpack.c.bf16 %v3317, %v3316
        %v3322 = vld [vmem:[#allocation5] sm:$0xff]
        %v3323 = vld [vmem:[#allocation5 + $0x10] sm:$0xff]
        %v3324 = vld [vmem:[#allocation5 + $0x20] sm:$0xff]
        %v3325 = vld [vmem:[#allocation5 + $0x30] sm:$0xff]
        %v3326 = vld [vmem:[#allocation5 + $0x40] sm:$0xff]
        %v3327 = vld [vmem:[#allocation5 + $0x50] sm:$0xff]
        %v3328 = vld [vmem:[#allocation5 + $0x60] sm:$0xff]
        %v3329 = vld [vmem:[#allocation5 + $0x70] sm:$0xff]
        %v3330 = vpack.c.bf16 %v3323, %v3322
        %v3331 = vpack.c.bf16 %v3325, %v3324
        %v3332 = vpack.c.bf16 %v3327, %v3326
        %v3333 = vpack.c.bf16 %v3329, %v3328
        %v3334 = vld [vmem:[#allocation4 + $0x1] sm:$0xff]
        %v3335 = vld [vmem:[#allocation4 + $0x21] sm:$0xff]
        %v3336 = vld [vmem:[#allocation4 + $0x41] sm:$0xff]
        %v3337 = vld [vmem:[#allocation4 + $0x61] sm:$0xff]
        %v3338 = vld [vmem:[#allocation4 + $0x81] sm:$0xff]
        %v3339 = vld [vmem:[#allocation4 + $0xa1] sm:$0xff]
        %v3340 = vld [vmem:[#allocation4 + $0xc1] sm:$0xff]
        %v3341 = vld [vmem:[#allocation4 + $0xe1] sm:$0xff]
        %v3342 = vpack.c.bf16 %v3335, %v3334
        %v3343 = vpack.c.bf16 %v3337, %v3336
        %v3344 = vpack.c.bf16 %v3339, %v3338
        %v3345 = vpack.c.bf16 %v3341, %v3340
        %v3346 = vld [vmem:[%s3] sm:$0xf]
        %v3347 = vld [vmem:[%s3 + $0x4] sm:$0xf]
        %v3348 = vld [vmem:[%s3 + $0x8] sm:$0xf]
        %v3349 = vld [vmem:[%s3 + $0xc] sm:$0xf]
        %v3350 = vld [vmem:[%s3 + $0x10] sm:$0xf]
        %v3351 = vld [vmem:[%s3 + $0x14] sm:$0xf]
        %v3352 = vld [vmem:[%s3 + $0x18] sm:$0xf]
        %v3353 = vld [vmem:[%s3 + $0x1c] sm:$0xf]
        %v3354 = vld [vmem:[%s3 + $0x20] sm:$0xf]
        %v3355 = vld [vmem:[%s3 + $0x24] sm:$0xf]
        %v3356 = vld [vmem:[%s3 + $0x28] sm:$0xf]
        %v3357 = vld [vmem:[%s3 + $0x2c] sm:$0xf]
        %v3358 = vld [vmem:[%s3 + $0x30] sm:$0xf]
        %v3359 = vld [vmem:[%s3 + $0x34] sm:$0xf]
        %v3360 = vld [vmem:[%s3 + $0x38] sm:$0xf]
        %v3361 = vld [vmem:[%s3 + $0x3c] sm:$0xf]
        %v3362 = vld [vmem:[%s3 + $0x40] sm:$0xf]
        %v3363 = vld [vmem:[%s3 + $0x44] sm:$0xf]
        %v3364 = vld [vmem:[%s3 + $0x48] sm:$0xf]
        %v3365 = vld [vmem:[%s3 + $0x4c] sm:$0xf]
        %v3366 = vld [vmem:[%s3 + $0x50] sm:$0xf]
        %v3367 = vld [vmem:[%s3 + $0x54] sm:$0xf]
        %v3368 = vld [vmem:[%s3 + $0x58] sm:$0xf]
        %v3369 = vld [vmem:[%s3 + $0x5c] sm:$0xf]
        %v3370 = vld [vmem:[%s3 + $0x60] sm:$0xf]
        %v3371 = vld [vmem:[%s3 + $0x64] sm:$0xf]
        %v3372 = vld [vmem:[%s3 + $0x68] sm:$0xf]
        %v3373 = vld [vmem:[%s3 + $0x6c] sm:$0xf]
        %v3374 = vld [vmem:[%s3 + $0x70] sm:$0xf]
        %v3375 = vld [vmem:[%s3 + $0x74] sm:$0xf]
        %v3376 = vld [vmem:[%s3 + $0x78] sm:$0xf]
        %v3377 = vld [vmem:[%s3 + $0x7c] sm:$0xf]
        %v3378 = vld [vmem:[%s3 + $0x80] sm:$0xf]
        %v3379 = vld [vmem:[%s3 + $0x84] sm:$0xf]
        %v3380 = vld [vmem:[%s3 + $0x88] sm:$0xf]
        %v3381 = vld [vmem:[%s3 + $0x8c] sm:$0xf]
        %v3382 = vld [vmem:[%s3 + $0x90] sm:$0xf]
        %v3383 = vld [vmem:[%s3 + $0x94] sm:$0xf]
        %v3384 = vld [vmem:[%s3 + $0x98] sm:$0xf]
        %v3385 = vld [vmem:[%s3 + $0x9c] sm:$0xf]
        %v3386 = vld [vmem:[%s3 + $0xa0] sm:$0xf]
        %v3387 = vld [vmem:[%s3 + $0xa4] sm:$0xf]
        %v3388 = vld [vmem:[%s3 + $0xa8] sm:$0xf]
        %v3389 = vld [vmem:[%s3 + $0xac] sm:$0xf]
        %v3390 = vld [vmem:[%s3 + $0xb0] sm:$0xf]
        %v3391 = vld [vmem:[%s3 + $0xb4] sm:$0xf]
        %v3392 = vld [vmem:[%s3 + $0xb8] sm:$0xf]
        %v3393 = vld [vmem:[%s3 + $0xbc] sm:$0xf]
        %v3394 = vld [vmem:[%s3293] sm:$0xff]
        %v3395 = vld [vmem:[%s3293 + $0x20] sm:$0xff]
        %v3396 = vld [vmem:[%s3293 + $0x40] sm:$0xff]
        %v3397 = vld [vmem:[%s3293 + $0x60] sm:$0xff]
        %v3398 = vld [vmem:[%s3293 + $0x80] sm:$0xff]
        %v3399 = vld [vmem:[%s3293 + $0xa0] sm:$0xff]
        %v3400 = vld [vmem:[%s3293 + $0xc0] sm:$0xff]
        %v3401 = vld [vmem:[%s3293 + $0xe0] sm:$0xff]
        %v3402 = vpack.c.bf16 %v3395, %v3394
        %v3403 = vpack.c.bf16 %v3397, %v3396
        %v3404 = vpack.c.bf16 %v3399, %v3398
        %v3405 = vpack.c.bf16 %v3401, %v3400
        %v3406 = vld [vmem:[%s1838] sm:$0xff]
        %v3407 = vld [vmem:[%s1838 + $0x10] sm:$0xff]
        %v3408 = vld [vmem:[%s1838 + $0x20] sm:$0xff]
        %v3409 = vld [vmem:[%s1838 + $0x30] sm:$0xff]
        %v3410 = vld [vmem:[%s1838 + $0x40] sm:$0xff]
        %v3411 = vld [vmem:[%s1838 + $0x50] sm:$0xff]
        %v3412 = vld [vmem:[%s1838 + $0x60] sm:$0xff]
        %v3413 = vld [vmem:[%s1838 + $0x70] sm:$0xff]
        %v3414 = vpack.c.bf16 %v3407, %v3406
        %v3415 = vpack.c.bf16 %v3409, %v3408
        %v3416 = vpack.c.bf16 %v3411, %v3410
        %v3417 = vpack.c.bf16 %v3413, %v3412
        %v3418 = vld [vmem:[%s3293 + $0x1] sm:$0xff]
        %v3419 = vld [vmem:[%s3293 + $0x21] sm:$0xff]
        %v3420 = vld [vmem:[%s3293 + $0x41] sm:$0xff]
        %v3421 = vld [vmem:[%s3293 + $0x61] sm:$0xff]
        %v3422 = vld [vmem:[%s3293 + $0x81] sm:$0xff]
        %v3423 = vld [vmem:[%s3293 + $0xa1] sm:$0xff]
        %v3424 = vld [vmem:[%s3293 + $0xc1] sm:$0xff]
        %v3425 = vld [vmem:[%s3293 + $0xe1] sm:$0xff]
        %v3426 = vpack.c.bf16 %v3419, %v3418
        %v3427 = vpack.c.bf16 %v3421, %v3420
        %v3428 = vpack.c.bf16 %v3423, %v3422
        %v3429 = vpack.c.bf16 %v3425, %v3424
        %s3430 = scalar_lea.vmem %s3, 192
        %v3431 = vld [vmem:[%s3430] sm:$0xf]
        %v3432 = vld [vmem:[%s3430 + $0x4] sm:$0xf]
        %v3433 = vld [vmem:[%s3430 + $0x8] sm:$0xf]
        %v3434 = vld [vmem:[%s3430 + $0xc] sm:$0xf]
        %v3435 = vld [vmem:[%s3430 + $0x10] sm:$0xf]
        %v3436 = vld [vmem:[%s3430 + $0x14] sm:$0xf]
        %v3437 = vld [vmem:[%s3430 + $0x18] sm:$0xf]
        %v3438 = vld [vmem:[%s3430 + $0x1c] sm:$0xf]
        %v3439 = vld [vmem:[%s3430 + $0x20] sm:$0xf]
        %v3440 = vld [vmem:[%s3430 + $0x24] sm:$0xf]
        %v3441 = vld [vmem:[%s3430 + $0x28] sm:$0xf]
        %v3442 = vld [vmem:[%s3430 + $0x2c] sm:$0xf]
        %v3443 = vld [vmem:[%s3430 + $0x30] sm:$0xf]
        %v3444 = vld [vmem:[%s3430 + $0x34] sm:$0xf]
        %v3445 = vld [vmem:[%s3430 + $0x38] sm:$0xf]
        %v3446 = vld [vmem:[%s3430 + $0x3c] sm:$0xf]
        %v3447 = vld [vmem:[%s3430 + $0x40] sm:$0xf]
        %v3448 = vld [vmem:[%s3430 + $0x44] sm:$0xf]
        %v3449 = vld [vmem:[%s3430 + $0x48] sm:$0xf]
        %v3450 = vld [vmem:[%s3430 + $0x4c] sm:$0xf]
        %v3451 = vld [vmem:[%s3430 + $0x50] sm:$0xf]
        %v3452 = vld [vmem:[%s3430 + $0x54] sm:$0xf]
        %v3453 = vld [vmem:[%s3430 + $0x58] sm:$0xf]
        %v3454 = vld [vmem:[%s3430 + $0x5c] sm:$0xf]
        %v3455 = vld [vmem:[%s3430 + $0x60] sm:$0xf]
        %v3456 = vld [vmem:[%s3430 + $0x64] sm:$0xf]
        %v3457 = vld [vmem:[%s3430 + $0x68] sm:$0xf]
        %v3458 = vld [vmem:[%s3430 + $0x6c] sm:$0xf]
        %v3459 = vld [vmem:[%s3430 + $0x70] sm:$0xf]
        %v3460 = vld [vmem:[%s3430 + $0x74] sm:$0xf]
        %v3461 = vld [vmem:[%s3430 + $0x78] sm:$0xf]
        %v3462 = vld [vmem:[%s3430 + $0x7c] sm:$0xf]
        %v3463 = vld [vmem:[%s3430 + $0x80] sm:$0xf]
        %v3464 = vld [vmem:[%s3430 + $0x84] sm:$0xf]
        %v3465 = vld [vmem:[%s3430 + $0x88] sm:$0xf]
        %v3466 = vld [vmem:[%s3430 + $0x8c] sm:$0xf]
        %v3467 = vld [vmem:[%s3430 + $0x90] sm:$0xf]
        %v3468 = vld [vmem:[%s3430 + $0x94] sm:$0xf]
        %v3469 = vld [vmem:[%s3430 + $0x98] sm:$0xf]
        %v3470 = vld [vmem:[%s3430 + $0x9c] sm:$0xf]
        %v3471 = vld [vmem:[%s3430 + $0xa0] sm:$0xf]
        %v3472 = vld [vmem:[%s3430 + $0xa4] sm:$0xf]
        %v3473 = vld [vmem:[%s3430 + $0xa8] sm:$0xf]
        %v3474 = vld [vmem:[%s3430 + $0xac] sm:$0xf]
        %v3475 = vld [vmem:[%s3430 + $0xb0] sm:$0xf]
        %v3476 = vld [vmem:[%s3430 + $0xb4] sm:$0xf]
        %v3477 = vld [vmem:[%s3430 + $0xb8] sm:$0xf]
        %v3478 = vld [vmem:[%s3430 + $0xbc] sm:$0xf]
        %v3527 = vunpack.c.l.b16 %v3431
        %v3528 = vunpack.c.l.b16 %v3432
        %v3529 = vunpack.c.l.b16 %v3433
        %v3530 = vunpack.c.l.b16 %v3434
        %v3531 = vunpack.c.l.b16 %v3435
        %v3532 = vunpack.c.l.b16 %v3436
        %v3533 = vunpack.c.l.b16 %v3437
        %v3534 = vunpack.c.l.b16 %v3438
        %v3535 = vunpack.c.l.b16 %v3439
        %v3536 = vunpack.c.l.b16 %v3440
        %v3537 = vunpack.c.l.b16 %v3441
        %v3538 = vunpack.c.l.b16 %v3442
        %v3539 = vunpack.c.l.b16 %v3443
        %v3540 = vunpack.c.l.b16 %v3444
        %v3541 = vunpack.c.l.b16 %v3445
        %v3542 = vunpack.c.l.b16 %v3446
        %v3543 = vunpack.c.l.b16 %v3447
        %v3544 = vunpack.c.l.b16 %v3448
        %v3545 = vunpack.c.l.b16 %v3449
        %v3546 = vunpack.c.l.b16 %v3450
        %v3547 = vunpack.c.l.b16 %v3451
        %v3548 = vunpack.c.l.b16 %v3452
        %v3549 = vunpack.c.l.b16 %v3453
        %v3550 = vunpack.c.l.b16 %v3454
        %v3551 = vunpack.c.l.b16 %v3455
        %v3552 = vunpack.c.l.b16 %v3456
        %v3553 = vunpack.c.l.b16 %v3457
        %v3554 = vunpack.c.l.b16 %v3458
        %v3555 = vunpack.c.l.b16 %v3459
        %v3556 = vunpack.c.l.b16 %v3460
        %v3557 = vunpack.c.l.b16 %v3461
        %v3558 = vunpack.c.l.b16 %v3462
        %v3559 = vunpack.c.l.b16 %v3463
        %v3560 = vunpack.c.l.b16 %v3464
        %v3561 = vunpack.c.l.b16 %v3465
        %v3562 = vunpack.c.l.b16 %v3466
        %v3563 = vunpack.c.l.b16 %v3467
        %v3564 = vunpack.c.l.b16 %v3468
        %v3565 = vunpack.c.l.b16 %v3469
        %v3566 = vunpack.c.l.b16 %v3470
        %v3567 = vunpack.c.l.b16 %v3471
        %v3568 = vunpack.c.l.b16 %v3472
        %v3569 = vunpack.c.l.b16 %v3473
        %v3570 = vunpack.c.l.b16 %v3474
        %v3571 = vunpack.c.l.b16 %v3475
        %v3572 = vunpack.c.l.b16 %v3476
        %v3573 = vunpack.c.l.b16 %v3477
        %v3574 = vunpack.c.l.b16 %v3478
        %v3575 = vpack.c.b16 %v3528, %v3527
        %v3576 = vpack.c.b16 %v3530, %v3529
        %v3577 = vpack.c.b16 %v3532, %v3531
        %v3578 = vpack.c.b16 %v3534, %v3533
        %v3579 = vpack.c.b16 %v3536, %v3535
        %v3580 = vpack.c.b16 %v3538, %v3537
        %v3581 = vpack.c.b16 %v3540, %v3539
        %v3582 = vpack.c.b16 %v3542, %v3541
        %v3583 = vpack.c.b16 %v3544, %v3543
        %v3584 = vpack.c.b16 %v3546, %v3545
        %v3585 = vpack.c.b16 %v3548, %v3547
        %v3586 = vpack.c.b16 %v3550, %v3549
        %v3587 = vpack.c.b16 %v3552, %v3551
        %v3588 = vpack.c.b16 %v3554, %v3553
        %v3589 = vpack.c.b16 %v3556, %v3555
        %v3590 = vpack.c.b16 %v3558, %v3557
        %v3591 = vpack.c.b16 %v3560, %v3559
        %v3592 = vpack.c.b16 %v3562, %v3561
        %v3593 = vpack.c.b16 %v3564, %v3563
        %v3594 = vpack.c.b16 %v3566, %v3565
        %v3595 = vpack.c.b16 %v3568, %v3567
        %v3596 = vpack.c.b16 %v3570, %v3569
        %v3597 = vpack.c.b16 %v3572, %v3571
        %v3598 = vpack.c.b16 %v3574, %v3573
        %3623 = vmatprep.subr.bf16.mxu0 0
        %3624 = vmatpush1.bf16.msra.mxu0 %v3582
        %3625 = vmatprep.subr.bf16.mxu0 0
        %3626 = vmatpush1.bf16.msra.mxu0 %v3581
        %3627 = vmatprep.subr.bf16.mxu0 0
        %3628 = vmatpush1.bf16.msra.mxu0 %v3580
        %3629 = vmatprep.subr.bf16.mxu0 0
        %3630 = vmatpush1.bf16.msra.mxu0 %v3579
        %3631 = vmatprep.subr.bf16.mxu0 0
        %3632 = vmatpush1.bf16.msra.mxu0 %v3578
        %3633 = vmatprep.subr.bf16.mxu0 0
        %3634 = vmatpush1.bf16.msra.mxu0 %v3577
        %3635 = vmatprep.subr.bf16.mxu0 0
        %3636 = vmatpush1.bf16.msra.mxu0 %v3576
        %3637 = vmatprep.subr.bf16.mxu0 0
        %3638 = vmatpush1.bf16.msra.mxu0 %v3575
        %3639 = vmatprep.subr.bf16.mxu0 0
        %3640 = vmatpush2.bf16.msra.mxu0 %v3590
        %3641 = vmatprep.subr.bf16.mxu0 0
        %3642 = vmatpush2.bf16.msra.mxu0 %v3589
        %3643 = vmatprep.subr.bf16.mxu0 0
        %3644 = vmatpush2.bf16.msra.mxu0 %v3588
        %3645 = vmatprep.subr.bf16.mxu0 0
        %3646 = vmatpush2.bf16.msra.mxu0 %v3587
        %3647 = vmatprep.subr.bf16.mxu0 0
        %3648 = vmatpush2.bf16.msra.mxu0 %v3586
        %3649 = vmatprep.subr.bf16.mxu0 0
        %3650 = vmatpush2.bf16.msra.mxu0 %v3585
        %3651 = vmatprep.subr.bf16.mxu0 0
        %3652 = vmatpush2.bf16.msra.mxu0 %v3584
        %3653 = vmatprep.subr.bf16.mxu0 0
        %3654 = vmatpush2.bf16.msra.mxu0 %v3583
        %3655 = vmatprep.mubr.bf16.mxu0 %v3414
        %3656 = vmatmul.mubr.bf16.gmra.mxu0 %v3402
        %v3657 = vpop.f32.mrf.mxu0
        %v3658 = vadd.f32 0.0, %v3657
        %v3659 = vpop.f32.mrf.mxu0
        %v3660 = vpop.f32.mrf.mxu0
        %v3661 = vadd.f32 0.0, %v3660
        %v3662 = vpop.f32.mrf.mxu0
        %3663 = vmatprep.mubr.bf16.mxu0 %v3415
        %3664 = vmatmul.mubr.bf16.gmra.mxu0 %v3403
        %v3665 = vpop.f32.mrf.mxu0
        %v3666 = vadd.f32 0.0, %v3665
        %v3667 = vpop.f32.mrf.mxu0
        %v3668 = vpop.f32.mrf.mxu0
        %v3669 = vadd.f32 0.0, %v3668
        %v3670 = vpop.f32.mrf.mxu0
        %3671 = vmatprep.mubr.bf16.mxu0 %v3416
        %3672 = vmatmul.mubr.bf16.gmra.mxu0 %v3404
        %v3673 = vpop.f32.mrf.mxu0
        %v3674 = vadd.f32 0.0, %v3673
        %v3675 = vpop.f32.mrf.mxu0
        %v3676 = vpop.f32.mrf.mxu0
        %v3677 = vadd.f32 0.0, %v3676
        %v3678 = vpop.f32.mrf.mxu0
        %3679 = vmatprep.mubr.bf16.mxu0 %v3417
        %3680 = vmatmul.mubr.bf16.gmra.mxu0 %v3405
        %v3681 = vpop.f32.mrf.mxu0
        %v3682 = vadd.f32 0.0, %v3681
        %v3683 = vpop.f32.mrf.mxu0
        %v3684 = vpop.f32.mrf.mxu0
        %v3685 = vadd.f32 0.0, %v3684
        %v3686 = vpop.f32.mrf.mxu0
        %3687 = vdwg.mxu0
        %3688 = vmatprep.subr.bf16.mxu0 0
        %3689 = vmatpush1.bf16.msra.mxu0 %v3598
        %3690 = vmatprep.subr.bf16.mxu0 0
        %3691 = vmatpush1.bf16.msra.mxu0 %v3597
        %3692 = vmatprep.subr.bf16.mxu0 0
        %3693 = vmatpush1.bf16.msra.mxu0 %v3596
        %3694 = vmatprep.subr.bf16.mxu0 0
        %3695 = vmatpush1.bf16.msra.mxu0 %v3595
        %3696 = vmatprep.subr.bf16.mxu0 0
        %3697 = vmatpush1.bf16.msra.mxu0 %v3594
        %3698 = vmatprep.subr.bf16.mxu0 0
        %3699 = vmatpush1.bf16.msra.mxu0 %v3593
        %3700 = vmatprep.subr.bf16.mxu0 0
        %3701 = vmatpush1.bf16.msra.mxu0 %v3592
        %3702 = vmatprep.subr.bf16.mxu0 0
        %3703 = vmatpush1.bf16.msra.mxu0 %v3591
        %3704 = vmatprep.subr.bf16.mxu0 0
        %3705 = vmatpush2.bf16.msra.mxu0 0
        %3706 = vmatprep.subr.bf16.mxu0 0
        %3707 = vmatpush2.bf16.msra.mxu0 0
        %3708 = vmatprep.subr.bf16.mxu0 0
        %3709 = vmatpush2.bf16.msra.mxu0 0
        %3710 = vmatprep.subr.bf16.mxu0 0
        %3711 = vmatpush2.bf16.msra.mxu0 0
        %3712 = vmatprep.subr.bf16.mxu0 0
        %3713 = vmatpush2.bf16.msra.mxu0 0
        %3714 = vmatprep.subr.bf16.mxu0 0
        %3715 = vmatpush2.bf16.msra.mxu0 0
        %3716 = vmatprep.subr.bf16.mxu0 0
        %3717 = vmatpush2.bf16.msra.mxu0 0
        %3718 = vmatprep.subr.bf16.mxu0 0
        %3719 = vmatpush2.bf16.msra.mxu0 0
        %3720 = vmatprep.mubr.bf16.mxu0 0
        %3721 = vmatmul.mubr.bf16.gmra.mxu0 %v3426
        %v3722 = vpop.f32.mrf.mxu0
        %v3723 = vadd.f32 %v3658, %v3722
        %v3724 = vpop.f32.mrf.mxu0
        %v3725 = vpop.f32.mrf.mxu0
        %v3726 = vadd.f32 %v3661, %v3725
        %v3727 = vpop.f32.mrf.mxu0
        %3728 = vmatprep.mubr.bf16.mxu0 0
        %3729 = vmatmul.mubr.bf16.gmra.mxu0 %v3427
        %v3730 = vpop.f32.mrf.mxu0
        %v3731 = vadd.f32 %v3666, %v3730
        %v3732 = vpop.f32.mrf.mxu0
        %v3733 = vpop.f32.mrf.mxu0
        %v3734 = vadd.f32 %v3669, %v3733
        %v3735 = vpop.f32.mrf.mxu0
        %3736 = vmatprep.mubr.bf16.mxu0 0
        %3737 = vmatmul.mubr.bf16.gmra.mxu0 %v3428
        %v3738 = vpop.f32.mrf.mxu0
        %v3739 = vadd.f32 %v3674, %v3738
        %v3740 = vpop.f32.mrf.mxu0
        %v3741 = vpop.f32.mrf.mxu0
        %v3742 = vadd.f32 %v3677, %v3741
        %v3743 = vpop.f32.mrf.mxu0
        %3744 = vmatprep.mubr.bf16.mxu0 0
        %3745 = vmatmul.mubr.bf16.gmra.mxu0 %v3429
        %v3746 = vpop.f32.mrf.mxu0
        %v3747 = vadd.f32 %v3682, %v3746
        %v3748 = vpop.f32.mrf.mxu0
        %v3749 = vpop.f32.mrf.mxu0
        %v3750 = vadd.f32 %v3685, %v3749
        %v3751 = vpop.f32.mrf.mxu0
        %3752 = vdwg.mxu0
        %v3801 = vunpack.c.l.b16 %v3346
        %v3802 = vunpack.c.l.b16 %v3347
        %v3803 = vunpack.c.l.b16 %v3348
        %v3804 = vunpack.c.l.b16 %v3349
        %v3805 = vunpack.c.l.b16 %v3350
        %v3806 = vunpack.c.l.b16 %v3351
        %v3807 = vunpack.c.l.b16 %v3352
        %v3808 = vunpack.c.l.b16 %v3353
        %v3809 = vunpack.c.l.b16 %v3354
        %v3810 = vunpack.c.l.b16 %v3355
        %v3811 = vunpack.c.l.b16 %v3356
        %v3812 = vunpack.c.l.b16 %v3357
        %v3813 = vunpack.c.l.b16 %v3358
        %v3814 = vunpack.c.l.b16 %v3359
        %v3815 = vunpack.c.l.b16 %v3360
        %v3816 = vunpack.c.l.b16 %v3361
        %v3817 = vunpack.c.l.b16 %v3362
        %v3818 = vunpack.c.l.b16 %v3363
        %v3819 = vunpack.c.l.b16 %v3364
        %v3820 = vunpack.c.l.b16 %v3365
        %v3821 = vunpack.c.l.b16 %v3366
        %v3822 = vunpack.c.l.b16 %v3367
        %v3823 = vunpack.c.l.b16 %v3368
        %v3824 = vunpack.c.l.b16 %v3369
        %v3825 = vunpack.c.l.b16 %v3370
        %v3826 = vunpack.c.l.b16 %v3371
        %v3827 = vunpack.c.l.b16 %v3372
        %v3828 = vunpack.c.l.b16 %v3373
        %v3829 = vunpack.c.l.b16 %v3374
        %v3830 = vunpack.c.l.b16 %v3375
        %v3831 = vunpack.c.l.b16 %v3376
        %v3832 = vunpack.c.l.b16 %v3377
        %v3833 = vunpack.c.l.b16 %v3378
        %v3834 = vunpack.c.l.b16 %v3379
        %v3835 = vunpack.c.l.b16 %v3380
        %v3836 = vunpack.c.l.b16 %v3381
        %v3837 = vunpack.c.l.b16 %v3382
        %v3838 = vunpack.c.l.b16 %v3383
        %v3839 = vunpack.c.l.b16 %v3384
        %v3840 = vunpack.c.l.b16 %v3385
        %v3841 = vunpack.c.l.b16 %v3386
        %v3842 = vunpack.c.l.b16 %v3387
        %v3843 = vunpack.c.l.b16 %v3388
        %v3844 = vunpack.c.l.b16 %v3389
        %v3845 = vunpack.c.l.b16 %v3390
        %v3846 = vunpack.c.l.b16 %v3391
        %v3847 = vunpack.c.l.b16 %v3392
        %v3848 = vunpack.c.l.b16 %v3393
        %v3849 = vpack.c.b16 %v3802, %v3801
        %v3850 = vpack.c.b16 %v3804, %v3803
        %v3851 = vpack.c.b16 %v3806, %v3805
        %v3852 = vpack.c.b16 %v3808, %v3807
        %v3853 = vpack.c.b16 %v3810, %v3809
        %v3854 = vpack.c.b16 %v3812, %v3811
        %v3855 = vpack.c.b16 %v3814, %v3813
        %v3856 = vpack.c.b16 %v3816, %v3815
        %v3857 = vpack.c.b16 %v3818, %v3817
        %v3858 = vpack.c.b16 %v3820, %v3819
        %v3859 = vpack.c.b16 %v3822, %v3821
        %v3860 = vpack.c.b16 %v3824, %v3823
        %v3861 = vpack.c.b16 %v3826, %v3825
        %v3862 = vpack.c.b16 %v3828, %v3827
        %v3863 = vpack.c.b16 %v3830, %v3829
        %v3864 = vpack.c.b16 %v3832, %v3831
        %v3865 = vpack.c.b16 %v3834, %v3833
        %v3866 = vpack.c.b16 %v3836, %v3835
        %v3867 = vpack.c.b16 %v3838, %v3837
        %v3868 = vpack.c.b16 %v3840, %v3839
        %v3869 = vpack.c.b16 %v3842, %v3841
        %v3870 = vpack.c.b16 %v3844, %v3843
        %v3871 = vpack.c.b16 %v3846, %v3845
        %v3872 = vpack.c.b16 %v3848, %v3847
        %3897 = vmatprep.subr.bf16.mxu0 0
        %3898 = vmatpush1.bf16.msra.mxu0 %v3856
        %3899 = vmatprep.subr.bf16.mxu0 0
        %3900 = vmatpush1.bf16.msra.mxu0 %v3855
        %3901 = vmatprep.subr.bf16.mxu0 0
        %3902 = vmatpush1.bf16.msra.mxu0 %v3854
        %3903 = vmatprep.subr.bf16.mxu0 0
        %3904 = vmatpush1.bf16.msra.mxu0 %v3853
        %3905 = vmatprep.subr.bf16.mxu0 0
        %3906 = vmatpush1.bf16.msra.mxu0 %v3852
        %3907 = vmatprep.subr.bf16.mxu0 0
        %3908 = vmatpush1.bf16.msra.mxu0 %v3851
        %3909 = vmatprep.subr.bf16.mxu0 0
        %3910 = vmatpush1.bf16.msra.mxu0 %v3850
        %3911 = vmatprep.subr.bf16.mxu0 0
        %3912 = vmatpush1.bf16.msra.mxu0 %v3849
        %3913 = vmatprep.subr.bf16.mxu0 0
        %3914 = vmatpush2.bf16.msra.mxu0 %v3864
        %3915 = vmatprep.subr.bf16.mxu0 0
        %3916 = vmatpush2.bf16.msra.mxu0 %v3863
        %3917 = vmatprep.subr.bf16.mxu0 0
        %3918 = vmatpush2.bf16.msra.mxu0 %v3862
        %3919 = vmatprep.subr.bf16.mxu0 0
        %3920 = vmatpush2.bf16.msra.mxu0 %v3861
        %3921 = vmatprep.subr.bf16.mxu0 0
        %3922 = vmatpush2.bf16.msra.mxu0 %v3860
        %3923 = vmatprep.subr.bf16.mxu0 0
        %3924 = vmatpush2.bf16.msra.mxu0 %v3859
        %3925 = vmatprep.subr.bf16.mxu0 0
        %3926 = vmatpush2.bf16.msra.mxu0 %v3858
        %3927 = vmatprep.subr.bf16.mxu0 0
        %3928 = vmatpush2.bf16.msra.mxu0 %v3857
        %3929 = vmatprep.mubr.bf16.mxu0 %v3330
        %3930 = vmatmul.mubr.bf16.gmra.mxu0 %v3318
        %v3931 = vpop.f32.mrf.mxu0
        %v3932 = vadd.f32 %v3723, %v3931
        %v3933 = vpop.f32.mrf.mxu0
        %v3934 = vpop.f32.mrf.mxu0
        %v3935 = vadd.f32 %v3726, %v3934
        %v3936 = vpop.f32.mrf.mxu0
        %3937 = vmatprep.mubr.bf16.mxu0 %v3331
        %3938 = vmatmul.mubr.bf16.gmra.mxu0 %v3319
        %v3939 = vpop.f32.mrf.mxu0
        %v3940 = vadd.f32 %v3731, %v3939
        %v3941 = vpop.f32.mrf.mxu0
        %v3942 = vpop.f32.mrf.mxu0
        %v3943 = vadd.f32 %v3734, %v3942
        %v3944 = vpop.f32.mrf.mxu0
        %3945 = vmatprep.mubr.bf16.mxu0 %v3332
        %3946 = vmatmul.mubr.bf16.gmra.mxu0 %v3320
        %v3947 = vpop.f32.mrf.mxu0
        %v3948 = vadd.f32 %v3739, %v3947
        %v3949 = vpop.f32.mrf.mxu0
        %v3950 = vpop.f32.mrf.mxu0
        %v3951 = vadd.f32 %v3742, %v3950
        %v3952 = vpop.f32.mrf.mxu0
        %3953 = vmatprep.mubr.bf16.mxu0 %v3333
        %3954 = vmatmul.mubr.bf16.gmra.mxu0 %v3321
        %v3955 = vpop.f32.mrf.mxu0
        %v3956 = vadd.f32 %v3747, %v3955
        %v3957 = vpop.f32.mrf.mxu0
        %v3958 = vpop.f32.mrf.mxu0
        %v3959 = vadd.f32 %v3750, %v3958
        %v3960 = vpop.f32.mrf.mxu0
        %3961 = vdwg.mxu0
        %3962 = vmatprep.subr.bf16.mxu0 0
        %3963 = vmatpush1.bf16.msra.mxu0 %v3872
        %3964 = vmatprep.subr.bf16.mxu0 0
        %3965 = vmatpush1.bf16.msra.mxu0 %v3871
        %3966 = vmatprep.subr.bf16.mxu0 0
        %3967 = vmatpush1.bf16.msra.mxu0 %v3870
        %3968 = vmatprep.subr.bf16.mxu0 0
        %3969 = vmatpush1.bf16.msra.mxu0 %v3869
        %3970 = vmatprep.subr.bf16.mxu0 0
        %3971 = vmatpush1.bf16.msra.mxu0 %v3868
        %3972 = vmatprep.subr.bf16.mxu0 0
        %3973 = vmatpush1.bf16.msra.mxu0 %v3867
        %3974 = vmatprep.subr.bf16.mxu0 0
        %3975 = vmatpush1.bf16.msra.mxu0 %v3866
        %3976 = vmatprep.subr.bf16.mxu0 0
        %3977 = vmatpush1.bf16.msra.mxu0 %v3865
        %3978 = vmatprep.subr.bf16.mxu0 0
        %3979 = vmatpush2.bf16.msra.mxu0 0
        %3980 = vmatprep.subr.bf16.mxu0 0
        %3981 = vmatpush2.bf16.msra.mxu0 0
        %3982 = vmatprep.subr.bf16.mxu0 0
        %3983 = vmatpush2.bf16.msra.mxu0 0
        %3984 = vmatprep.subr.bf16.mxu0 0
        %3985 = vmatpush2.bf16.msra.mxu0 0
        %3986 = vmatprep.subr.bf16.mxu0 0
        %3987 = vmatpush2.bf16.msra.mxu0 0
        %3988 = vmatprep.subr.bf16.mxu0 0
        %3989 = vmatpush2.bf16.msra.mxu0 0
        %3990 = vmatprep.subr.bf16.mxu0 0
        %3991 = vmatpush2.bf16.msra.mxu0 0
        %3992 = vmatprep.subr.bf16.mxu0 0
        %3993 = vmatpush2.bf16.msra.mxu0 0
        %3994 = vmatprep.mubr.bf16.mxu0 0
        %3995 = vmatmul.mubr.bf16.gmra.mxu0 %v3342
        %v3996 = vpop.f32.mrf.mxu0
        %v3997 = vadd.f32 %v3932, %v3996
        %v3998 = vpop.f32.mrf.mxu0
        %v3999 = vpop.f32.mrf.mxu0
        %v4000 = vadd.f32 %v3935, %v3999
        %v4001 = vpop.f32.mrf.mxu0
        %4002 = vmatprep.mubr.bf16.mxu0 0
        %4003 = vmatmul.mubr.bf16.gmra.mxu0 %v3343
        %v4004 = vpop.f32.mrf.mxu0
        %v4005 = vadd.f32 %v3940, %v4004
        %v4006 = vpop.f32.mrf.mxu0
        %v4007 = vpop.f32.mrf.mxu0
        %v4008 = vadd.f32 %v3943, %v4007
        %v4009 = vpop.f32.mrf.mxu0
        %4010 = vmatprep.mubr.bf16.mxu0 0
        %4011 = vmatmul.mubr.bf16.gmra.mxu0 %v3344
        %v4012 = vpop.f32.mrf.mxu0
        %v4013 = vadd.f32 %v3948, %v4012
        %v4014 = vpop.f32.mrf.mxu0
        %v4015 = vpop.f32.mrf.mxu0
        %v4016 = vadd.f32 %v3951, %v4015
        %v4017 = vpop.f32.mrf.mxu0
        %4018 = vmatprep.mubr.bf16.mxu0 0
        %4019 = vmatmul.mubr.bf16.gmra.mxu0 %v3345
        %v4020 = vpop.f32.mrf.mxu0
        %v4021 = vadd.f32 %v3956, %v4020
        %v4022 = vpop.f32.mrf.mxu0
        %v4023 = vpop.f32.mrf.mxu0
        %v4024 = vadd.f32 %v3959, %v4023
        %v4025 = vpop.f32.mrf.mxu0
        %4026 = vdwg.mxu0
        %s4027 = scalar_lea.vmem [#allocation4], 32
        %v4028 = vld [vmem:[%s4027] sm:$0xff]
        %v4029 = vld [vmem:[%s4027 + $0x20] sm:$0xff]
        %v4030 = vld [vmem:[%s4027 + $0x40] sm:$0xff]
        %v4031 = vld [vmem:[%s4027 + $0x60] sm:$0xff]
        %v4032 = vld [vmem:[%s4027 + $0x80] sm:$0xff]
        %v4033 = vld [vmem:[%s4027 + $0xa0] sm:$0xff]
        %v4034 = vld [vmem:[%s4027 + $0xc0] sm:$0xff]
        %v4035 = vld [vmem:[%s4027 + $0xe0] sm:$0xff]
        %v4036 = vpack.c.bf16 %v4029, %v4028
        %v4037 = vpack.c.bf16 %v4031, %v4030
        %v4038 = vpack.c.bf16 %v4033, %v4032
        %v4039 = vpack.c.bf16 %v4035, %v4034
        %s4040 = scalar_lea.vmem [#allocation5], 16
        %v4041 = vld [vmem:[%s4040] sm:$0xff]
        %v4042 = vld [vmem:[%s4040 + $0x10] sm:$0xff]
        %v4043 = vld [vmem:[%s4040 + $0x20] sm:$0xff]
        %v4044 = vld [vmem:[%s4040 + $0x30] sm:$0xff]
        %v4045 = vld [vmem:[%s4040 + $0x40] sm:$0xff]
        %v4046 = vld [vmem:[%s4040 + $0x50] sm:$0xff]
        %v4047 = vld [vmem:[%s4040 + $0x60] sm:$0xff]
        %v4048 = vld [vmem:[%s4040 + $0x70] sm:$0xff]
        %v4049 = vpack.c.bf16 %v4042, %v4041
        %v4050 = vpack.c.bf16 %v4044, %v4043
        %v4051 = vpack.c.bf16 %v4046, %v4045
        %v4052 = vpack.c.bf16 %v4048, %v4047
        %v4053 = vld [vmem:[%s4027 + $0x1] sm:$0xff]
        %v4054 = vld [vmem:[%s4027 + $0x21] sm:$0xff]
        %v4055 = vld [vmem:[%s4027 + $0x41] sm:$0xff]
        %v4056 = vld [vmem:[%s4027 + $0x61] sm:$0xff]
        %v4057 = vld [vmem:[%s4027 + $0x81] sm:$0xff]
        %v4058 = vld [vmem:[%s4027 + $0xa1] sm:$0xff]
        %v4059 = vld [vmem:[%s4027 + $0xc1] sm:$0xff]
        %v4060 = vld [vmem:[%s4027 + $0xe1] sm:$0xff]
        %v4061 = vpack.c.bf16 %v4054, %v4053
        %v4062 = vpack.c.bf16 %v4056, %v4055
        %v4063 = vpack.c.bf16 %v4058, %v4057
        %v4064 = vpack.c.bf16 %v4060, %v4059
        %s4065 = scalar_lea.vmem %s3, 384
        %v4066 = vld [vmem:[%s4065] sm:$0xf]
        %v4067 = vld [vmem:[%s4065 + $0x4] sm:$0xf]
        %v4068 = vld [vmem:[%s4065 + $0x8] sm:$0xf]
        %v4069 = vld [vmem:[%s4065 + $0xc] sm:$0xf]
        %v4070 = vld [vmem:[%s4065 + $0x10] sm:$0xf]
        %v4071 = vld [vmem:[%s4065 + $0x14] sm:$0xf]
        %v4072 = vld [vmem:[%s4065 + $0x18] sm:$0xf]
        %v4073 = vld [vmem:[%s4065 + $0x1c] sm:$0xf]
        %v4074 = vld [vmem:[%s4065 + $0x20] sm:$0xf]
        %v4075 = vld [vmem:[%s4065 + $0x24] sm:$0xf]
        %v4076 = vld [vmem:[%s4065 + $0x28] sm:$0xf]
        %v4077 = vld [vmem:[%s4065 + $0x2c] sm:$0xf]
        %v4078 = vld [vmem:[%s4065 + $0x30] sm:$0xf]
        %v4079 = vld [vmem:[%s4065 + $0x34] sm:$0xf]
        %v4080 = vld [vmem:[%s4065 + $0x38] sm:$0xf]
        %v4081 = vld [vmem:[%s4065 + $0x3c] sm:$0xf]
        %v4082 = vld [vmem:[%s4065 + $0x40] sm:$0xf]
        %v4083 = vld [vmem:[%s4065 + $0x44] sm:$0xf]
        %v4084 = vld [vmem:[%s4065 + $0x48] sm:$0xf]
        %v4085 = vld [vmem:[%s4065 + $0x4c] sm:$0xf]
        %v4086 = vld [vmem:[%s4065 + $0x50] sm:$0xf]
        %v4087 = vld [vmem:[%s4065 + $0x54] sm:$0xf]
        %v4088 = vld [vmem:[%s4065 + $0x58] sm:$0xf]
        %v4089 = vld [vmem:[%s4065 + $0x5c] sm:$0xf]
        %v4090 = vld [vmem:[%s4065 + $0x60] sm:$0xf]
        %v4091 = vld [vmem:[%s4065 + $0x64] sm:$0xf]
        %v4092 = vld [vmem:[%s4065 + $0x68] sm:$0xf]
        %v4093 = vld [vmem:[%s4065 + $0x6c] sm:$0xf]
        %v4094 = vld [vmem:[%s4065 + $0x70] sm:$0xf]
        %v4095 = vld [vmem:[%s4065 + $0x74] sm:$0xf]
        %v4096 = vld [vmem:[%s4065 + $0x78] sm:$0xf]
        %v4097 = vld [vmem:[%s4065 + $0x7c] sm:$0xf]
        %v4098 = vld [vmem:[%s4065 + $0x80] sm:$0xf]
        %v4099 = vld [vmem:[%s4065 + $0x84] sm:$0xf]
        %v4100 = vld [vmem:[%s4065 + $0x88] sm:$0xf]
        %v4101 = vld [vmem:[%s4065 + $0x8c] sm:$0xf]
        %v4102 = vld [vmem:[%s4065 + $0x90] sm:$0xf]
        %v4103 = vld [vmem:[%s4065 + $0x94] sm:$0xf]
        %v4104 = vld [vmem:[%s4065 + $0x98] sm:$0xf]
        %v4105 = vld [vmem:[%s4065 + $0x9c] sm:$0xf]
        %v4106 = vld [vmem:[%s4065 + $0xa0] sm:$0xf]
        %v4107 = vld [vmem:[%s4065 + $0xa4] sm:$0xf]
        %v4108 = vld [vmem:[%s4065 + $0xa8] sm:$0xf]
        %v4109 = vld [vmem:[%s4065 + $0xac] sm:$0xf]
        %v4110 = vld [vmem:[%s4065 + $0xb0] sm:$0xf]
        %v4111 = vld [vmem:[%s4065 + $0xb4] sm:$0xf]
        %v4112 = vld [vmem:[%s4065 + $0xb8] sm:$0xf]
        %v4113 = vld [vmem:[%s4065 + $0xbc] sm:$0xf]
        %v4162 = vunpack.c.l.b16 %v4066
        %v4163 = vunpack.c.l.b16 %v4067
        %v4164 = vunpack.c.l.b16 %v4068
        %v4165 = vunpack.c.l.b16 %v4069
        %v4166 = vunpack.c.l.b16 %v4070
        %v4167 = vunpack.c.l.b16 %v4071
        %v4168 = vunpack.c.l.b16 %v4072
        %v4169 = vunpack.c.l.b16 %v4073
        %v4170 = vunpack.c.l.b16 %v4074
        %v4171 = vunpack.c.l.b16 %v4075
        %v4172 = vunpack.c.l.b16 %v4076
        %v4173 = vunpack.c.l.b16 %v4077
        %v4174 = vunpack.c.l.b16 %v4078
        %v4175 = vunpack.c.l.b16 %v4079
        %v4176 = vunpack.c.l.b16 %v4080
        %v4177 = vunpack.c.l.b16 %v4081
        %v4178 = vunpack.c.l.b16 %v4082
        %v4179 = vunpack.c.l.b16 %v4083
        %v4180 = vunpack.c.l.b16 %v4084
        %v4181 = vunpack.c.l.b16 %v4085
        %v4182 = vunpack.c.l.b16 %v4086
        %v4183 = vunpack.c.l.b16 %v4087
        %v4184 = vunpack.c.l.b16 %v4088
        %v4185 = vunpack.c.l.b16 %v4089
        %v4186 = vunpack.c.l.b16 %v4090
        %v4187 = vunpack.c.l.b16 %v4091
        %v4188 = vunpack.c.l.b16 %v4092
        %v4189 = vunpack.c.l.b16 %v4093
        %v4190 = vunpack.c.l.b16 %v4094
        %v4191 = vunpack.c.l.b16 %v4095
        %v4192 = vunpack.c.l.b16 %v4096
        %v4193 = vunpack.c.l.b16 %v4097
        %v4194 = vunpack.c.l.b16 %v4098
        %v4195 = vunpack.c.l.b16 %v4099
        %v4196 = vunpack.c.l.b16 %v4100
        %v4197 = vunpack.c.l.b16 %v4101
        %v4198 = vunpack.c.l.b16 %v4102
        %v4199 = vunpack.c.l.b16 %v4103
        %v4200 = vunpack.c.l.b16 %v4104
        %v4201 = vunpack.c.l.b16 %v4105
        %v4202 = vunpack.c.l.b16 %v4106
        %v4203 = vunpack.c.l.b16 %v4107
        %v4204 = vunpack.c.l.b16 %v4108
        %v4205 = vunpack.c.l.b16 %v4109
        %v4206 = vunpack.c.l.b16 %v4110
        %v4207 = vunpack.c.l.b16 %v4111
        %v4208 = vunpack.c.l.b16 %v4112
        %v4209 = vunpack.c.l.b16 %v4113
        %v4210 = vpack.c.b16 %v4163, %v4162
        %v4211 = vpack.c.b16 %v4165, %v4164
        %v4212 = vpack.c.b16 %v4167, %v4166
        %v4213 = vpack.c.b16 %v4169, %v4168
        %v4214 = vpack.c.b16 %v4171, %v4170
        %v4215 = vpack.c.b16 %v4173, %v4172
        %v4216 = vpack.c.b16 %v4175, %v4174
        %v4217 = vpack.c.b16 %v4177, %v4176
        %v4218 = vpack.c.b16 %v4179, %v4178
        %v4219 = vpack.c.b16 %v4181, %v4180
        %v4220 = vpack.c.b16 %v4183, %v4182
        %v4221 = vpack.c.b16 %v4185, %v4184
        %v4222 = vpack.c.b16 %v4187, %v4186
        %v4223 = vpack.c.b16 %v4189, %v4188
        %v4224 = vpack.c.b16 %v4191, %v4190
        %v4225 = vpack.c.b16 %v4193, %v4192
        %v4226 = vpack.c.b16 %v4195, %v4194
        %v4227 = vpack.c.b16 %v4197, %v4196
        %v4228 = vpack.c.b16 %v4199, %v4198
        %v4229 = vpack.c.b16 %v4201, %v4200
        %v4230 = vpack.c.b16 %v4203, %v4202
        %v4231 = vpack.c.b16 %v4205, %v4204
        %v4232 = vpack.c.b16 %v4207, %v4206
        %v4233 = vpack.c.b16 %v4209, %v4208
        %4258 = vmatprep.subr.bf16.mxu0 0
        %4259 = vmatpush1.bf16.msra.mxu0 %v4217
        %4260 = vmatprep.subr.bf16.mxu0 0
        %4261 = vmatpush1.bf16.msra.mxu0 %v4216
        %4262 = vmatprep.subr.bf16.mxu0 0
        %4263 = vmatpush1.bf16.msra.mxu0 %v4215
        %4264 = vmatprep.subr.bf16.mxu0 0
        %4265 = vmatpush1.bf16.msra.mxu0 %v4214
        %4266 = vmatprep.subr.bf16.mxu0 0
        %4267 = vmatpush1.bf16.msra.mxu0 %v4213
        %4268 = vmatprep.subr.bf16.mxu0 0
        %4269 = vmatpush1.bf16.msra.mxu0 %v4212
        %4270 = vmatprep.subr.bf16.mxu0 0
        %4271 = vmatpush1.bf16.msra.mxu0 %v4211
        %4272 = vmatprep.subr.bf16.mxu0 0
        %4273 = vmatpush1.bf16.msra.mxu0 %v4210
        %4274 = vmatprep.subr.bf16.mxu0 0
        %4275 = vmatpush2.bf16.msra.mxu0 %v4225
        %4276 = vmatprep.subr.bf16.mxu0 0
        %4277 = vmatpush2.bf16.msra.mxu0 %v4224
        %4278 = vmatprep.subr.bf16.mxu0 0
        %4279 = vmatpush2.bf16.msra.mxu0 %v4223
        %4280 = vmatprep.subr.bf16.mxu0 0
        %4281 = vmatpush2.bf16.msra.mxu0 %v4222
        %4282 = vmatprep.subr.bf16.mxu0 0
        %4283 = vmatpush2.bf16.msra.mxu0 %v4221
        %4284 = vmatprep.subr.bf16.mxu0 0
        %4285 = vmatpush2.bf16.msra.mxu0 %v4220
        %4286 = vmatprep.subr.bf16.mxu0 0
        %4287 = vmatpush2.bf16.msra.mxu0 %v4219
        %4288 = vmatprep.subr.bf16.mxu0 0
        %4289 = vmatpush2.bf16.msra.mxu0 %v4218
        %4290 = vmatprep.mubr.bf16.mxu0 %v4049
        %4291 = vmatmul.mubr.bf16.gmra.mxu0 %v4036
        %v4292 = vpop.f32.mrf.mxu0
        %v4293 = vadd.f32 0.0, %v4292
        %v4294 = vpop.f32.mrf.mxu0
        %v4295 = vpop.f32.mrf.mxu0
        %v4296 = vadd.f32 0.0, %v4295
        %v4297 = vpop.f32.mrf.mxu0
        %4298 = vmatprep.mubr.bf16.mxu0 %v4050
        %4299 = vmatmul.mubr.bf16.gmra.mxu0 %v4037
        %v4300 = vpop.f32.mrf.mxu0
        %v4301 = vadd.f32 0.0, %v4300
        %v4302 = vpop.f32.mrf.mxu0
        %v4303 = vpop.f32.mrf.mxu0
        %v4304 = vadd.f32 0.0, %v4303
        %v4305 = vpop.f32.mrf.mxu0
        %4306 = vmatprep.mubr.bf16.mxu0 %v4051
        %4307 = vmatmul.mubr.bf16.gmra.mxu0 %v4038
        %v4308 = vpop.f32.mrf.mxu0
        %v4309 = vadd.f32 0.0, %v4308
        %v4310 = vpop.f32.mrf.mxu0
        %v4311 = vpop.f32.mrf.mxu0
        %v4312 = vadd.f32 0.0, %v4311
        %v4313 = vpop.f32.mrf.mxu0
        %4314 = vmatprep.mubr.bf16.mxu0 %v4052
        %4315 = vmatmul.mubr.bf16.gmra.mxu0 %v4039
        %v4316 = vpop.f32.mrf.mxu0
        %v4317 = vadd.f32 0.0, %v4316
        %v4318 = vpop.f32.mrf.mxu0
        %v4319 = vpop.f32.mrf.mxu0
        %v4320 = vadd.f32 0.0, %v4319
        %v4321 = vpop.f32.mrf.mxu0
        %4322 = vdwg.mxu0
        %4323 = vmatprep.subr.bf16.mxu0 0
        %4324 = vmatpush1.bf16.msra.mxu0 %v4233
        %4325 = vmatprep.subr.bf16.mxu0 0
        %4326 = vmatpush1.bf16.msra.mxu0 %v4232
        %4327 = vmatprep.subr.bf16.mxu0 0
        %4328 = vmatpush1.bf16.msra.mxu0 %v4231
        %4329 = vmatprep.subr.bf16.mxu0 0
        %4330 = vmatpush1.bf16.msra.mxu0 %v4230
        %4331 = vmatprep.subr.bf16.mxu0 0
        %4332 = vmatpush1.bf16.msra.mxu0 %v4229
        %4333 = vmatprep.subr.bf16.mxu0 0
        %4334 = vmatpush1.bf16.msra.mxu0 %v4228
        %4335 = vmatprep.subr.bf16.mxu0 0
        %4336 = vmatpush1.bf16.msra.mxu0 %v4227
        %4337 = vmatprep.subr.bf16.mxu0 0
        %4338 = vmatpush1.bf16.msra.mxu0 %v4226
        %4339 = vmatprep.subr.bf16.mxu0 0
        %4340 = vmatpush2.bf16.msra.mxu0 0
        %4341 = vmatprep.subr.bf16.mxu0 0
        %4342 = vmatpush2.bf16.msra.mxu0 0
        %4343 = vmatprep.subr.bf16.mxu0 0
        %4344 = vmatpush2.bf16.msra.mxu0 0
        %4345 = vmatprep.subr.bf16.mxu0 0
        %4346 = vmatpush2.bf16.msra.mxu0 0
        %4347 = vmatprep.subr.bf16.mxu0 0
        %4348 = vmatpush2.bf16.msra.mxu0 0
        %4349 = vmatprep.subr.bf16.mxu0 0
        %4350 = vmatpush2.bf16.msra.mxu0 0
        %4351 = vmatprep.subr.bf16.mxu0 0
        %4352 = vmatpush2.bf16.msra.mxu0 0
        %4353 = vmatprep.subr.bf16.mxu0 0
        %4354 = vmatpush2.bf16.msra.mxu0 0
        %4355 = vmatprep.mubr.bf16.mxu0 0
        %4356 = vmatmul.mubr.bf16.gmra.mxu0 %v4061
        %v4357 = vpop.f32.mrf.mxu0
        %v4358 = vadd.f32 %v4293, %v4357
        %v4359 = vpop.f32.mrf.mxu0
        %v4360 = vpop.f32.mrf.mxu0
        %v4361 = vadd.f32 %v4296, %v4360
        %v4362 = vpop.f32.mrf.mxu0
        %4363 = vmatprep.mubr.bf16.mxu0 0
        %4364 = vmatmul.mubr.bf16.gmra.mxu0 %v4062
        %v4365 = vpop.f32.mrf.mxu0
        %v4366 = vadd.f32 %v4301, %v4365
        %v4367 = vpop.f32.mrf.mxu0
        %v4368 = vpop.f32.mrf.mxu0
        %v4369 = vadd.f32 %v4304, %v4368
        %v4370 = vpop.f32.mrf.mxu0
        %4371 = vmatprep.mubr.bf16.mxu0 0
        %4372 = vmatmul.mubr.bf16.gmra.mxu0 %v4063
        %v4373 = vpop.f32.mrf.mxu0
        %v4374 = vadd.f32 %v4309, %v4373
        %v4375 = vpop.f32.mrf.mxu0
        %v4376 = vpop.f32.mrf.mxu0
        %v4377 = vadd.f32 %v4312, %v4376
        %v4378 = vpop.f32.mrf.mxu0
        %4379 = vmatprep.mubr.bf16.mxu0 0
        %4380 = vmatmul.mubr.bf16.gmra.mxu0 %v4064
        %v4381 = vpop.f32.mrf.mxu0
        %v4382 = vadd.f32 %v4317, %v4381
        %v4383 = vpop.f32.mrf.mxu0
        %v4384 = vpop.f32.mrf.mxu0
        %v4385 = vadd.f32 %v4320, %v4384
        %v4386 = vpop.f32.mrf.mxu0
        %4387 = vdwg.mxu0
        %v4388 = vadd.f32 %v3997, %v4358
        %v4389 = vadd.f32 %v4000, %v4361
        %v4390 = vadd.f32 %v4005, %v4366
        %v4391 = vadd.f32 %v4008, %v4369
        %v4392 = vadd.f32 %v4013, %v4374
        %v4393 = vadd.f32 %v4016, %v4377
        %v4394 = vadd.f32 %v4021, %v4382
        %v4395 = vadd.f32 %v4024, %v4385
        %v4397 = vlaneseq
        %v4398 = vshrl.u32 %v4397, 7
        %v4399 = vsub.s32 0, %v4398
        %v4400 = vrot.slane %v389, %v4399
        %v4402 = vadd.f32 %v4388, %v4400
        %v4403 = vadd.f32 %v4389, %v4400
        %v4404 = vadd.f32 %v4390, %v4400
        %v4405 = vadd.f32 %v4391, %v4400
        %v4406 = vadd.f32 %v4392, %v4400
        %v4407 = vadd.f32 %v4393, %v4400
        %v4408 = vadd.f32 %v4394, %v4400
        %v4409 = vadd.f32 %v4395, %v4400
        %v4410 = vxor.u32 %v4402, 2147483648
        %v4411 = vxor.u32 %v4403, 2147483648
        %v4412 = vxor.u32 %v4404, 2147483648
        %v4413 = vxor.u32 %v4405, 2147483648
        %v4414 = vxor.u32 %v4406, 2147483648
        %v4415 = vxor.u32 %v4407, 2147483648
        %v4416 = vxor.u32 %v4408, 2147483648
        %v4417 = vxor.u32 %v4409, 2147483648
        %v4418 = vmul.f32 %v4410, 1.442695
        %v4419 = vpow.pop %v4418
        %v4420 = vmul.f32 %v4411, 1.442695
        %v4421 = vpow.pop %v4420
        %v4422 = vmul.f32 %v4412, 1.442695
        %v4423 = vpow.pop %v4422
        %v4424 = vmul.f32 %v4413, 1.442695
        %v4425 = vpow.pop %v4424
        %v4426 = vmul.f32 %v4414, 1.442695
        %v4427 = vpow.pop %v4426
        %v4428 = vmul.f32 %v4415, 1.442695
        %v4429 = vpow.pop %v4428
        %v4430 = vmul.f32 %v4416, 1.442695
        %v4431 = vpow.pop %v4430
        %v4432 = vmul.f32 %v4417, 1.442695
        %v4433 = vpow.pop %v4432
        %v4434 = vadd.f32 %v4419, 1.0
        %v4435 = vadd.f32 %v4421, 1.0
        %v4436 = vadd.f32 %v4423, 1.0
        %v4437 = vadd.f32 %v4425, 1.0
        %v4438 = vadd.f32 %v4427, 1.0
        %v4439 = vadd.f32 %v4429, 1.0
        %v4440 = vadd.f32 %v4431, 1.0
        %v4441 = vadd.f32 %v4433, 1.0
        %v4442 = vrcp.pop %v4434
        %v4443 = vmul.f32 1.0, %v4442
        %v4444 = vrcp.pop %v4435
        %v4445 = vmul.f32 1.0, %v4444
        %v4446 = vrcp.pop %v4436
        %v4447 = vmul.f32 1.0, %v4446
        %v4448 = vrcp.pop %v4437
        %v4449 = vmul.f32 1.0, %v4448
        %v4450 = vrcp.pop %v4438
        %v4451 = vmul.f32 1.0, %v4450
        %v4452 = vrcp.pop %v4439
        %v4453 = vmul.f32 1.0, %v4452
        %v4454 = vrcp.pop %v4440
        %v4455 = vmul.f32 1.0, %v4454
        %v4456 = vrcp.pop %v4441
        %v4457 = vmul.f32 1.0, %v4456
        %4458 = vst [vmem:[%s217] sm:$0xff] %v4443
        %4459 = vst [vmem:[%s217 + $0x8] sm:$0xff] %v4445
        %4460 = vst [vmem:[%s217 + $0x10] sm:$0xff] %v4447
        %4461 = vst [vmem:[%s217 + $0x18] sm:$0xff] %v4449
        %4462 = vst [vmem:[%s217 + $0x20] sm:$0xff] %v4451
        %4463 = vst [vmem:[%s217 + $0x28] sm:$0xff] %v4453
        %4464 = vst [vmem:[%s217 + $0x30] sm:$0xff] %v4455
        %4465 = vst [vmem:[%s217 + $0x38] sm:$0xff] %v4457
        %s4466 = sand.u32 %s137, 1
        %s4467 = scalar_lea.sflag [#allocation7], %s4466
        %s4468 = sand.u32 %s137, 1
        %s4469 = smul.addr %s4468, 64
        %s4470 = scalar_lea.vmem [#allocation6], %s4469
        // Predicated region
        $region41: #{model_tanh_forward.1} parent=39 // pred_check
          %p4471 = pneg %p147
        $region42: #{model_tanh_forward.1} parent=39 // pred_check_branch
          %4473 = sbr.rel (%p4471) target = $region44
        $region43: #{model_tanh_forward.1} parent=39 // pred_region
          %s4475 = ssub.s32 1024, 1024
          %4476 = vsyncadd %s4467, %s4475
          %s4477 = smul.addr %s19, 8
          %s4478 = smul.addr %s4477, 128
          %s4479 = scalar_lea.hbm %s5, %s4478
          %s4480 = sshll.u32 %s4470, 4
          %s4481 = int_to_ptr.vmem [resolvable:$true] %s4480
          %4486 = dma.vmem_to_hbm [thread:$0]  %s4481, 1024, %s4479, %s4467, 128, 128, 8
        $region44: #{model_tanh_forward.1} parent=39 // pred_fallthru
          _
      $region40: #{model_tanh_forward.1} parent=5 // pred_fallthru
        _
      %p4487 = scmp.le.s32.totalorder 2, %s14
      // Predicated region
      $region45: #{model_tanh_forward.1} parent=5 // pred_check
        %p4488 = pneg %p4487
      $region46: #{model_tanh_forward.1} parent=5 // pred_check_branch
        %4490 = sbr.rel (%p4488) target = $region48
      $region47: #{model_tanh_forward.1} parent=5 // pred_region
        %s4491 = ssub.s32 %s14, 2
        // Predicated region
        $region49: #{model_tanh_forward.1} parent=47 // pred_check
          %p4492 = pneg %p153
        $region50: #{model_tanh_forward.1} parent=47 // pred_check_branch
          %4494 = sbr.rel (%p4492) target = $region52
        $region51: #{model_tanh_forward.1} parent=47 // pred_region
          %s4495 = sand.u32 %s138, 1
          %s4496 = scalar_lea.sflag [#allocation7], %s4495
          %s4497 = sand.u32 %s138, 1
          %s4498 = smul.addr %s4497, 64
          %s4499 = scalar_lea.vmem [#allocation6], %s4498
          %4500 = dma.done %s4496, 1024
        $region52: #{model_tanh_forward.1} parent=47 // pred_fallthru
          _
      $region48: #{model_tanh_forward.1} parent=5 // pred_fallthru
        _
    $region6: #{model_tanh_forward.1} parent=1 // loop_footer
      %s18 = sadd.s32 1, %s14
    $region7: #{model_tanh_forward.1} parent=1 // loop_footer_branch
      %13 = sbr.rel target = $region3
    $region8: #{model_tanh_forward.1} parent=1 // loop_exit
      _
    %4501 = vsyncpa [#allocation7], 1
    %s4502 = scalar_lea.sflag [#allocation7], 1
    %4503 = vsyncpa %s4502, 1

</llo_original>
